<compile_context>
chip_gen: v7x
topology: tpu7x:2x2x1
jax: 0.10.0
libtpu: 0.0.40
codegen_flags: <defaults>
</compile_context>

<pallas_src>
import math
import functools

import jax
import jax.numpy as jnp
from jax.experimental import pallas as pl
from jax.experimental.pallas import tpu as pltpu

LN_EPS = 1e-3  # onmt BottleLayerNorm eps


# ----------------------------- kernel helpers ------------------------------

def _project(key_ref, value_ref, query_ref, wk_ref, wv_ref, wq_ref):
    """QKV projections as single (bt*L, D) @ (D, D) matmuls (bf16 in, f32 acc).

    Weights arrive pre-cast to bf16 (grid-constant) and 1/sqrt(dph) is already
    folded into Wq, so there is no per-step cast / scale work here.
    """
    bt, k_len, D = key_ref.shape
    _, q_len, _ = query_ref.shape
    bf16, f32 = jnp.bfloat16, jnp.float32
    k2 = key_ref[...].reshape(bt * k_len, D).astype(bf16)
    v2 = value_ref[...].reshape(bt * k_len, D).astype(bf16)
    q2 = query_ref[...].reshape(bt * q_len, D).astype(bf16)
    k_up = jnp.dot(k2, wk_ref[...], preferred_element_type=f32)
    v_up = jnp.dot(v2, wv_ref[...], preferred_element_type=f32)
    q_up = jnp.dot(q2, wq_ref[...], preferred_element_type=f32)
    return k_up, v_up, q_up


def _softmax(scores):
    """Numerically-stable softmax in f32; divide via EUP approx reciprocal."""
    m = jnp.max(scores, axis=-1, keepdims=True)
    e = jnp.exp(scores - m)
    return e * pl.reciprocal(jnp.sum(e, axis=-1, keepdims=True), approx=True)


def _residual_layer_norm(out, query, gain, bias, D):
    """Residual (dropout = eval identity) + onmt BottleLayerNorm:
       (x - mu) / (std_unbiased + eps) * a_2 + b_2."""
    res = out + query
    mu = jnp.mean(res, axis=-1, keepdims=True)
    var = jnp.sum((res - mu) ** 2, axis=-1, keepdims=True) / (D - 1)
    inv_sigma = pl.reciprocal(jnp.sqrt(var) + LN_EPS, approx=True)
    return (res - mu) * inv_sigma * gain + bias


# ------------------------------ kernel bodies ------------------------------

def mha_kernel_batched_heads(key_ref, value_ref, query_ref, wk_ref, wv_ref,
                             wq_ref, gain_ref, bias_ref, ret_ref, top_ref, *,
                             head_count):
    """Preferred variant: heads split by a free reshape + head-batched einsums
    (no dph-wide lane slicing, no concatenates)."""
    bt, k_len, D = key_ref.shape
    _, q_len, _ = query_ref.shape
    H = head_count
    dph = D // H
    bf16, f32 = jnp.bfloat16, jnp.float32

    k_up, v_up, q_up = _project(key_ref, value_ref, query_ref,
                                wk_ref, wv_ref, wq_ref)

    qh = q_up.reshape(bt, q_len, H, dph).astype(bf16)
    kh = k_up.reshape(bt, k_len, H, dph).astype(bf16)
    vh = v_up.reshape(bt, k_len, H, dph).astype(bf16)

    scores = jnp.einsum('bqhd,bkhd->bhqk', qh, kh, preferred_element_type=f32)
    attn = _softmax(scores)

    # top_attn = head 0 of every batch row.
    top_ref[...] = attn[:, 0]

    ctx = jnp.einsum('bhqk,bkhd->bqhd', attn.astype(bf16), vh,
                     preferred_element_type=f32)
    out = ctx.reshape(bt, q_len, D)

    ret_ref[...] = _residual_layer_norm(out, query_ref[...], gain_ref[...],
                                        bias_ref[...], D)


def mha_kernel_grouped(key_ref, value_ref, query_ref, wk_ref, wv_ref,
                       wq_ref, gain_ref, bias_ref, ret_ref, top_ref, *,
                       head_count):
    """Fallback variant (previously proven to lower): heads folded into a
    single batched axis g = h*bt + b via slice+concatenate."""
    bt, k_len, D = key_ref.shape
    _, q_len, _ = query_ref.shape
    H = head_count
    dph = D // H
    bf16, f32 = jnp.bfloat16, jnp.float32

    k_up, v_up, q_up = _project(key_ref, value_ref, query_ref,
                                wk_ref, wv_ref, wq_ref)
    k_up3 = k_up.reshape(bt, k_len, D)
    v_up3 = v_up.reshape(bt, k_len, D)
    q_up3 = q_up.reshape(bt, q_len, D)

    qh = jnp.concatenate([q_up3[:, :, h * dph:(h + 1) * dph]
                          for h in range(H)], axis=0).astype(bf16)
    kh = jnp.concatenate([k_up3[:, :, h * dph:(h + 1) * dph]
                          for h in range(H)], axis=0).astype(bf16)
    vh = jnp.concatenate([v_up3[:, :, h * dph:(h + 1) * dph]
                          for h in range(H)], axis=0).astype(bf16)

    scores = jnp.einsum('gqd,gkd->gqk', qh, kh, preferred_element_type=f32)
    attn = _softmax(scores)
    top_ref[...] = attn[:bt]                       # g ordering puts h=0 first

    ctx = jnp.einsum('gqk,gkd->gqd', attn.astype(bf16), vh,
                     preferred_element_type=f32)
    out = jnp.concatenate([ctx[h * bt:(h + 1) * bt] for h in range(H)],
                          axis=-1)

    ret_ref[...] = _residual_layer_norm(out, query_ref[...], gain_ref[...],
                                        bias_ref[...], D)


# --------------------------------- wrapper ---------------------------------

def _pick_tiles(B, QL, KL, D, H, vmem_budget):
    """Pick (batch_tile, q_tile) from a VMEM budget that accounts for the
    score/attn intermediates, preferring a grid of >= 2 steps (megacore)."""
    if QL % 256 == 0:
        tq = 256
    elif QL % 128 == 0:
        tq = 128
    else:
        tq = QL

    def footprint(bt):
        f32b, bf16b = 4, 2
        # double-buffered pipelined blocks (key, value, query in; ret, top out)
        blocks = 2 * (2 * bt * KL * D + 2 * bt * tq * D + bt * tq * KL) * f32b
        # grid-constant weights (bf16, single-buffered) + LN gain/bias (f32)
        consts = 3 * D * D * bf16b + 4 * D * f32b
        # intermediates: projections (f32 + bf16 copies), scores/attn, ctx
        inter = ((2 * bt * KL * D + bt * tq * D) * (f32b + bf16b)
                 + bt * H * tq * KL * (2 * f32b + bf16b)
                 + 2 * bt * tq * D * f32b)
        return blocks + consts + inter

    divisors = [d for d in range(1, B + 1) if B % d == 0]
    fitting = [d for d in divisors if footprint(d) <= vmem_budget] or [1]
    n_q = QL // tq
    multi_step = [d for d in fitting if (B // d) * n_q >= 2]
    bt = max(multi_step) if multi_step else max(fitting)
    return bt, tq, footprint(bt)


def multi_headed_attention(key, value, query, wk, wv, wq, gain, bias, *,
                           head_count, batch_tile=None, q_tile=None):
    B, KL, D = key.shape
    _, QL, _ = query.shape
    assert D % head_count == 0
    dph = D // head_count

    # Generation-aware VMEM budget (v7x has 64 MiB/TC vs 128 MiB v5e/v6e).
    try:
        vmem_cap = int(pltpu.get_tpu_info().vmem_capacity_bytes)
    except Exception:
        vmem_cap = 64 * 1024 * 1024
    bt, tq, fp = _pick_tiles(B, QL, KL, D, head_count, int(vmem_cap * 0.6))
    if batch_tile is not None:
        bt = batch_tile
    if q_tile is not None:
        tq = q_tile
    assert B % bt == 0 and QL % tq == 0
    n_b, n_q = B // bt, QL // tq

    # Grid-constant weights: bf16 once; fold 1/sqrt(dph) into Wq here.
    scale = 1.0 / math.sqrt(dph)
    wk_b = wk.astype(jnp.bfloat16)
    wv_b = wv.astype(jnp.bfloat16)
    wq_b = (wq * scale).astype(jnp.bfloat16)

    out_shape = [
        jax.ShapeDtypeStruct((B, QL, D), jnp.float32),
        jax.ShapeDtypeStruct((B, QL, KL), jnp.float32),
    ]

    # Advisory cost estimate (K/V projections are recomputed per q tile).
    flops = 2 * B * D * D * (QL + 2 * KL * n_q) + 4 * B * QL * KL * D
    transcendentals = B * head_count * QL * KL
    bytes_accessed = (4 * (2 * B * QL * D + B * QL * KL)
                      + 4 * 2 * B * KL * D * n_q
                      + 2 * 3 * D * D + 4 * 2 * D)
    cost = pl.CostEstimate(flops=flops, transcendentals=transcendentals,
                           bytes_accessed=bytes_accessed)

    vmem_limit = int(min(vmem_cap, max(fp * 3 // 2, 32 * 1024 * 1024)))
    cparams = pltpu.CompilerParams(
        dimension_semantics=("parallel", "parallel"),
        vmem_limit_bytes=vmem_limit)

    def build_and_run(batched_heads, single_buffer_consts):
        kern = (mha_kernel_batched_heads if batched_heads
                else mha_kernel_grouped)
        kernel = functools.partial(kern, head_count=head_count)
        const_kw = ({"pipeline_mode": pl.Buffered(1)}
                    if single_buffer_consts else {})

        def const_spec(shape):
            return pl.BlockSpec(shape, lambda b, q: (0,) * len(shape),
                                **const_kw)

        in_specs = [
            pl.BlockSpec((bt, KL, D), lambda b, q: (b, 0, 0)),   # key
            pl.BlockSpec((bt, KL, D), lambda b, q: (b, 0, 0)),   # value
            pl.BlockSpec((bt, tq, D), lambda b, q: (b, q, 0)),   # query
            const_spec((D, D)),                                  # Wk (bf16)
            const_spec((D, D)),                                  # Wv (bf16)
            const_spec((D, D)),                                  # Wq (bf16, scaled)
            const_spec((1, D)),                                  # ln gain
            const_spec((1, D)),                                  # ln bias
        ]
        out_specs = [
            pl.BlockSpec((bt, tq, D), lambda b, q: (b, q, 0)),   # ret
            pl.BlockSpec((bt, tq, KL), lambda b, q: (b, q, 0)),  # top_attn
        ]
        fn = pl.pallas_call(
            kernel,
            grid=(n_b, n_q),                # q innermost: K/V tiles reused
            in_specs=in_specs,
            out_specs=out_specs,
            out_shape=out_shape,
            compiler_params=cparams,
            cost_estimate=cost)
        ret, top = fn(key, value, query, wk_b, wv_b, wq_b, gain, bias)
        return jax.block_until_ready(ret), jax.block_until_ready(top)

    # Prefer (batched-head einsums, single-buffered constants); fall back if
    # the installed Mosaic lowering rejects either feature.
    last_err = None
    for batched_heads, single_buf in ((True, True), (True, False),
                                      (False, True), (False, False)):
        try:
            return build_and_run(batched_heads, single_buf)
        except Exception as e:   # lowering / pipeline-mode not supported
            last_err = e
    raise last_err


# -------------------------------- reference --------------------------------

def reference(key, value, query, wk, wv, wq, gain, bias, *, head_count):
    """Pure-JAX f32 reference mirroring the PyTorch forward (eval, no mask)."""
    B, KL, D = key.shape
    _, QL, _ = query.shape
    dph = D // head_count

    def shape_proj(x):
        b, l, d = x.shape
        return jnp.transpose(x.reshape(b, l, head_count, dph),
                             (0, 2, 1, 3)).reshape(b * head_count, l, dph)

    k_up = shape_proj(key @ wk)
    v_up = shape_proj(value @ wv)
    q_up = shape_proj(query @ wq)
    scaled = jnp.einsum('bqd,bkd->bqk', q_up, k_up) / math.sqrt(dph)
    attn = jax.nn.softmax(scaled, axis=-1)
    top = attn.reshape(B, head_count, QL, KL)[:, 0]
    ctx = jnp.einsum('bqk,bkd->bqd', attn, v_up)
    out = jnp.transpose(ctx.reshape(B, head_count, QL, dph),
                        (0, 2, 1, 3)).reshape(B, QL, D)
    res = out + query
    mu = jnp.mean(res, axis=-1, keepdims=True)
    var = jnp.sum((res - mu) ** 2, axis=-1, keepdims=True) / (D - 1)
    ln = (res - mu) / (jnp.sqrt(var) + LN_EPS)
    ret = ln * gain[0] + bias[0]
    return ret, top


if __name__ == "__main__":
    HEAD_COUNT = 4
    MODEL_DIM = 32
    BATCH = 2
    Q_LEN = 8
    K_LEN = 8

    rng = jax.random.PRNGKey(0)
    ks = jax.random.split(rng, 6)
    key = jax.random.normal(ks[0], (BATCH, K_LEN, MODEL_DIM), jnp.float32)
    value = jax.random.normal(ks[1], (BATCH, K_LEN, MODEL_DIM), jnp.float32)
    query = jax.random.normal(ks[2], (BATCH, Q_LEN, MODEL_DIM), jnp.float32)

    # deterministic "nn.Linear(bias=False)"-style weights, stored as x @ W
    lim = 1.0 / math.sqrt(MODEL_DIM)
    wk = jax.random.uniform(ks[3], (MODEL_DIM, MODEL_DIM), jnp.float32, -lim, lim)
    wv = jax.random.uniform(ks[4], (MODEL_DIM, MODEL_DIM), jnp.float32, -lim, lim)
    wq = jax.random.uniform(ks[5], (MODEL_DIM, MODEL_DIM), jnp.float32, -lim, lim)

    # LayerNorm params: a_2 = ones, b_2 = zeros (PyTorch init)
    gain = jnp.ones((1, MODEL_DIM), jnp.float32)
    bias = jnp.zeros((1, MODEL_DIM), jnp.float32)

    ret, top_attn = multi_headed_attention(
        key, value, query, wk, wv, wq, gain, bias, head_count=HEAD_COUNT)
    jax.block_until_ready(ret)
    jax.block_until_ready(top_attn)

    ret_ref, top_ref = reference(
        key, value, query, wk, wv, wq, gain, bias, head_count=HEAD_COUNT)

    # bf16 MXU operands + EUP approx reciprocals -> looser tolerance than the
    # pure-f32 reference.
    assert jnp.allclose(ret, ret_ref, atol=3e-2, rtol=3e-2), (
        float(jnp.max(jnp.abs(ret - ret_ref))))
    assert jnp.allclose(top_attn, top_ref, atol=2e-2, rtol=2e-2), (
        float(jnp.max(jnp.abs(top_attn - top_ref))))

    print("KERNEL_OK")
</pallas_src>

<mosaic_0001>
module attributes {stable_mosaic.version = 11 : i64} {
  func.func @mha_kernel_grouped(%arg0: i32, %arg1: i32, %arg2: memref<1x8x32xf32, #tpu.memory_space<vmem>>, %arg3: memref<1x8x32xf32, #tpu.memory_space<vmem>>, %arg4: memref<1x8x32xf32, #tpu.memory_space<vmem>>, %arg5: memref<32x32xbf16, #tpu.memory_space<vmem>>, %arg6: memref<32x32xbf16, #tpu.memory_space<vmem>>, %arg7: memref<32x32xbf16, #tpu.memory_space<vmem>>, %arg8: memref<1x32xf32, #tpu.memory_space<vmem>>, %arg9: memref<1x32xf32, #tpu.memory_space<vmem>>, %arg10: memref<1x8x32xf32, #tpu.memory_space<vmem>>, %arg11: memref<1x8x8xf32, #tpu.memory_space<vmem>>) attributes {dimension_semantics = [#tpu.dimension_semantics<parallel>, #tpu.dimension_semantics<parallel>], iteration_bounds = array<i64: 2, 1>, scalar_prefetch = 0 : i64, scratch_operands = 0 : i64, tpu.core_type = #tpu.core_type<tc>, window_params = [{transform_indices = @transform_0, window_bounds = array<i64: 1, 8, 32>}, {transform_indices = @transform_1, window_bounds = array<i64: 1, 8, 32>}, {transform_indices = @transform_2, window_bounds = array<i64: 1, 8, 32>}, {pipeline_mode = #tpu.pipeline_mode<synchronous>, transform_indices = @transform_3, window_bounds = array<i64: 32, 32>}, {pipeline_mode = #tpu.pipeline_mode<synchronous>, transform_indices = @transform_4, window_bounds = array<i64: 32, 32>}, {pipeline_mode = #tpu.pipeline_mode<synchronous>, transform_indices = @transform_5, window_bounds = array<i64: 32, 32>}, {pipeline_mode = #tpu.pipeline_mode<synchronous>, transform_indices = @transform_6, window_bounds = array<i64: 1, 32>}, {pipeline_mode = #tpu.pipeline_mode<synchronous>, transform_indices = @transform_7, window_bounds = array<i64: 1, 32>}, {transform_indices = @transform_8, window_bounds = array<i64: 1, 8, 32>}, {transform_indices = @transform_9, window_bounds = array<i64: 1, 8, 8>}]} {
    %c0 = arith.constant 0 : index
    %c0_0 = arith.constant 0 : index
    %c0_1 = arith.constant 0 : index
    %0 = vector.load %arg2[%c0, %c0_0, %c0_1] : memref<1x8x32xf32, #tpu.memory_space<vmem>>, vector<1x8x32xf32>
    %1 = vector.shape_cast %0 : vector<1x8x32xf32> to vector<8x32xf32>
    %2 = arith.truncf %1 : vector<8x32xf32> to vector<8x32xbf16>
    %c0_2 = arith.constant 0 : index
    %c0_3 = arith.constant 0 : index
    %c0_4 = arith.constant 0 : index
    %3 = vector.load %arg3[%c0_2, %c0_3, %c0_4] : memref<1x8x32xf32, #tpu.memory_space<vmem>>, vector<1x8x32xf32>
    %4 = vector.shape_cast %3 : vector<1x8x32xf32> to vector<8x32xf32>
    %5 = arith.truncf %4 : vector<8x32xf32> to vector<8x32xbf16>
    %c0_5 = arith.constant 0 : index
    %c0_6 = arith.constant 0 : index
    %c0_7 = arith.constant 0 : index
    %6 = vector.load %arg4[%c0_5, %c0_6, %c0_7] : memref<1x8x32xf32, #tpu.memory_space<vmem>>, vector<1x8x32xf32>
    %7 = vector.shape_cast %6 : vector<1x8x32xf32> to vector<8x32xf32>
    %8 = arith.truncf %7 : vector<8x32xf32> to vector<8x32xbf16>
    %c0_8 = arith.constant 0 : index
    %c0_9 = arith.constant 0 : index
    %9 = vector.load %arg5[%c0_8, %c0_9] : memref<32x32xbf16, #tpu.memory_space<vmem>>, vector<32x32xbf16>
    %cst = arith.constant dense<0.000000e+00> : vector<8x32xf32>
    %10 = tpu.matmul %2, %9, %cst {dimension_numbers = #tpu.dot_dimension_numbers<[1], [0], [0], [1], [0, 0, 1, 1], [], []>} : vector<8x32xbf16>, vector<32x32xbf16>, vector<8x32xf32> -> vector<8x32xf32>
    %c0_10 = arith.constant 0 : index
    %c0_11 = arith.constant 0 : index
    %11 = vector.load %arg6[%c0_10, %c0_11] : memref<32x32xbf16, #tpu.memory_space<vmem>>, vector<32x32xbf16>
    %cst_12 = arith.constant dense<0.000000e+00> : vector<8x32xf32>
    %12 = tpu.matmul %5, %11, %cst_12 {dimension_numbers = #tpu.dot_dimension_numbers<[1], [0], [0], [1], [0, 0, 1, 1], [], []>} : vector<8x32xbf16>, vector<32x32xbf16>, vector<8x32xf32> -> vector<8x32xf32>
    %c0_13 = arith.constant 0 : index
    %c0_14 = arith.constant 0 : index
    %13 = vector.load %arg7[%c0_13, %c0_14] : memref<32x32xbf16, #tpu.memory_space<vmem>>, vector<32x32xbf16>
    %cst_15 = arith.constant dense<0.000000e+00> : vector<8x32xf32>
    %14 = tpu.matmul %8, %13, %cst_15 {dimension_numbers = #tpu.dot_dimension_numbers<[1], [0], [0], [1], [0, 0, 1, 1], [], []>} : vector<8x32xbf16>, vector<32x32xbf16>, vector<8x32xf32> -> vector<8x32xf32>
    %15 = vector.shape_cast %10 : vector<8x32xf32> to vector<1x8x32xf32>
    %16 = vector.shape_cast %12 : vector<8x32xf32> to vector<1x8x32xf32>
    %17 = vector.shape_cast %14 : vector<8x32xf32> to vector<1x8x32xf32>
    %18 = vector.extract_strided_slice %17 {offsets = [0, 0, 0], sizes = [1, 8, 8], strides = [1, 1, 1]} : vector<1x8x32xf32> to vector<1x8x8xf32>
    %19 = vector.extract_strided_slice %17 {offsets = [0, 0, 8], sizes = [1, 8, 8], strides = [1, 1, 1]} : vector<1x8x32xf32> to vector<1x8x8xf32>
    %20 = vector.extract_strided_slice %17 {offsets = [0, 0, 16], sizes = [1, 8, 8], strides = [1, 1, 1]} : vector<1x8x32xf32> to vector<1x8x8xf32>
    %21 = vector.extract_strided_slice %17 {offsets = [0, 0, 24], sizes = [1, 8, 8], strides = [1, 1, 1]} : vector<1x8x32xf32> to vector<1x8x8xf32>
    %22 = tpu.concatenate %18, %19, %20, %21 in 0 : vector<1x8x8xf32>, vector<1x8x8xf32>, vector<1x8x8xf32>, vector<1x8x8xf32> -> vector<4x8x8xf32>
    %23 = arith.truncf %22 : vector<4x8x8xf32> to vector<4x8x8xbf16>
    %24 = vector.extract_strided_slice %15 {offsets = [0, 0, 0], sizes = [1, 8, 8], strides = [1, 1, 1]} : vector<1x8x32xf32> to vector<1x8x8xf32>
    %25 = vector.extract_strided_slice %15 {offsets = [0, 0, 8], sizes = [1, 8, 8], strides = [1, 1, 1]} : vector<1x8x32xf32> to vector<1x8x8xf32>
    %26 = vector.extract_strided_slice %15 {offsets = [0, 0, 16], sizes = [1, 8, 8], strides = [1, 1, 1]} : vector<1x8x32xf32> to vector<1x8x8xf32>
    %27 = vector.extract_strided_slice %15 {offsets = [0, 0, 24], sizes = [1, 8, 8], strides = [1, 1, 1]} : vector<1x8x32xf32> to vector<1x8x8xf32>
    %28 = tpu.concatenate %24, %25, %26, %27 in 0 : vector<1x8x8xf32>, vector<1x8x8xf32>, vector<1x8x8xf32>, vector<1x8x8xf32> -> vector<4x8x8xf32>
    %29 = arith.truncf %28 : vector<4x8x8xf32> to vector<4x8x8xbf16>
    %30 = vector.extract_strided_slice %16 {offsets = [0, 0, 0], sizes = [1, 8, 8], strides = [1, 1, 1]} : vector<1x8x32xf32> to vector<1x8x8xf32>
    %31 = vector.extract_strided_slice %16 {offsets = [0, 0, 8], sizes = [1, 8, 8], strides = [1, 1, 1]} : vector<1x8x32xf32> to vector<1x8x8xf32>
    %32 = vector.extract_strided_slice %16 {offsets = [0, 0, 16], sizes = [1, 8, 8], strides = [1, 1, 1]} : vector<1x8x32xf32> to vector<1x8x8xf32>
    %33 = vector.extract_strided_slice %16 {offsets = [0, 0, 24], sizes = [1, 8, 8], strides = [1, 1, 1]} : vector<1x8x32xf32> to vector<1x8x8xf32>
    %34 = tpu.concatenate %30, %31, %32, %33 in 0 : vector<1x8x8xf32>, vector<1x8x8xf32>, vector<1x8x8xf32>, vector<1x8x8xf32> -> vector<4x8x8xf32>
    %35 = arith.truncf %34 : vector<4x8x8xf32> to vector<4x8x8xbf16>
    "tpu.trace_start"() <{level = 10 : i32, message = "gqd,gkd->gqk"}> : () -> ()
    %cst_16 = arith.constant dense<0.000000e+00> : vector<4x8x8xf32>
    %36 = tpu.matmul %23, %29, %cst_16 {dimension_numbers = #tpu.dot_dimension_numbers<[2], [2], [1], [1], [0, 0, 0, 1, 1, 1], [0], [0]>} : vector<4x8x8xbf16>, vector<4x8x8xbf16>, vector<4x8x8xf32> -> vector<4x8x8xf32>
    "tpu.trace_stop"() : () -> ()
    %cst_17 = arith.constant dense<0xFF800000> : vector<4x8xf32>
    %37 = vector.multi_reduction <maximumf>, %36, %cst_17 [2] : vector<4x8x8xf32> to vector<4x8xf32>
    %38 = vector.shape_cast %37 : vector<4x8xf32> to vector<4x8x1xf32>
    %39 = vector.broadcast %38 : vector<4x8x1xf32> to vector<4x8x8xf32>
    %40 = arith.subf %36, %39 : vector<4x8x8xf32>
    %41 = math.exp %40 : vector<4x8x8xf32>
    %cst_18 = arith.constant dense<0.000000e+00> : vector<4x8xf32>
    %42 = vector.multi_reduction <add>, %41, %cst_18 [2] : vector<4x8x8xf32> to vector<4x8xf32>
    %43 = vector.shape_cast %42 : vector<4x8xf32> to vector<4x8x1xf32>
    %44 = tpu.reciprocal %43 {approx = true} : vector<4x8x1xf32> -> vector<4x8x1xf32>
    %45 = vector.broadcast %44 : vector<4x8x1xf32> to vector<4x8x8xf32>
    %46 = arith.mulf %41, %45 : vector<4x8x8xf32>
    %47 = vector.extract_strided_slice %46 {offsets = [0, 0, 0], sizes = [1, 8, 8], strides = [1, 1, 1]} : vector<4x8x8xf32> to vector<1x8x8xf32>
    %c0_19 = arith.constant 0 : index
    %c0_20 = arith.constant 0 : index
    %c0_21 = arith.constant 0 : index
    %48 = vector.load %arg11[%c0_19, %c0_20, %c0_21] : memref<1x8x8xf32, #tpu.memory_space<vmem>>, vector<1x8x8xf32>
    tpu.vector_store %arg11[%c0_19, %c0_20, %c0_21], %47 {strides = array<i32>} : memref<1x8x8xf32, #tpu.memory_space<vmem>>, vector<1x8x8xf32>,
    %49 = arith.truncf %46 : vector<4x8x8xf32> to vector<4x8x8xbf16>
    "tpu.trace_start"() <{level = 10 : i32, message = "gqk,gkd->gqd"}> : () -> ()
    %cst_22 = arith.constant dense<0.000000e+00> : vector<4x8x8xf32>
    %50 = tpu.matmul %49, %35, %cst_22 {dimension_numbers = #tpu.dot_dimension_numbers<[2], [1], [1], [2], [0, 0, 0, 1, 1, 2], [0], [0]>} : vector<4x8x8xbf16>, vector<4x8x8xbf16>, vector<4x8x8xf32> -> vector<4x8x8xf32>
    "tpu.trace_stop"() : () -> ()
    %51 = vector.extract_strided_slice %50 {offsets = [0, 0, 0], sizes = [1, 8, 8], strides = [1, 1, 1]} : vector<4x8x8xf32> to vector<1x8x8xf32>
    %52 = vector.extract_strided_slice %50 {offsets = [1, 0, 0], sizes = [1, 8, 8], strides = [1, 1, 1]} : vector<4x8x8xf32> to vector<1x8x8xf32>
    %53 = vector.extract_strided_slice %50 {offsets = [2, 0, 0], sizes = [1, 8, 8], strides = [1, 1, 1]} : vector<4x8x8xf32> to vector<1x8x8xf32>
    %54 = vector.extract_strided_slice %50 {offsets = [3, 0, 0], sizes = [1, 8, 8], strides = [1, 1, 1]} : vector<4x8x8xf32> to vector<1x8x8xf32>
    %55 = tpu.concatenate %51, %52, %53, %54 in 2 : vector<1x8x8xf32>, vector<1x8x8xf32>, vector<1x8x8xf32>, vector<1x8x8xf32> -> vector<1x8x32xf32>
    %c0_23 = arith.constant 0 : index
    %c0_24 = arith.constant 0 : index
    %c0_25 = arith.constant 0 : index
    %56 = vector.load %arg4[%c0_23, %c0_24, %c0_25] : memref<1x8x32xf32, #tpu.memory_space<vmem>>, vector<1x8x32xf32>
    %c0_26 = arith.constant 0 : index
    %c0_27 = arith.constant 0 : index
    %57 = vector.load %arg8[%c0_26, %c0_27] : memref<1x32xf32, #tpu.memory_space<vmem>>, vector<1x32xf32>
    %c0_28 = arith.constant 0 : index
    %c0_29 = arith.constant 0 : index
    %58 = vector.load %arg9[%c0_28, %c0_29] : memref<1x32xf32, #tpu.memory_space<vmem>>, vector<1x32xf32>
    %59 = arith.addf %55, %56 : vector<1x8x32xf32>
    %cst_30 = arith.constant dense<0.000000e+00> : vector<1x8xf32>
    %60 = vector.multi_reduction <add>, %59, %cst_30 [2] : vector<1x8x32xf32> to vector<1x8xf32>
    %61 = vector.shape_cast %60 : vector<1x8xf32> to vector<1x8x1xf32>
    %cst_31 = arith.constant 3.200000e+01 : f32
    %62 = vector.broadcast %cst_31 : f32 to vector<1x8x1xf32>
    %63 = arith.divf %61, %62 : vector<1x8x1xf32>
    %64 = vector.broadcast %63 : vector<1x8x1xf32> to vector<1x8x32xf32>
    %65 = arith.subf %59, %64 : vector<1x8x32xf32>
    %66 = arith.mulf %65, %65 : vector<1x8x32xf32>
    %cst_32 = arith.constant dense<0.000000e+00> : vector<1x8xf32>
    %67 = vector.multi_reduction <add>, %66, %cst_32 [2] : vector<1x8x32xf32> to vector<1x8xf32>
    %68 = vector.shape_cast %67 : vector<1x8xf32> to vector<1x8x1xf32>
    %cst_33 = arith.constant 3.100000e+01 : f32
    %69 = vector.broadcast %cst_33 : f32 to vector<1x8x1xf32>
    %70 = arith.divf %68, %69 : vector<1x8x1xf32>
    %71 = math.sqrt %70 : vector<1x8x1xf32>
    %cst_34 = arith.constant 1.000000e-03 : f32
    %72 = vector.broadcast %cst_34 : f32 to vector<1x8x1xf32>
    %73 = arith.addf %71, %72 : vector<1x8x1xf32>
    %74 = tpu.reciprocal %73 {approx = true} : vector<1x8x1xf32> -> vector<1x8x1xf32>
    %75 = vector.broadcast %63 : vector<1x8x1xf32> to vector<1x8x32xf32>
    %76 = arith.subf %59, %75 : vector<1x8x32xf32>
    %77 = vector.broadcast %74 : vector<1x8x1xf32> to vector<1x8x32xf32>
    %78 = arith.mulf %76, %77 : vector<1x8x32xf32>
    %79 = vector.shape_cast %57 : vector<1x32xf32> to vector<1x1x32xf32>
    %80 = vector.broadcast %79 : vector<1x1x32xf32> to vector<1x8x32xf32>
    %81 = arith.mulf %78, %80 : vector<1x8x32xf32>
    %82 = vector.shape_cast %58 : vector<1x32xf32> to vector<1x1x32xf32>
    %83 = vector.broadcast %82 : vector<1x1x32xf32> to vector<1x8x32xf32>
    %84 = arith.addf %81, %83 : vector<1x8x32xf32>
    %c0_35 = arith.constant 0 : index
    %c0_36 = arith.constant 0 : index
    %c0_37 = arith.constant 0 : index
    %85 = vector.load %arg10[%c0_35, %c0_36, %c0_37] : memref<1x8x32xf32, #tpu.memory_space<vmem>>, vector<1x8x32xf32>
    tpu.vector_store %arg10[%c0_35, %c0_36, %c0_37], %84 {strides = array<i32>} : memref<1x8x32xf32, #tpu.memory_space<vmem>>, vector<1x8x32xf32>,
    return
  }
  func.func @transform_0(%arg0: i32, %arg1: i32) -> (i32, i32, i32) {
    %c0_i32 = arith.constant 0 : i32
    %c0_i32_0 = arith.constant 0 : i32
    %c0_i32_1 = arith.constant 0 : i32
    return %arg0, %c0_i32, %c0_i32_0 : i32, i32, i32
  }
  func.func @transform_1(%arg0: i32, %arg1: i32) -> (i32, i32, i32) {
    %c0_i32 = arith.constant 0 : i32
    %c0_i32_0 = arith.constant 0 : i32
    %c0_i32_1 = arith.constant 0 : i32
    return %arg0, %c0_i32, %c0_i32_0 : i32, i32, i32
  }
  func.func @transform_2(%arg0: i32, %arg1: i32) -> (i32, i32, i32) {
    %c0_i32 = arith.constant 0 : i32
    %c0_i32_0 = arith.constant 0 : i32
    return %arg0, %arg1, %c0_i32 : i32, i32, i32
  }
  func.func @transform_3(%arg0: i32, %arg1: i32) -> (i32, i32) {
    %c0_i32 = arith.constant 0 : i32
    %c0_i32_0 = arith.constant 0 : i32
    %c0_i32_1 = arith.constant 0 : i32
    return %c0_i32, %c0_i32_0 : i32, i32
  }
  func.func @transform_4(%arg0: i32, %arg1: i32) -> (i32, i32) {
    %c0_i32 = arith.constant 0 : i32
    %c0_i32_0 = arith.constant 0 : i32
    %c0_i32_1 = arith.constant 0 : i32
    return %c0_i32, %c0_i32_0 : i32, i32
  }
  func.func @transform_5(%arg0: i32, %arg1: i32) -> (i32, i32) {
    %c0_i32 = arith.constant 0 : i32
    %c0_i32_0 = arith.constant 0 : i32
    %c0_i32_1 = arith.constant 0 : i32
    return %c0_i32, %c0_i32_0 : i32, i32
  }
  func.func @transform_6(%arg0: i32, %arg1: i32) -> (i32, i32) {
    %c0_i32 = arith.constant 0 : i32
    %c0_i32_0 = arith.constant 0 : i32
    %c0_i32_1 = arith.constant 0 : i32
    return %c0_i32, %c0_i32_0 : i32, i32
  }
  func.func @transform_7(%arg0: i32, %arg1: i32) -> (i32, i32) {
    %c0_i32 = arith.constant 0 : i32
    %c0_i32_0 = arith.constant 0 : i32
    %c0_i32_1 = arith.constant 0 : i32
    return %c0_i32, %c0_i32_0 : i32, i32
  }
  func.func @transform_8(%arg0: i32, %arg1: i32) -> (i32, i32, i32) {
    %c0_i32 = arith.constant 0 : i32
    %c0_i32_0 = arith.constant 0 : i32
    return %arg0, %arg1, %c0_i32 : i32, i32, i32
  }
  func.func @transform_9(%arg0: i32, %arg1: i32) -> (i32, i32, i32) {
    %c0_i32 = arith.constant 0 : i32
    %c0_i32_0 = arith.constant 0 : i32
    return %arg0, %arg1, %c0_i32 : i32, i32, i32
  }
}

module attributes {stable_mosaic.version = 11 : i64} {
  func.func @mha_kernel_grouped(%arg0: i32, %arg1: i32, %arg2: memref<1x8x32xf32, #tpu.memory_space<vmem>>, %arg3: memref<1x8x32xf32, #tpu.memory_space<vmem>>, %arg4: memref<1x8x32xf32, #tpu.memory_space<vmem>>, %arg5: memref<32x32xbf16, #tpu.memory_space<vmem>>, %arg6: memref<32x32xbf16, #tpu.memory_space<vmem>>, %arg7: memref<32x32xbf16, #tpu.memory_space<vmem>>, %arg8: memref<1x32xf32, #tpu.memory_space<vmem>>, %arg9: memref<1x32xf32, #tpu.memory_space<vmem>>, %arg10: memref<1x8x32xf32, #tpu.memory_space<vmem>>, %arg11: memref<1x8x8xf32, #tpu.memory_space<vmem>>) attributes {dimension_semantics = [#tpu.dimension_semantics<parallel>, #tpu.dimension_semantics<parallel>], iteration_bounds = array<i64: 2, 1>, scalar_prefetch = 0 : i64, scratch_operands = 0 : i64, tpu.core_type = #tpu.core_type<tc>, window_params = [{transform_indices = @transform_0, window_bounds = array<i64: 1, 8, 32>}, {transform_indices = @transform_1, window_bounds = array<i64: 1, 8, 32>}, {transform_indices = @transform_2, window_bounds = array<i64: 1, 8, 32>}, {pipeline_mode = #tpu.pipeline_mode<synchronous>, transform_indices = @transform_3, window_bounds = array<i64: 32, 32>}, {pipeline_mode = #tpu.pipeline_mode<synchronous>, transform_indices = @transform_4, window_bounds = array<i64: 32, 32>}, {pipeline_mode = #tpu.pipeline_mode<synchronous>, transform_indices = @transform_5, window_bounds = array<i64: 32, 32>}, {pipeline_mode = #tpu.pipeline_mode<synchronous>, transform_indices = @transform_6, window_bounds = array<i64: 1, 32>}, {pipeline_mode = #tpu.pipeline_mode<synchronous>, transform_indices = @transform_7, window_bounds = array<i64: 1, 32>}, {transform_indices = @transform_8, window_bounds = array<i64: 1, 8, 32>}, {transform_indices = @transform_9, window_bounds = array<i64: 1, 8, 8>}]} {
    %c0 = arith.constant 0 : index
    %c0_0 = arith.constant 0 : index
    %c0_1 = arith.constant 0 : index
    %0 = vector.load %arg2[%c0, %c0_0, %c0_1] : memref<1x8x32xf32, #tpu.memory_space<vmem>>, vector<1x8x32xf32>
    %1 = vector.shape_cast %0 : vector<1x8x32xf32> to vector<8x32xf32>
    %2 = arith.truncf %1 : vector<8x32xf32> to vector<8x32xbf16>
    %c0_2 = arith.constant 0 : index
    %c0_3 = arith.constant 0 : index
    %c0_4 = arith.constant 0 : index
    %3 = vector.load %arg3[%c0_2, %c0_3, %c0_4] : memref<1x8x32xf32, #tpu.memory_space<vmem>>, vector<1x8x32xf32>
    %4 = vector.shape_cast %3 : vector<1x8x32xf32> to vector<8x32xf32>
    %5 = arith.truncf %4 : vector<8x32xf32> to vector<8x32xbf16>
    %c0_5 = arith.constant 0 : index
    %c0_6 = arith.constant 0 : index
    %c0_7 = arith.constant 0 : index
    %6 = vector.load %arg4[%c0_5, %c0_6, %c0_7] : memref<1x8x32xf32, #tpu.memory_space<vmem>>, vector<1x8x32xf32>
    %7 = vector.shape_cast %6 : vector<1x8x32xf32> to vector<8x32xf32>
    %8 = arith.truncf %7 : vector<8x32xf32> to vector<8x32xbf16>
    %c0_8 = arith.constant 0 : index
    %c0_9 = arith.constant 0 : index
    %9 = vector.load %arg5[%c0_8, %c0_9] : memref<32x32xbf16, #tpu.memory_space<vmem>>, vector<32x32xbf16>
    %cst = arith.constant dense<0.000000e+00> : vector<8x32xf32>
    %10 = tpu.matmul %2, %9, %cst {dimension_numbers = #tpu.dot_dimension_numbers<[1], [0], [0], [1], [0, 0, 1, 1], [], []>} : vector<8x32xbf16>, vector<32x32xbf16>, vector<8x32xf32> -> vector<8x32xf32>
    %c0_10 = arith.constant 0 : index
    %c0_11 = arith.constant 0 : index
    %11 = vector.load %arg6[%c0_10, %c0_11] : memref<32x32xbf16, #tpu.memory_space<vmem>>, vector<32x32xbf16>
    %cst_12 = arith.constant dense<0.000000e+00> : vector<8x32xf32>
    %12 = tpu.matmul %5, %11, %cst_12 {dimension_numbers = #tpu.dot_dimension_numbers<[1], [0], [0], [1], [0, 0, 1, 1], [], []>} : vector<8x32xbf16>, vector<32x32xbf16>, vector<8x32xf32> -> vector<8x32xf32>
    %c0_13 = arith.constant 0 : index
    %c0_14 = arith.constant 0 : index
    %13 = vector.load %arg7[%c0_13, %c0_14] : memref<32x32xbf16, #tpu.memory_space<vmem>>, vector<32x32xbf16>
    %cst_15 = arith.constant dense<0.000000e+00> : vector<8x32xf32>
    %14 = tpu.matmul %8, %13, %cst_15 {dimension_numbers = #tpu.dot_dimension_numbers<[1], [0], [0], [1], [0, 0, 1, 1], [], []>} : vector<8x32xbf16>, vector<32x32xbf16>, vector<8x32xf32> -> vector<8x32xf32>
    %15 = vector.shape_cast %10 : vector<8x32xf32> to vector<1x8x32xf32>
    %16 = vector.shape_cast %12 : vector<8x32xf32> to vector<1x8x32xf32>
    %17 = vector.shape_cast %14 : vector<8x32xf32> to vector<1x8x32xf32>
    %18 = vector.extract_strided_slice %17 {offsets = [0, 0, 0], sizes = [1, 8, 8], strides = [1, 1, 1]} : vector<1x8x32xf32> to vector<1x8x8xf32>
    %19 = vector.extract_strided_slice %17 {offsets = [0, 0, 8], sizes = [1, 8, 8], strides = [1, 1, 1]} : vector<1x8x32xf32> to vector<1x8x8xf32>
    %20 = vector.extract_strided_slice %17 {offsets = [0, 0, 16], sizes = [1, 8, 8], strides = [1, 1, 1]} : vector<1x8x32xf32> to vector<1x8x8xf32>
    %21 = vector.extract_strided_slice %17 {offsets = [0, 0, 24], sizes = [1, 8, 8], strides = [1, 1, 1]} : vector<1x8x32xf32> to vector<1x8x8xf32>
    %22 = tpu.concatenate %18, %19, %20, %21 in 0 : vector<1x8x8xf32>, vector<1x8x8xf32>, vector<1x8x8xf32>, vector<1x8x8xf32> -> vector<4x8x8xf32>
    %23 = arith.truncf %22 : vector<4x8x8xf32> to vector<4x8x8xbf16>
    %24 = vector.extract_strided_slice %15 {offsets = [0, 0, 0], sizes = [1, 8, 8], strides = [1, 1, 1]} : vector<1x8x32xf32> to vector<1x8x8xf32>
    %25 = vector.extract_strided_slice %15 {offsets = [0, 0, 8], sizes = [1, 8, 8], strides = [1, 1, 1]} : vector<1x8x32xf32> to vector<1x8x8xf32>
    %26 = vector.extract_strided_slice %15 {offsets = [0, 0, 16], sizes = [1, 8, 8], strides = [1, 1, 1]} : vector<1x8x32xf32> to vector<1x8x8xf32>
    %27 = vector.extract_strided_slice %15 {offsets = [0, 0, 24], sizes = [1, 8, 8], strides = [1, 1, 1]} : vector<1x8x32xf32> to vector<1x8x8xf32>
    %28 = tpu.concatenate %24, %25, %26, %27 in 0 : vector<1x8x8xf32>, vector<1x8x8xf32>, vector<1x8x8xf32>, vector<1x8x8xf32> -> vector<4x8x8xf32>
    %29 = arith.truncf %28 : vector<4x8x8xf32> to vector<4x8x8xbf16>
    %30 = vector.extract_strided_slice %16 {offsets = [0, 0, 0], sizes = [1, 8, 8], strides = [1, 1, 1]} : vector<1x8x32xf32> to vector<1x8x8xf32>
    %31 = vector.extract_strided_slice %16 {offsets = [0, 0, 8], sizes = [1, 8, 8], strides = [1, 1, 1]} : vector<1x8x32xf32> to vector<1x8x8xf32>
    %32 = vector.extract_strided_slice %16 {offsets = [0, 0, 16], sizes = [1, 8, 8], strides = [1, 1, 1]} : vector<1x8x32xf32> to vector<1x8x8xf32>
    %33 = vector.extract_strided_slice %16 {offsets = [0, 0, 24], sizes = [1, 8, 8], strides = [1, 1, 1]} : vector<1x8x32xf32> to vector<1x8x8xf32>
    %34 = tpu.concatenate %30, %31, %32, %33 in 0 : vector<1x8x8xf32>, vector<1x8x8xf32>, vector<1x8x8xf32>, vector<1x8x8xf32> -> vector<4x8x8xf32>
    %35 = arith.truncf %34 : vector<4x8x8xf32> to vector<4x8x8xbf16>
    "tpu.trace_start"() <{level = 10 : i32, message = "gqd,gkd->gqk"}> : () -> ()
    %cst_16 = arith.constant dense<0.000000e+00> : vector<4x8x8xf32>
    %36 = tpu.matmul %23, %29, %cst_16 {dimension_numbers = #tpu.dot_dimension_numbers<[2], [2], [1], [1], [0, 0, 0, 1, 1, 1], [0], [0]>} : vector<4x8x8xbf16>, vector<4x8x8xbf16>, vector<4x8x8xf32> -> vector<4x8x8xf32>
    "tpu.trace_stop"() : () -> ()
    %cst_17 = arith.constant dense<0xFF800000> : vector<4x8xf32>
    %37 = vector.multi_reduction <maximumf>, %36, %cst_17 [2] : vector<4x8x8xf32> to vector<4x8xf32>
    %38 = vector.shape_cast %37 : vector<4x8xf32> to vector<4x8x1xf32>
    %39 = vector.broadcast %38 : vector<4x8x1xf32> to vector<4x8x8xf32>
    %40 = arith.subf %36, %39 : vector<4x8x8xf32>
    %41 = math.exp %40 : vector<4x8x8xf32>
    %cst_18 = arith.constant dense<0.000000e+00> : vector<4x8xf32>
    %42 = vector.multi_reduction <add>, %41, %cst_18 [2] : vector<4x8x8xf32> to vector<4x8xf32>
    %43 = vector.shape_cast %42 : vector<4x8xf32> to vector<4x8x1xf32>
    %44 = tpu.reciprocal %43 {approx = true} : vector<4x8x1xf32> -> vector<4x8x1xf32>
    %45 = vector.broadcast %44 : vector<4x8x1xf32> to vector<4x8x8xf32>
    %46 = arith.mulf %41, %45 : vector<4x8x8xf32>
    %47 = vector.extract_strided_slice %46 {offsets = [0, 0, 0], sizes = [1, 8, 8], strides = [1, 1, 1]} : vector<4x8x8xf32> to vector<1x8x8xf32>
    %c0_19 = arith.constant 0 : index
    %c0_20 = arith.constant 0 : index
    %c0_21 = arith.constant 0 : index
    %48 = vector.load %arg11[%c0_19, %c0_20, %c0_21] : memref<1x8x8xf32, #tpu.memory_space<vmem>>, vector<1x8x8xf32>
    tpu.vector_store %arg11[%c0_19, %c0_20, %c0_21], %47 {strides = array<i32>} : memref<1x8x8xf32, #tpu.memory_space<vmem>>, vector<1x8x8xf32>,
    %49 = arith.truncf %46 : vector<4x8x8xf32> to vector<4x8x8xbf16>
    "tpu.trace_start"() <{level = 10 : i32, message = "gqk,gkd->gqd"}> : () -> ()
    %cst_22 = arith.constant dense<0.000000e+00> : vector<4x8x8xf32>
    %50 = tpu.matmul %49, %35, %cst_22 {dimension_numbers = #tpu.dot_dimension_numbers<[2], [1], [1], [2], [0, 0, 0, 1, 1, 2], [0], [0]>} : vector<4x8x8xbf16>, vector<4x8x8xbf16>, vector<4x8x8xf32> -> vector<4x8x8xf32>
    "tpu.trace_stop"() : () -> ()
    %51 = vector.extract_strided_slice %50 {offsets = [0, 0, 0], sizes = [1, 8, 8], strides = [1, 1, 1]} : vector<4x8x8xf32> to vector<1x8x8xf32>
    %52 = vector.extract_strided_slice %50 {offsets = [1, 0, 0], sizes = [1, 8, 8], strides = [1, 1, 1]} : vector<4x8x8xf32> to vector<1x8x8xf32>
    %53 = vector.extract_strided_slice %50 {offsets = [2, 0, 0], sizes = [1, 8, 8], strides = [1, 1, 1]} : vector<4x8x8xf32> to vector<1x8x8xf32>
    %54 = vector.extract_strided_slice %50 {offsets = [3, 0, 0], sizes = [1, 8, 8], strides = [1, 1, 1]} : vector<4x8x8xf32> to vector<1x8x8xf32>
    %55 = tpu.concatenate %51, %52, %53, %54 in 2 : vector<1x8x8xf32>, vector<1x8x8xf32>, vector<1x8x8xf32>, vector<1x8x8xf32> -> vector<1x8x32xf32>
    %c0_23 = arith.constant 0 : index
    %c0_24 = arith.constant 0 : index
    %c0_25 = arith.constant 0 : index
    %56 = vector.load %arg4[%c0_23, %c0_24, %c0_25] : memref<1x8x32xf32, #tpu.memory_space<vmem>>, vector<1x8x32xf32>
    %c0_26 = arith.constant 0 : index
    %c0_27 = arith.constant 0 : index
    %57 = vector.load %arg8[%c0_26, %c0_27] : memref<1x32xf32, #tpu.memory_space<vmem>>, vector<1x32xf32>
    %c0_28 = arith.constant 0 : index
    %c0_29 = arith.constant 0 : index
    %58 = vector.load %arg9[%c0_28, %c0_29] : memref<1x32xf32, #tpu.memory_space<vmem>>, vector<1x32xf32>
    %59 = arith.addf %55, %56 : vector<1x8x32xf32>
    %cst_30 = arith.constant dense<0.000000e+00> : vector<1x8xf32>
    %60 = vector.multi_reduction <add>, %59, %cst_30 [2] : vector<1x8x32xf32> to vector<1x8xf32>
    %61 = vector.shape_cast %60 : vector<1x8xf32> to vector<1x8x1xf32>
    %cst_31 = arith.constant 3.200000e+01 : f32
    %62 = vector.broadcast %cst_31 : f32 to vector<1x8x1xf32>
    %63 = arith.divf %61, %62 : vector<1x8x1xf32>
    %64 = vector.broadcast %63 : vector<1x8x1xf32> to vector<1x8x32xf32>
    %65 = arith.subf %59, %64 : vector<1x8x32xf32>
    %66 = arith.mulf %65, %65 : vector<1x8x32xf32>
    %cst_32 = arith.constant dense<0.000000e+00> : vector<1x8xf32>
    %67 = vector.multi_reduction <add>, %66, %cst_32 [2] : vector<1x8x32xf32> to vector<1x8xf32>
    %68 = vector.shape_cast %67 : vector<1x8xf32> to vector<1x8x1xf32>
    %cst_33 = arith.constant 3.100000e+01 : f32
    %69 = vector.broadcast %cst_33 : f32 to vector<1x8x1xf32>
    %70 = arith.divf %68, %69 : vector<1x8x1xf32>
    %71 = math.sqrt %70 : vector<1x8x1xf32>
    %cst_34 = arith.constant 1.000000e-03 : f32
    %72 = vector.broadcast %cst_34 : f32 to vector<1x8x1xf32>
    %73 = arith.addf %71, %72 : vector<1x8x1xf32>
    %74 = tpu.reciprocal %73 {approx = true} : vector<1x8x1xf32> -> vector<1x8x1xf32>
    %75 = vector.broadcast %63 : vector<1x8x1xf32> to vector<1x8x32xf32>
    %76 = arith.subf %59, %75 : vector<1x8x32xf32>
    %77 = vector.broadcast %74 : vector<1x8x1xf32> to vector<1x8x32xf32>
    %78 = arith.mulf %76, %77 : vector<1x8x32xf32>
    %79 = vector.shape_cast %57 : vector<1x32xf32> to vector<1x1x32xf32>
    %80 = vector.broadcast %79 : vector<1x1x32xf32> to vector<1x8x32xf32>
    %81 = arith.mulf %78, %80 : vector<1x8x32xf32>
    %82 = vector.shape_cast %58 : vector<1x32xf32> to vector<1x1x32xf32>
    %83 = vector.broadcast %82 : vector<1x1x32xf32> to vector<1x8x32xf32>
    %84 = arith.addf %81, %83 : vector<1x8x32xf32>
    %c0_35 = arith.constant 0 : index
    %c0_36 = arith.constant 0 : index
    %c0_37 = arith.constant 0 : index
    %85 = vector.load %arg10[%c0_35, %c0_36, %c0_37] : memref<1x8x32xf32, #tpu.memory_space<vmem>>, vector<1x8x32xf32>
    tpu.vector_store %arg10[%c0_35, %c0_36, %c0_37], %84 {strides = array<i32>} : memref<1x8x32xf32, #tpu.memory_space<vmem>>, vector<1x8x32xf32>,
    return
  }
  func.func @transform_0(%arg0: i32, %arg1: i32) -> (i32, i32, i32) {
    %c0_i32 = arith.constant 0 : i32
    %c0_i32_0 = arith.constant 0 : i32
    %c0_i32_1 = arith.constant 0 : i32
    return %arg0, %c0_i32, %c0_i32_0 : i32, i32, i32
  }
  func.func @transform_1(%arg0: i32, %arg1: i32) -> (i32, i32, i32) {
    %c0_i32 = arith.constant 0 : i32
    %c0_i32_0 = arith.constant 0 : i32
    %c0_i32_1 = arith.constant 0 : i32
    return %arg0, %c0_i32, %c0_i32_0 : i32, i32, i32
  }
  func.func @transform_2(%arg0: i32, %arg1: i32) -> (i32, i32, i32) {
    %c0_i32 = arith.constant 0 : i32
    %c0_i32_0 = arith.constant 0 : i32
    return %arg0, %arg1, %c0_i32 : i32, i32, i32
  }
  func.func @transform_3(%arg0: i32, %arg1: i32) -> (i32, i32) {
    %c0_i32 = arith.constant 0 : i32
    %c0_i32_0 = arith.constant 0 : i32
    %c0_i32_1 = arith.constant 0 : i32
    return %c0_i32, %c0_i32_0 : i32, i32
  }
  func.func @transform_4(%arg0: i32, %arg1: i32) -> (i32, i32) {
    %c0_i32 = arith.constant 0 : i32
    %c0_i32_0 = arith.constant 0 : i32
    %c0_i32_1 = arith.constant 0 : i32
    return %c0_i32, %c0_i32_0 : i32, i32
  }
  func.func @transform_5(%arg0: i32, %arg1: i32) -> (i32, i32) {
    %c0_i32 = arith.constant 0 : i32
    %c0_i32_0 = arith.constant 0 : i32
    %c0_i32_1 = arith.constant 0 : i32
    return %c0_i32, %c0_i32_0 : i32, i32
  }
  func.func @transform_6(%arg0: i32, %arg1: i32) -> (i32, i32) {
    %c0_i32 = arith.constant 0 : i32
    %c0_i32_0 = arith.constant 0 : i32
    %c0_i32_1 = arith.constant 0 : i32
    return %c0_i32, %c0_i32_0 : i32, i32
  }
  func.func @transform_7(%arg0: i32, %arg1: i32) -> (i32, i32) {
    %c0_i32 = arith.constant 0 : i32
    %c0_i32_0 = arith.constant 0 : i32
    %c0_i32_1 = arith.constant 0 : i32
    return %c0_i32, %c0_i32_0 : i32, i32
  }
  func.func @transform_8(%arg0: i32, %arg1: i32) -> (i32, i32, i32) {
    %c0_i32 = arith.constant 0 : i32
    %c0_i32_0 = arith.constant 0 : i32
    return %arg0, %arg1, %c0_i32 : i32, i32, i32
  }
  func.func @transform_9(%arg0: i32, %arg1: i32) -> (i32, i32, i32) {
    %c0_i32 = arith.constant 0 : i32
    %c0_i32_0 = arith.constant 0 : i32
    return %arg0, %arg1, %c0_i32 : i32, i32, i32
  }
}

</mosaic_0001>

<llo_original>
// kernel: tpu_custom_call.1
$region0: #{tpu_custom_call.1}
  #allocation0 [shape = 'u32[]', space=smem, size = 0x4, offset = 0x4, fixed_abs, tag = 'smem constant byte address 0x4 - core index']
  #allocation1 [shape = 'u32[144,128]{1,0:T(1,128)}', space=vmem, size = 0x12000, scoped, tag = 'internal scratch']
  %s0 = inlined_call_operand.hbm [shape: f32[2,8,32], index: 0, kind: input, shape index: {}]
  %s1 = inlined_call_operand.hbm [shape: f32[2,8,32], index: 1, kind: input, shape index: {}]
  %s2 = inlined_call_operand.hbm [shape: f32[2,8,32], index: 2, kind: input, shape index: {}]
  %s3 = inlined_call_operand.hbm [shape: bf16[32,32], index: 3, kind: input, shape index: {}]
  %s4 = inlined_call_operand.hbm [shape: bf16[32,32], index: 4, kind: input, shape index: {}]
  %s5 = inlined_call_operand.vmem [shape: bf16[32,32], index: 5, kind: input, shape index: {}]
  %s6 = inlined_call_operand.vmem [shape: f32[1,32], index: 6, kind: input, shape index: {}]
  %s7 = inlined_call_operand.vmem [shape: f32[1,32], index: 7, kind: input, shape index: {}]
  %s8 = inlined_call_operand.hbm [shape: f32[2,8,32], index: 8, kind: output, shape index: {0}]
  %s9 = inlined_call_operand.hbm [shape: f32[2,8,8], index: 9, kind: output, shape index: {1}]
  %10 = xla_tuple %s8, %s9
  %s11 = sld [smem:[#allocation0]]
  $region93: #{tpu_custom_call.1} parent=0
    _
  %s13 = ssub.s32 1, %s11
  %s14 = scalar_select 0, %s13, %s11
  $region1: #{tpu_custom_call.1} parent=0
    #allocation2 [shape = 'u8[8192]{0}', space=vmem, size = 0x2000, scoped, tag = 'input window, operand 0']
    #allocation3 [shape = 's32[2]{0}', space=sflag, size = 0x8, scoped, tag = 'scoped memory for tpu_custom_call.1']
    #allocation4 [shape = 's32[2]{0}', space=sflag, size = 0x8, scoped, tag = 'scoped memory for tpu_custom_call.1']
    #allocation5 [shape = 'u8[8192]{0}', space=vmem, size = 0x2000, scoped, tag = 'input window, operand 1']
    #allocation6 [shape = 's32[2]{0}', space=sflag, size = 0x8, scoped, tag = 'scoped memory for tpu_custom_call.1']
    #allocation7 [shape = 'u8[8192]{0}', space=vmem, size = 0x2000, scoped, tag = 'input window, operand 2']
    #allocation8 [shape = 'u8[8192]{0}', space=vmem, size = 0x2000, scoped, tag = 'input window, operand 3, single buffered']
    #allocation9 [shape = 's32[1]{0}', space=sflag, size = 0x4, scoped, tag = 'scoped memory for tpu_custom_call.1']
    #allocation10 [shape = 'u8[8192]{0}', space=vmem, size = 0x2000, scoped, tag = 'input window, operand 4, single buffered']
    #allocation11 [shape = 'u8[8192]{0}', space=vmem, size = 0x2000, scoped, tag = 'output window, operand 0']
    #allocation12 [shape = 'u8[8192]{0}', space=vmem, size = 0x2000, scoped, tag = 'output window, operand 1']
    #allocation13 [shape = 's32[2]{0}', space=sflag, size = 0x8, scoped, tag = 'scoped memory for tpu_custom_call.1']
    %15 = vsyncpa [#allocation3], 0
    %s16 = scalar_lea.sflag [#allocation3], 1
    %17 = vsyncpa %s16, 0
    %18 = vsyncpa [#allocation6], 0
    %s19 = scalar_lea.sflag [#allocation6], 1
    %20 = vsyncpa %s19, 0
    %21 = vsyncpa [#allocation9], 0
    %22 = vsyncpa [#allocation4], 0
    %s23 = scalar_lea.sflag [#allocation4], 1
    %24 = vsyncpa %s23, 0
    %25 = vsyncpa [#allocation13], 0
    %s26 = scalar_lea.sflag [#allocation13], 1
    %27 = vsyncpa %s26, 0
    loop: start=0, step=1, limit=4
    $region2: #{tpu_custom_call.1} parent=1 // loop_pre_header
      _
    $region3: #{tpu_custom_call.1} parent=1 // loop_header
      %s29 = sphi 0, %s33
      %p30 = scmp.ge.s32.totalorder %s29, 4
      %s36 = sphi 0, %s48
      %s37 = sphi 0, %s44
      %s38 = sphi 0, %s36
      %s39 = sphi 0, %s37
      %s40 = sphi 0, %s38
      %s41 = sphi 0, %s39
      %s51 = sphi 0, %s53
      %s54 = sphi 0, %s51
      %s55 = sphi 0, %s54
      %s71 = sphi 0, %s55
      %s77 = sphi 0, %s79
      %s80 = sphi 0, %s77
      %s81 = sphi 0, %s80
      %s97 = sphi 0, %s81
      %s105 = sphi 0, %s107
      %s108 = sphi 0, %s105
      %s109 = sphi 0, %s108
      %s125 = sphi 0, %s109
      %s129 = sphi 0, %s129
      %s131 = sphi 0, %s129
      %s132 = sphi 0, %s131
      %s146 = sphi 0, %s132
      %s150 = sphi 0, %s150
      %s152 = sphi 0, %s150
      %s153 = sphi 0, %s152
      %s167 = sphi 0, %s153
      %s171 = sphi 0, %s171
      %s173 = sphi 0, %s171
      %s174 = sphi 0, %s173
      %s188 = sphi 0, %s174
      %s192 = sphi 0, %s192
      %s194 = sphi 0, %s192
      %s195 = sphi 0, %s194
      %s209 = sphi 0, %s195
      %s213 = sphi 0, %s213
      %s215 = sphi 0, %s213
      %s216 = sphi 0, %s215
      %s230 = sphi 0, %s216
      %s238 = sphi 0, %s240
      %s241 = sphi 0, %s238
      %s242 = sphi 0, %s241
      %s258 = sphi 0, %s242
      %s266 = sphi 0, %s268
      %s269 = sphi 0, %s266
      %s270 = sphi 0, %s269
      %s286 = sphi 0, %s270
    $region4: #{tpu_custom_call.1} parent=1 // loop_header_branch
      %32 = sbr.rel (%p30) target = $region8
    $region5: #{tpu_custom_call.1} parent=1 // loop_body
      %s34 = ssub.s32 %s29, 1
      %s35 = ssub.s32 %s29, 2
      %s42 = sadd.s32 1, %s37
      %p43 = scmp.ge.s32.totalorder %s42, 1
      %s44 = scalar_select %p43, 0, %s42
      %s45 = sadd.s32 1, %s36
      %s46 = scalar_select %p43, %s45, %s36
      %p47 = scmp.ge.s32.totalorder %s46, 2
      %s48 = scalar_select %p47, 0, %s46
      %s49 = ssub.s32 %s36, %s48
      %p50 = scmp.eq.s32.totalorder %s49, 0
      %s52 = sadd.s32 %s51, 1
      %s53 = scalar_select %p50, %s51, %s52
      %p56 = pneg %p50
      %p57 = scmp.eq.s32.totalorder %s29, 1
      %p58 = por %p56, %p57
      %p59 = scmp.ne.s32.totalorder %s51, %s54
      %p60 = scmp.eq.s32.totalorder %s29, 0
      %p61 = por %p59, %p60
      %p62 = scmp.ne.s32.totalorder %s51, %s54
      %p63 = scmp.eq.s32.totalorder %s34, 1
      %p64 = por %p62, %p63
      %p65 = scmp.ne.s32.totalorder %s54, %s55
      %p66 = scmp.eq.s32.totalorder %s34, 0
      %p67 = por %p65, %p66
      %p68 = scmp.ne.s32.totalorder %s54, %s55
      %p69 = scmp.eq.s32.totalorder %s35, 1
      %p70 = por %p68, %p69
      %p72 = scmp.ne.s32.totalorder %s55, %s71
      %p73 = scmp.eq.s32.totalorder %s35, 0
      %p74 = por %p72, %p73
      %s75 = ssub.s32 %s36, %s48
      %p76 = scmp.eq.s32.totalorder %s75, 0
      %s78 = sadd.s32 %s77, 1
      %s79 = scalar_select %p76, %s77, %s78
      %p82 = pneg %p76
      %p83 = scmp.eq.s32.totalorder %s29, 1
      %p84 = por %p82, %p83
      %p85 = scmp.ne.s32.totalorder %s77, %s80
      %p86 = scmp.eq.s32.totalorder %s29, 0
      %p87 = por %p85, %p86
      %p88 = scmp.ne.s32.totalorder %s77, %s80
      %p89 = scmp.eq.s32.totalorder %s34, 1
      %p90 = por %p88, %p89
      %p91 = scmp.ne.s32.totalorder %s80, %s81
      %p92 = scmp.eq.s32.totalorder %s34, 0
      %p93 = por %p91, %p92
      %p94 = scmp.ne.s32.totalorder %s80, %s81
      %p95 = scmp.eq.s32.totalorder %s35, 1
      %p96 = por %p94, %p95
      %p98 = scmp.ne.s32.totalorder %s81, %s97
      %p99 = scmp.eq.s32.totalorder %s35, 0
      %p100 = por %p98, %p99
      %s101 = ssub.s32 %s36, %s48
      %s102 = ssub.s32 %s37, %s44
      %s103 = sor.u32 %s101, %s102
      %p104 = scmp.eq.s32.totalorder %s103, 0
      %s106 = sadd.s32 %s105, 1
      %s107 = scalar_select %p104, %s105, %s106
      %p110 = pneg %p104
      %p111 = scmp.eq.s32.totalorder %s29, 1
      %p112 = por %p110, %p111
      %p113 = scmp.ne.s32.totalorder %s105, %s108
      %p114 = scmp.eq.s32.totalorder %s29, 0
      %p115 = por %p113, %p114
      %p116 = scmp.ne.s32.totalorder %s105, %s108
      %p117 = scmp.eq.s32.totalorder %s34, 1
      %p118 = por %p116, %p117
      %p119 = scmp.ne.s32.totalorder %s108, %s109
      %p120 = scmp.eq.s32.totalorder %s34, 0
      %p121 = por %p119, %p120
      %p122 = scmp.ne.s32.totalorder %s108, %s109
      %p123 = scmp.eq.s32.totalorder %s35, 1
      %p124 = por %p122, %p123
      %p126 = scmp.ne.s32.totalorder %s109, %s125
      %p127 = scmp.eq.s32.totalorder %s35, 0
      %p128 = por %p126, %p127
      %s130 = sadd.s32 %s129, 1
      %p133 = scmp.eq.s32.totalorder %s29, 1
      %p134 = scmp.ne.s32.totalorder %s129, %s131
      %p135 = scmp.eq.s32.totalorder %s29, 0
      %p136 = por %p134, %p135
      %p137 = scmp.ne.s32.totalorder %s129, %s131
      %p138 = scmp.eq.s32.totalorder %s34, 1
      %p139 = por %p137, %p138
      %p140 = scmp.ne.s32.totalorder %s131, %s132
      %p141 = scmp.eq.s32.totalorder %s34, 0
      %p142 = por %p140, %p141
      %p143 = scmp.ne.s32.totalorder %s131, %s132
      %p144 = scmp.eq.s32.totalorder %s35, 1
      %p145 = por %p143, %p144
      %p147 = scmp.ne.s32.totalorder %s132, %s146
      %p148 = scmp.eq.s32.totalorder %s35, 0
      %p149 = por %p147, %p148
      %s151 = sadd.s32 %s150, 1
      %p154 = scmp.eq.s32.totalorder %s29, 1
      %p155 = scmp.ne.s32.totalorder %s150, %s152
      %p156 = scmp.eq.s32.totalorder %s29, 0
      %p157 = por %p155, %p156
      %p158 = scmp.ne.s32.totalorder %s150, %s152
      %p159 = scmp.eq.s32.totalorder %s34, 1
      %p160 = por %p158, %p159
      %p161 = scmp.ne.s32.totalorder %s152, %s153
      %p162 = scmp.eq.s32.totalorder %s34, 0
      %p163 = por %p161, %p162
      %p164 = scmp.ne.s32.totalorder %s152, %s153
      %p165 = scmp.eq.s32.totalorder %s35, 1
      %p166 = por %p164, %p165
      %p168 = scmp.ne.s32.totalorder %s153, %s167
      %p169 = scmp.eq.s32.totalorder %s35, 0
      %p170 = por %p168, %p169
      %s172 = sadd.s32 %s171, 1
      %p175 = scmp.eq.s32.totalorder %s29, 1
      %p176 = scmp.ne.s32.totalorder %s171, %s173
      %p177 = scmp.eq.s32.totalorder %s29, 0
      %p178 = por %p176, %p177
      %p179 = scmp.ne.s32.totalorder %s171, %s173
      %p180 = scmp.eq.s32.totalorder %s34, 1
      %p181 = por %p179, %p180
      %p182 = scmp.ne.s32.totalorder %s173, %s174
      %p183 = scmp.eq.s32.totalorder %s34, 0
      %p184 = por %p182, %p183
      %p185 = scmp.ne.s32.totalorder %s173, %s174
      %p186 = scmp.eq.s32.totalorder %s35, 1
      %p187 = por %p185, %p186
      %p189 = scmp.ne.s32.totalorder %s174, %s188
      %p190 = scmp.eq.s32.totalorder %s35, 0
      %p191 = por %p189, %p190
      %s193 = sadd.s32 %s192, 1
      %p196 = scmp.eq.s32.totalorder %s29, 1
      %p197 = scmp.ne.s32.totalorder %s192, %s194
      %p198 = scmp.eq.s32.totalorder %s29, 0
      %p199 = por %p197, %p198
      %p200 = scmp.ne.s32.totalorder %s192, %s194
      %p201 = scmp.eq.s32.totalorder %s34, 1
      %p202 = por %p200, %p201
      %p203 = scmp.ne.s32.totalorder %s194, %s195
      %p204 = scmp.eq.s32.totalorder %s34, 0
      %p205 = por %p203, %p204
      %p206 = scmp.ne.s32.totalorder %s194, %s195
      %p207 = scmp.eq.s32.totalorder %s35, 1
      %p208 = por %p206, %p207
      %p210 = scmp.ne.s32.totalorder %s195, %s209
      %p211 = scmp.eq.s32.totalorder %s35, 0
      %p212 = por %p210, %p211
      %s214 = sadd.s32 %s213, 1
      %p217 = scmp.eq.s32.totalorder %s29, 1
      %p218 = scmp.ne.s32.totalorder %s213, %s215
      %p219 = scmp.eq.s32.totalorder %s29, 0
      %p220 = por %p218, %p219
      %p221 = scmp.ne.s32.totalorder %s213, %s215
      %p222 = scmp.eq.s32.totalorder %s34, 1
      %p223 = por %p221, %p222
      %p224 = scmp.ne.s32.totalorder %s215, %s216
      %p225 = scmp.eq.s32.totalorder %s34, 0
      %p226 = por %p224, %p225
      %p227 = scmp.ne.s32.totalorder %s215, %s216
      %p228 = scmp.eq.s32.totalorder %s35, 1
      %p229 = por %p227, %p228
      %p231 = scmp.ne.s32.totalorder %s216, %s230
      %p232 = scmp.eq.s32.totalorder %s35, 0
      %p233 = por %p231, %p232
      %s234 = ssub.s32 %s36, %s48
      %s235 = ssub.s32 %s37, %s44
      %s236 = sor.u32 %s234, %s235
      %p237 = scmp.eq.s32.totalorder %s236, 0
      %s239 = sadd.s32 %s238, 1
      %s240 = scalar_select %p237, %s238, %s239
      %p243 = pneg %p237
      %p244 = scmp.eq.s32.totalorder %s29, 1
      %p245 = por %p243, %p244
      %p246 = scmp.ne.s32.totalorder %s238, %s241
      %p247 = scmp.eq.s32.totalorder %s29, 0
      %p248 = por %p246, %p247
      %p249 = scmp.ne.s32.totalorder %s238, %s241
      %p250 = scmp.eq.s32.totalorder %s34, 1
      %p251 = por %p249, %p250
      %p252 = scmp.ne.s32.totalorder %s241, %s242
      %p253 = scmp.eq.s32.totalorder %s34, 0
      %p254 = por %p252, %p253
      %p255 = scmp.ne.s32.totalorder %s241, %s242
      %p256 = scmp.eq.s32.totalorder %s35, 1
      %p257 = por %p255, %p256
      %p259 = scmp.ne.s32.totalorder %s242, %s258
      %p260 = scmp.eq.s32.totalorder %s35, 0
      %p261 = por %p259, %p260
      %s262 = ssub.s32 %s36, %s48
      %s263 = ssub.s32 %s37, %s44
      %s264 = sor.u32 %s262, %s263
      %p265 = scmp.eq.s32.totalorder %s264, 0
      %s267 = sadd.s32 %s266, 1
      %s268 = scalar_select %p265, %s266, %s267
      %p271 = pneg %p265
      %p272 = scmp.eq.s32.totalorder %s29, 1
      %p273 = por %p271, %p272
      %p274 = scmp.ne.s32.totalorder %s266, %s269
      %p275 = scmp.eq.s32.totalorder %s29, 0
      %p276 = por %p274, %p275
      %p277 = scmp.ne.s32.totalorder %s266, %s269
      %p278 = scmp.eq.s32.totalorder %s34, 1
      %p279 = por %p277, %p278
      %p280 = scmp.ne.s32.totalorder %s269, %s270
      %p281 = scmp.eq.s32.totalorder %s34, 0
      %p282 = por %p280, %p281
      %p283 = scmp.ne.s32.totalorder %s269, %s270
      %p284 = scmp.eq.s32.totalorder %s35, 1
      %p285 = por %p283, %p284
      %p287 = scmp.ne.s32.totalorder %s270, %s286
      %p288 = scmp.eq.s32.totalorder %s35, 0
      %p289 = por %p287, %p288
      %p290 = scmp.le.s32.totalorder 1, %s29
      %p291 = scmp.lt.s32.totalorder %s29, 3
      %p292 = pnand %p290, %p291
      %p293 = pneg %p292
      // Predicated region
      $region9: #{tpu_custom_call.1} parent=5 // pred_check
        _
      $region10: #{tpu_custom_call.1} parent=5 // pred_check_branch
        %295 = sbr.rel (%p292) target = $region12
      $region11: #{tpu_custom_call.1} parent=5 // pred_region
        %s296 = ssub.s32 %s29, 1
        // Predicated region
        $region13: #{tpu_custom_call.1} parent=11 // pred_check
          %p297 = pneg %p142
        $region14: #{tpu_custom_call.1} parent=11 // pred_check_branch
          %299 = sbr.rel (%p297) target = $region16
        $region15: #{tpu_custom_call.1} parent=11 // pred_region
          %s301 = ssub.s32 256, 256
          %302 = vsyncadd [#allocation9], %s301
          %s303 = sshll.u32 [#allocation8], 4
          %s304 = int_to_ptr.vmem [resolvable:$true] %s303
          %309 = dma.hbm_to_vmem [thread:$0]  %s3, 256, %s304, [#allocation9], 64, 64, 4
        $region16: #{tpu_custom_call.1} parent=11 // pred_fallthru
          _
        // Predicated region
        $region17: #{tpu_custom_call.1} parent=11 // pred_check
          %p310 = pneg %p163
        $region18: #{tpu_custom_call.1} parent=11 // pred_check_branch
          %312 = sbr.rel (%p310) target = $region20
        $region19: #{tpu_custom_call.1} parent=11 // pred_region
          %s314 = ssub.s32 256, 256
          %315 = vsyncadd [#allocation9], %s314
          %s316 = sshll.u32 [#allocation10], 4
          %s317 = int_to_ptr.vmem [resolvable:$true] %s316
          %322 = dma.hbm_to_vmem [thread:$0]  %s4, 256, %s317, [#allocation9], 64, 64, 4
        $region20: #{tpu_custom_call.1} parent=11 // pred_fallthru
          _
        // Predicated region
        $region21: #{tpu_custom_call.1} parent=11 // pred_check
          %p323 = pneg %p184
        $region22: #{tpu_custom_call.1} parent=11 // pred_check_branch
          %325 = sbr.rel (%p323) target = $region24
        $region23: #{tpu_custom_call.1} parent=11 // pred_region
          _
        $region24: #{tpu_custom_call.1} parent=11 // pred_fallthru
          _
        // Predicated region
        $region25: #{tpu_custom_call.1} parent=11 // pred_check
          %p326 = pneg %p205
        $region26: #{tpu_custom_call.1} parent=11 // pred_check_branch
          %328 = sbr.rel (%p326) target = $region28
        $region27: #{tpu_custom_call.1} parent=11 // pred_region
          _
        $region28: #{tpu_custom_call.1} parent=11 // pred_fallthru
          _
        // Predicated region
        $region29: #{tpu_custom_call.1} parent=11 // pred_check
          %p329 = pneg %p226
        $region30: #{tpu_custom_call.1} parent=11 // pred_check_branch
          %331 = sbr.rel (%p329) target = $region32
        $region31: #{tpu_custom_call.1} parent=11 // pred_region
          _
        $region32: #{tpu_custom_call.1} parent=11 // pred_fallthru
          _
      $region12: #{tpu_custom_call.1} parent=5 // pred_fallthru
        _
      %p332 = scmp.lt.s32.totalorder %s29, 2
      // Predicated region
      $region33: #{tpu_custom_call.1} parent=5 // pred_check
        %p333 = pneg %p332
      $region34: #{tpu_custom_call.1} parent=5 // pred_check_branch
        %335 = sbr.rel (%p333) target = $region36
      $region35: #{tpu_custom_call.1} parent=5 // pred_region
        // Predicated region
        $region37: #{tpu_custom_call.1} parent=35 // pred_check
          %p336 = pneg %p61
        $region38: #{tpu_custom_call.1} parent=35 // pred_check_branch
          %338 = sbr.rel (%p336) target = $region40
        $region39: #{tpu_custom_call.1} parent=35 // pred_region
          %s339 = sand.u32 %s51, 1
          %s340 = scalar_lea.sflag [#allocation3], %s339
          %s341 = sand.u32 %s51, 1
          %s342 = smul.addr %s341, 8
          %s343 = scalar_lea.vmem [#allocation2], %s342
          %s345 = ssub.s32 128, 128
          %346 = vsyncadd %s340, %s345
          %s347 = smul.addr %s36, 128
          %s348 = scalar_lea.hbm %s0, %s347
          %s350 = sshll.u32 %s343, 4
          %s351 = int_to_ptr.vmem [resolvable:$true] %s350
          %353 = dma.hbm_to_vmem [thread:$0]  %s348, 128, %s351, %s340
        $region40: #{tpu_custom_call.1} parent=35 // pred_fallthru
          _
        // Predicated region
        $region41: #{tpu_custom_call.1} parent=35 // pred_check
          %p354 = pneg %p87
        $region42: #{tpu_custom_call.1} parent=35 // pred_check_branch
          %356 = sbr.rel (%p354) target = $region44
        $region43: #{tpu_custom_call.1} parent=35 // pred_region
          %s357 = sand.u32 %s29, 1
          %s358 = scalar_lea.sflag [#allocation6], %s357
          %s359 = sand.u32 %s77, 1
          %s360 = smul.addr %s359, 8
          %s361 = scalar_lea.vmem [#allocation5], %s360
          %s363 = ssub.s32 128, 128
          %364 = vsyncadd %s358, %s363
          %s365 = smul.addr %s36, 128
          %s366 = scalar_lea.hbm %s1, %s365
          %s368 = sshll.u32 %s361, 4
          %s369 = int_to_ptr.vmem [resolvable:$true] %s368
          %371 = dma.hbm_to_vmem [thread:$0]  %s366, 128, %s369, %s358
        $region44: #{tpu_custom_call.1} parent=35 // pred_fallthru
          _
        // Predicated region
        $region45: #{tpu_custom_call.1} parent=35 // pred_check
          %p372 = pneg %p115
        $region46: #{tpu_custom_call.1} parent=35 // pred_check_branch
          %374 = sbr.rel (%p372) target = $region48
        $region47: #{tpu_custom_call.1} parent=35 // pred_region
          %s375 = sand.u32 %s29, 1
          %s376 = scalar_lea.sflag [#allocation6], %s375
          %s377 = sand.u32 %s105, 1
          %s378 = smul.addr %s377, 8
          %s379 = scalar_lea.vmem [#allocation7], %s378
          %s381 = ssub.s32 128, 128
          %382 = vsyncadd %s376, %s381
          %s383 = sadd.s32 %s37, %s36
          %s384 = smul.addr %s383, 128
          %s385 = scalar_lea.hbm %s2, %s384
          %s387 = sshll.u32 %s379, 4
          %s388 = int_to_ptr.vmem [resolvable:$true] %s387
          %390 = dma.hbm_to_vmem [thread:$0]  %s385, 128, %s388, %s376
        $region48: #{tpu_custom_call.1} parent=35 // pred_fallthru
          _
      $region36: #{tpu_custom_call.1} parent=5 // pred_fallthru
        _
      %p391 = scmp.le.s32.totalorder 1, %s29
      %p392 = scmp.lt.s32.totalorder %s29, 3
      %p393 = pnand %p391, %p392
      %p394 = pneg %p393
      // Predicated region
      $region49: #{tpu_custom_call.1} parent=5 // pred_check
        _
      $region50: #{tpu_custom_call.1} parent=5 // pred_check_branch
        %396 = sbr.rel (%p393) target = $region52
      $region51: #{tpu_custom_call.1} parent=5 // pred_region
        %s397 = ssub.s32 %s29, 1
        %s398 = sand.u32 %s54, 1
        %s399 = scalar_lea.sflag [#allocation3], %s398
        %s400 = sand.u32 %s54, 1
        %s401 = smul.addr %s400, 8
        %s402 = scalar_lea.vmem [#allocation2], %s401
        // Predicated region
        $region53: #{tpu_custom_call.1} parent=51 // pred_check
          %p403 = pneg %p67
        $region54: #{tpu_custom_call.1} parent=51 // pred_check_branch
          %405 = sbr.rel (%p403) target = $region56
        $region55: #{tpu_custom_call.1} parent=51 // pred_region
          %406 = dma.done %s399, 128
        $region56: #{tpu_custom_call.1} parent=51 // pred_fallthru
          _
        %s407 = sand.u32 %s34, 1
        %s408 = scalar_lea.sflag [#allocation6], %s407
        %s409 = sand.u32 %s80, 1
        %s410 = smul.addr %s409, 8
        %s411 = scalar_lea.vmem [#allocation5], %s410
        // Predicated region
        $region57: #{tpu_custom_call.1} parent=51 // pred_check
          %p412 = pneg %p93
        $region58: #{tpu_custom_call.1} parent=51 // pred_check_branch
          %414 = sbr.rel (%p412) target = $region60
        $region59: #{tpu_custom_call.1} parent=51 // pred_region
          %415 = dma.done %s408, 128
        $region60: #{tpu_custom_call.1} parent=51 // pred_fallthru
          _
        %s416 = sand.u32 %s34, 1
        %s417 = scalar_lea.sflag [#allocation6], %s416
        %s418 = sand.u32 %s108, 1
        %s419 = smul.addr %s418, 8
        %s420 = scalar_lea.vmem [#allocation7], %s419
        // Predicated region
        $region61: #{tpu_custom_call.1} parent=51 // pred_check
          %p421 = pneg %p121
        $region62: #{tpu_custom_call.1} parent=51 // pred_check_branch
          %423 = sbr.rel (%p421) target = $region64
        $region63: #{tpu_custom_call.1} parent=51 // pred_region
          %424 = dma.done %s417, 128
        $region64: #{tpu_custom_call.1} parent=51 // pred_fallthru
          _
        // Predicated region
        $region65: #{tpu_custom_call.1} parent=51 // pred_check
          %p425 = pneg %p142
        $region66: #{tpu_custom_call.1} parent=51 // pred_check_branch
          %427 = sbr.rel (%p425) target = $region68
        $region67: #{tpu_custom_call.1} parent=51 // pred_region
          %428 = dma.done [#allocation9], 256
        $region68: #{tpu_custom_call.1} parent=51 // pred_fallthru
          _
        // Predicated region
        $region69: #{tpu_custom_call.1} parent=51 // pred_check
          %p429 = pneg %p163
        $region70: #{tpu_custom_call.1} parent=51 // pred_check_branch
          %431 = sbr.rel (%p429) target = $region72
        $region71: #{tpu_custom_call.1} parent=51 // pred_region
          %432 = dma.done [#allocation9], 256
        $region72: #{tpu_custom_call.1} parent=51 // pred_fallthru
          _
        %s433 = sand.u32 %s54, 1
        %s434 = scalar_lea.sflag [#allocation3], %s433
        %s435 = sand.u32 %s54, 1
        %s436 = smul.addr %s435, 8
        %s437 = scalar_lea.vmem [#allocation2], %s436
        %p438 = pneg %p67
        %p439 = pneg %p64
        %s440 = sand.u32 %s34, 1
        %s441 = scalar_lea.sflag [#allocation6], %s440
        %s442 = sand.u32 %s80, 1
        %s443 = smul.addr %s442, 8
        %s444 = scalar_lea.vmem [#allocation5], %s443
        %p445 = pneg %p93
        %p446 = pneg %p90
        %s447 = sand.u32 %s34, 1
        %s448 = scalar_lea.sflag [#allocation6], %s447
        %s449 = sand.u32 %s108, 1
        %s450 = smul.addr %s449, 8
        %s451 = scalar_lea.vmem [#allocation7], %s450
        %p452 = pneg %p121
        %p453 = pneg %p118
        %p454 = pneg %p142
        %p455 = pneg %p139
        %p456 = pneg %p163
        %p457 = pneg %p160
        %p458 = pneg %p184
        %p459 = pneg %p181
        %p460 = pneg %p205
        %p461 = pneg %p202
        %p462 = pneg %p226
        %p463 = pneg %p223
        %p464 = pneg %p254
        %p465 = pneg %p251
        %s466 = sand.u32 %s241, 1
        %s467 = scalar_lea.sflag [#allocation4], %s466
        %s468 = sand.u32 %s241, 1
        %s469 = smul.addr %s468, 8
        %s470 = scalar_lea.vmem [#allocation11], %s469
        %p471 = pneg %p282
        %p472 = pneg %p279
        %s473 = sand.u32 %s269, 1
        %s474 = scalar_lea.sflag [#allocation13], %s473
        %s475 = sand.u32 %s269, 1
        %s476 = smul.addr %s475, 8
        %s477 = scalar_lea.vmem [#allocation12], %s476
        %v479 = vld [vmem:[%s402] sm:$0xff]
        %v480 = vpack.c.bf16 %v479, %v479
        %v481 = vld [vmem:[%s411] sm:$0xff]
        %v482 = vpack.c.bf16 %v481, %v481
        %v483 = vld [vmem:[%s420] sm:$0xff]
        %v484 = vpack.c.bf16 %v483, %v483
        %v485 = vld [vmem:[#allocation8] sm:$0xf]
        %v486 = vld [vmem:[#allocation8 + $0x4] sm:$0xf]
        %v487 = vld [vmem:[#allocation8 + $0x8] sm:$0xf]
        %v488 = vld [vmem:[#allocation8 + $0xc] sm:$0xf]
        %v493 = vunpack.c.l.b16 %v485
        %v494 = vunpack.c.l.b16 %v486
        %v495 = vunpack.c.l.b16 %v487
        %v496 = vunpack.c.l.b16 %v488
        %v497 = vpack.c.b16 %v494, %v493
        %v498 = vpack.c.b16 %v496, %v495
        %vm501 = vcmask 261120
        %v503 = vsel %vm501, %v480, 0
        %505 = vmatprep.subr.bf16.mxu0 0
        %506 = vmatpush1.bf16.msra.mxu0 %v497
        %507 = vmatprep.subr.bf16.mxu0 0
        %508 = vmatpush1.bf16.msra.mxu0 %v498
        %509 = vmatprep.subr.bf16.mxu0 0
        %510 = vmatpush1.bf16.msra.mxu0 0
        %511 = vmatprep.subr.bf16.mxu0 0
        %512 = vmatpush1.bf16.msra.mxu0 0
        %513 = vmatprep.subr.bf16.mxu0 0
        %514 = vmatpush1.bf16.msra.mxu0 0
        %515 = vmatprep.subr.bf16.mxu0 0
        %516 = vmatpush1.bf16.msra.mxu0 0
        %517 = vmatprep.subr.bf16.mxu0 0
        %518 = vmatpush1.bf16.msra.mxu0 0
        %519 = vmatprep.subr.bf16.mxu0 0
        %520 = vmatpush1.bf16.msra.mxu0 0
        %521 = vmatprep.subr.bf16.mxu0 0
        %522 = vmatpush1.bf16.msra.mxu0 0
        %523 = vmatprep.subr.bf16.mxu0 0
        %524 = vmatpush1.bf16.msra.mxu0 0
        %525 = vmatprep.subr.bf16.mxu0 0
        %526 = vmatpush1.bf16.msra.mxu0 0
        %527 = vmatprep.subr.bf16.mxu0 0
        %528 = vmatpush1.bf16.msra.mxu0 0
        %529 = vmatprep.subr.bf16.mxu0 0
        %530 = vmatpush1.bf16.msra.mxu0 0
        %531 = vmatprep.subr.bf16.mxu0 0
        %532 = vmatpush1.bf16.msra.mxu0 0
        %533 = vmatprep.subr.bf16.mxu0 0
        %534 = vmatpush1.bf16.msra.mxu0 0
        %535 = vmatprep.subr.bf16.mxu0 0
        %536 = vmatpush1.bf16.msra.mxu0 0
        %537 = vmatprep.mubr.bf16.mxu0 0
        %538 = vmatmul.mubr.bf16.gmra.mrb[0].mxu0 %v503
        %v539 = vpop.f32.mrb[0].mxu0
        %v540 = vadd.f32 0.0, %v539
        %v541 = vpop.f32.mrb[0].mxu0
        %v542 = vpop.f32.mrb[0].mxu0
        %v543 = vpop.f32.mrb[0].mxu0
        %544 = vdwg.mxu0
        %v545 = vld [vmem:[#allocation10] sm:$0xf]
        %v546 = vld [vmem:[#allocation10 + $0x4] sm:$0xf]
        %v547 = vld [vmem:[#allocation10 + $0x8] sm:$0xf]
        %v548 = vld [vmem:[#allocation10 + $0xc] sm:$0xf]
        %v553 = vunpack.c.l.b16 %v545
        %v554 = vunpack.c.l.b16 %v546
        %v555 = vunpack.c.l.b16 %v547
        %v556 = vunpack.c.l.b16 %v548
        %v557 = vpack.c.b16 %v554, %v553
        %v558 = vpack.c.b16 %v556, %v555
        %v562 = vsel %vm501, %v482, 0
        %564 = vmatprep.subr.bf16.mxu0 0
        %565 = vmatpush1.bf16.msra.mxu0 %v557
        %566 = vmatprep.subr.bf16.mxu0 0
        %567 = vmatpush1.bf16.msra.mxu0 %v558
        %568 = vmatprep.subr.bf16.mxu0 0
        %569 = vmatpush1.bf16.msra.mxu0 0
        %570 = vmatprep.subr.bf16.mxu0 0
        %571 = vmatpush1.bf16.msra.mxu0 0
        %572 = vmatprep.subr.bf16.mxu0 0
        %573 = vmatpush1.bf16.msra.mxu0 0
        %574 = vmatprep.subr.bf16.mxu0 0
        %575 = vmatpush1.bf16.msra.mxu0 0
        %576 = vmatprep.subr.bf16.mxu0 0
        %577 = vmatpush1.bf16.msra.mxu0 0
        %578 = vmatprep.subr.bf16.mxu0 0
        %579 = vmatpush1.bf16.msra.mxu0 0
        %580 = vmatprep.subr.bf16.mxu0 0
        %581 = vmatpush1.bf16.msra.mxu0 0
        %582 = vmatprep.subr.bf16.mxu0 0
        %583 = vmatpush1.bf16.msra.mxu0 0
        %584 = vmatprep.subr.bf16.mxu0 0
        %585 = vmatpush1.bf16.msra.mxu0 0
        %586 = vmatprep.subr.bf16.mxu0 0
        %587 = vmatpush1.bf16.msra.mxu0 0
        %588 = vmatprep.subr.bf16.mxu0 0
        %589 = vmatpush1.bf16.msra.mxu0 0
        %590 = vmatprep.subr.bf16.mxu0 0
        %591 = vmatpush1.bf16.msra.mxu0 0
        %592 = vmatprep.subr.bf16.mxu0 0
        %593 = vmatpush1.bf16.msra.mxu0 0
        %594 = vmatprep.subr.bf16.mxu0 0
        %595 = vmatpush1.bf16.msra.mxu0 0
        %596 = vmatprep.mubr.bf16.mxu0 0
        %597 = vmatmul.mubr.bf16.gmra.mrb[0].mxu0 %v562
        %v598 = vpop.f32.mrb[0].mxu0
        %v599 = vadd.f32 0.0, %v598
        %v600 = vpop.f32.mrb[0].mxu0
        %v601 = vpop.f32.mrb[0].mxu0
        %v602 = vpop.f32.mrb[0].mxu0
        %603 = vdwg.mxu0
        %v604 = vld [vmem:[%s5] sm:$0xf]
        %v605 = vld [vmem:[%s5 + $0x4] sm:$0xf]
        %v606 = vld [vmem:[%s5 + $0x8] sm:$0xf]
        %v607 = vld [vmem:[%s5 + $0xc] sm:$0xf]
        %v612 = vunpack.c.l.b16 %v604
        %v613 = vunpack.c.l.b16 %v605
        %v614 = vunpack.c.l.b16 %v606
        %v615 = vunpack.c.l.b16 %v607
        %v616 = vpack.c.b16 %v613, %v612
        %v617 = vpack.c.b16 %v615, %v614
        %v621 = vsel %vm501, %v484, 0
        %623 = vmatprep.subr.bf16.mxu0 0
        %624 = vmatpush1.bf16.msra.mxu0 %v616
        %625 = vmatprep.subr.bf16.mxu0 0
        %626 = vmatpush1.bf16.msra.mxu0 %v617
        %627 = vmatprep.subr.bf16.mxu0 0
        %628 = vmatpush1.bf16.msra.mxu0 0
        %629 = vmatprep.subr.bf16.mxu0 0
        %630 = vmatpush1.bf16.msra.mxu0 0
        %631 = vmatprep.subr.bf16.mxu0 0
        %632 = vmatpush1.bf16.msra.mxu0 0
        %633 = vmatprep.subr.bf16.mxu0 0
        %634 = vmatpush1.bf16.msra.mxu0 0
        %635 = vmatprep.subr.bf16.mxu0 0
        %636 = vmatpush1.bf16.msra.mxu0 0
        %637 = vmatprep.subr.bf16.mxu0 0
        %638 = vmatpush1.bf16.msra.mxu0 0
        %639 = vmatprep.subr.bf16.mxu0 0
        %640 = vmatpush1.bf16.msra.mxu0 0
        %641 = vmatprep.subr.bf16.mxu0 0
        %642 = vmatpush1.bf16.msra.mxu0 0
        %643 = vmatprep.subr.bf16.mxu0 0
        %644 = vmatpush1.bf16.msra.mxu0 0
        %645 = vmatprep.subr.bf16.mxu0 0
        %646 = vmatpush1.bf16.msra.mxu0 0
        %647 = vmatprep.subr.bf16.mxu0 0
        %648 = vmatpush1.bf16.msra.mxu0 0
        %649 = vmatprep.subr.bf16.mxu0 0
        %650 = vmatpush1.bf16.msra.mxu0 0
        %651 = vmatprep.subr.bf16.mxu0 0
        %652 = vmatpush1.bf16.msra.mxu0 0
        %653 = vmatprep.subr.bf16.mxu0 0
        %654 = vmatpush1.bf16.msra.mxu0 0
        %655 = vmatprep.mubr.bf16.mxu0 0
        %656 = vmatmul.mubr.bf16.gmra.mrb[0].mxu0 %v621
        %v657 = vpop.f32.mrb[0].mxu0
        %v658 = vadd.f32 0.0, %v657
        %v659 = vpop.f32.mrb[0].mxu0
        %v660 = vpop.f32.mrb[0].mxu0
        %v661 = vpop.f32.mrb[0].mxu0
        %662 = vdwg.mxu0
        %664 = vrot.lane.b32.xlu0 %v658, 120
        %v665 = vpop.permute.xlu0 %664
        %667 = vrot.lane.b32.xlu0 %v658, 112
        %v668 = vpop.permute.xlu0 %667
        %670 = vrot.lane.b32.xlu0 %v658, 104
        %v671 = vpop.permute.xlu0 %670
        %v673 = vpack.c.bf16 %v658, %v658
        %v674 = vpack.c.bf16 %v665, %v665
        %v675 = vpack.c.bf16 %v668, %v668
        %v676 = vpack.c.bf16 %v671, %v671
        %678 = vrot.lane.b32.xlu0 %v540, 120
        %v679 = vpop.permute.xlu0 %678
        %681 = vrot.lane.b32.xlu0 %v540, 112
        %v682 = vpop.permute.xlu0 %681
        %684 = vrot.lane.b32.xlu0 %v540, 104
        %v685 = vpop.permute.xlu0 %684
        %v687 = vpack.c.bf16 %v540, %v540
        %v688 = vpack.c.bf16 %v679, %v679
        %v689 = vpack.c.bf16 %v682, %v682
        %v690 = vpack.c.bf16 %v685, %v685
        %692 = vrot.lane.b32.xlu0 %v599, 120
        %v693 = vpop.permute.xlu0 %692
        %695 = vrot.lane.b32.xlu0 %v599, 112
        %v696 = vpop.permute.xlu0 %695
        %698 = vrot.lane.b32.xlu0 %v599, 104
        %v699 = vpop.permute.xlu0 %698
        %v701 = vpack.c.bf16 %v599, %v599
        %v702 = vpack.c.bf16 %v693, %v693
        %v703 = vpack.c.bf16 %v696, %v696
        %v704 = vpack.c.bf16 %v699, %v699
        %vm705 = vcmask 64512
        %v707 = vsel %vm705, %v673, 0
        %v710 = vsel %vm705, %v687, 0
        %712 = vmatprep.subr.bf16.mxu0 0
        %713 = vmatpush1.bf16.xpose.msra.mxu0 %v710
        %714 = vmatprep.subr.bf16.mxu0 0
        %715 = vmatpush1.bf16.xpose.msra.mxu0 0
        %716 = vmatprep.subr.bf16.mxu0 0
        %717 = vmatpush1.bf16.xpose.msra.mxu0 0
        %718 = vmatprep.subr.bf16.mxu0 0
        %719 = vmatpush1.bf16.xpose.msra.mxu0 0
        %720 = vmatprep.subr.bf16.mxu0 0
        %721 = vmatpush1.bf16.xpose.msra.mxu0 0
        %722 = vmatprep.subr.bf16.mxu0 0
        %723 = vmatpush1.bf16.xpose.msra.mxu0 0
        %724 = vmatprep.subr.bf16.mxu0 0
        %725 = vmatpush1.bf16.xpose.msra.mxu0 0
        %726 = vmatprep.subr.bf16.mxu0 0
        %727 = vmatpush1.bf16.xpose.msra.mxu0 0
        %728 = vmatprep.subr.bf16.mxu0 0
        %729 = vmatpush1.bf16.xpose.msra.mxu0 0
        %730 = vmatprep.subr.bf16.mxu0 0
        %731 = vmatpush1.bf16.xpose.msra.mxu0 0
        %732 = vmatprep.subr.bf16.mxu0 0
        %733 = vmatpush1.bf16.xpose.msra.mxu0 0
        %734 = vmatprep.subr.bf16.mxu0 0
        %735 = vmatpush1.bf16.xpose.msra.mxu0 0
        %736 = vmatprep.subr.bf16.mxu0 0
        %737 = vmatpush1.bf16.xpose.msra.mxu0 0
        %738 = vmatprep.subr.bf16.mxu0 0
        %739 = vmatpush1.bf16.xpose.msra.mxu0 0
        %740 = vmatprep.subr.bf16.mxu0 0
        %741 = vmatpush1.bf16.xpose.msra.mxu0 0
        %742 = vmatprep.subr.bf16.mxu0 0
        %743 = vmatpush1.bf16.xpose.msra.mxu0 0
        %744 = vmatprep.mubr.bf16.mxu0 0
        %745 = vmatmul.mubr.bf16.gmra.mrb[0].mxu0 %v707
        %v746 = vpop.f32.mrb[0].mxu0
        %v747 = vadd.f32 0.0, %v746
        %v748 = vpop.f32.mrb[0].mxu0
        %v749 = vpop.f32.mrb[0].mxu0
        %v750 = vpop.f32.mrb[0].mxu0
        %751 = vdwg.mxu0
        %v753 = vsel %vm705, %v674, 0
        %v756 = vsel %vm705, %v688, 0
        %758 = vmatprep.subr.bf16.mxu0 0
        %759 = vmatpush1.bf16.xpose.msra.mxu0 %v756
        %760 = vmatprep.subr.bf16.mxu0 0
        %761 = vmatpush1.bf16.xpose.msra.mxu0 0
        %762 = vmatprep.subr.bf16.mxu0 0
        %763 = vmatpush1.bf16.xpose.msra.mxu0 0
        %764 = vmatprep.subr.bf16.mxu0 0
        %765 = vmatpush1.bf16.xpose.msra.mxu0 0
        %766 = vmatprep.subr.bf16.mxu0 0
        %767 = vmatpush1.bf16.xpose.msra.mxu0 0
        %768 = vmatprep.subr.bf16.mxu0 0
        %769 = vmatpush1.bf16.xpose.msra.mxu0 0
        %770 = vmatprep.subr.bf16.mxu0 0
        %771 = vmatpush1.bf16.xpose.msra.mxu0 0
        %772 = vmatprep.subr.bf16.mxu0 0
        %773 = vmatpush1.bf16.xpose.msra.mxu0 0
        %774 = vmatprep.subr.bf16.mxu0 0
        %775 = vmatpush1.bf16.xpose.msra.mxu0 0
        %776 = vmatprep.subr.bf16.mxu0 0
        %777 = vmatpush1.bf16.xpose.msra.mxu0 0
        %778 = vmatprep.subr.bf16.mxu0 0
        %779 = vmatpush1.bf16.xpose.msra.mxu0 0
        %780 = vmatprep.subr.bf16.mxu0 0
        %781 = vmatpush1.bf16.xpose.msra.mxu0 0
        %782 = vmatprep.subr.bf16.mxu0 0
        %783 = vmatpush1.bf16.xpose.msra.mxu0 0
        %784 = vmatprep.subr.bf16.mxu0 0
        %785 = vmatpush1.bf16.xpose.msra.mxu0 0
        %786 = vmatprep.subr.bf16.mxu0 0
        %787 = vmatpush1.bf16.xpose.msra.mxu0 0
        %788 = vmatprep.subr.bf16.mxu0 0
        %789 = vmatpush1.bf16.xpose.msra.mxu0 0
        %790 = vmatprep.mubr.bf16.mxu0 0
        %791 = vmatmul.mubr.bf16.gmra.mrb[0].mxu0 %v753
        %v792 = vpop.f32.mrb[0].mxu0
        %v793 = vadd.f32 0.0, %v792
        %v794 = vpop.f32.mrb[0].mxu0
        %v795 = vpop.f32.mrb[0].mxu0
        %v796 = vpop.f32.mrb[0].mxu0
        %797 = vdwg.mxu0
        %v799 = vsel %vm705, %v675, 0
        %v802 = vsel %vm705, %v689, 0
        %804 = vmatprep.subr.bf16.mxu0 0
        %805 = vmatpush1.bf16.xpose.msra.mxu0 %v802
        %806 = vmatprep.subr.bf16.mxu0 0
        %807 = vmatpush1.bf16.xpose.msra.mxu0 0
        %808 = vmatprep.subr.bf16.mxu0 0
        %809 = vmatpush1.bf16.xpose.msra.mxu0 0
        %810 = vmatprep.subr.bf16.mxu0 0
        %811 = vmatpush1.bf16.xpose.msra.mxu0 0
        %812 = vmatprep.subr.bf16.mxu0 0
        %813 = vmatpush1.bf16.xpose.msra.mxu0 0
        %814 = vmatprep.subr.bf16.mxu0 0
        %815 = vmatpush1.bf16.xpose.msra.mxu0 0
        %816 = vmatprep.subr.bf16.mxu0 0
        %817 = vmatpush1.bf16.xpose.msra.mxu0 0
        %818 = vmatprep.subr.bf16.mxu0 0
        %819 = vmatpush1.bf16.xpose.msra.mxu0 0
        %820 = vmatprep.subr.bf16.mxu0 0
        %821 = vmatpush1.bf16.xpose.msra.mxu0 0
        %822 = vmatprep.subr.bf16.mxu0 0
        %823 = vmatpush1.bf16.xpose.msra.mxu0 0
        %824 = vmatprep.subr.bf16.mxu0 0
        %825 = vmatpush1.bf16.xpose.msra.mxu0 0
        %826 = vmatprep.subr.bf16.mxu0 0
        %827 = vmatpush1.bf16.xpose.msra.mxu0 0
        %828 = vmatprep.subr.bf16.mxu0 0
        %829 = vmatpush1.bf16.xpose.msra.mxu0 0
        %830 = vmatprep.subr.bf16.mxu0 0
        %831 = vmatpush1.bf16.xpose.msra.mxu0 0
        %832 = vmatprep.subr.bf16.mxu0 0
        %833 = vmatpush1.bf16.xpose.msra.mxu0 0
        %834 = vmatprep.subr.bf16.mxu0 0
        %835 = vmatpush1.bf16.xpose.msra.mxu0 0
        %836 = vmatprep.mubr.bf16.mxu0 0
        %837 = vmatmul.mubr.bf16.gmra.mrb[0].mxu0 %v799
        %v838 = vpop.f32.mrb[0].mxu0
        %v839 = vadd.f32 0.0, %v838
        %v840 = vpop.f32.mrb[0].mxu0
        %v841 = vpop.f32.mrb[0].mxu0
        %v842 = vpop.f32.mrb[0].mxu0
        %843 = vdwg.mxu0
        %v845 = vsel %vm705, %v676, 0
        %v848 = vsel %vm705, %v690, 0
        %850 = vmatprep.subr.bf16.mxu0 0
        %851 = vmatpush1.bf16.xpose.msra.mxu0 %v848
        %852 = vmatprep.subr.bf16.mxu0 0
        %853 = vmatpush1.bf16.xpose.msra.mxu0 0
        %854 = vmatprep.subr.bf16.mxu0 0
        %855 = vmatpush1.bf16.xpose.msra.mxu0 0
        %856 = vmatprep.subr.bf16.mxu0 0
        %857 = vmatpush1.bf16.xpose.msra.mxu0 0
        %858 = vmatprep.subr.bf16.mxu0 0
        %859 = vmatpush1.bf16.xpose.msra.mxu0 0
        %860 = vmatprep.subr.bf16.mxu0 0
        %861 = vmatpush1.bf16.xpose.msra.mxu0 0
        %862 = vmatprep.subr.bf16.mxu0 0
        %863 = vmatpush1.bf16.xpose.msra.mxu0 0
        %864 = vmatprep.subr.bf16.mxu0 0
        %865 = vmatpush1.bf16.xpose.msra.mxu0 0
        %866 = vmatprep.subr.bf16.mxu0 0
        %867 = vmatpush1.bf16.xpose.msra.mxu0 0
        %868 = vmatprep.subr.bf16.mxu0 0
        %869 = vmatpush1.bf16.xpose.msra.mxu0 0
        %870 = vmatprep.subr.bf16.mxu0 0
        %871 = vmatpush1.bf16.xpose.msra.mxu0 0
        %872 = vmatprep.subr.bf16.mxu0 0
        %873 = vmatpush1.bf16.xpose.msra.mxu0 0
        %874 = vmatprep.subr.bf16.mxu0 0
        %875 = vmatpush1.bf16.xpose.msra.mxu0 0
        %876 = vmatprep.subr.bf16.mxu0 0
        %877 = vmatpush1.bf16.xpose.msra.mxu0 0
        %878 = vmatprep.subr.bf16.mxu0 0
        %879 = vmatpush1.bf16.xpose.msra.mxu0 0
        %880 = vmatprep.subr.bf16.mxu0 0
        %881 = vmatpush1.bf16.xpose.msra.mxu0 0
        %882 = vmatprep.mubr.bf16.mxu0 0
        %883 = vmatmul.mubr.bf16.gmra.mrb[0].mxu0 %v845
        %v884 = vpop.f32.mrb[0].mxu0
        %v885 = vadd.f32 0.0, %v884
        %v886 = vpop.f32.mrb[0].mxu0
        %v887 = vpop.f32.mrb[0].mxu0
        %v888 = vpop.f32.mrb[0].mxu0
        %889 = vdwg.mxu0
        %v890 = vsel %vm705, %v747, -inf
        %891 = vmax.xlane.f32.xlu0 %v890
        %v892 = vpop.xlane.xlu0 %891
        %v893 = vsel %vm705, %v793, -inf
        %894 = vmax.xlane.f32.xlu0 %v893
        %v895 = vpop.xlane.xlu0 %894
        %v896 = vsel %vm705, %v839, -inf
        %897 = vmax.xlane.f32.xlu0 %v896
        %v898 = vpop.xlane.xlu0 %897
        %v899 = vsel %vm705, %v885, -inf
        %900 = vmax.xlane.f32.xlu0 %v899
        %v901 = vpop.xlane.xlu0 %900
        %v902 = vsub.f32 %v747, %v892
        %v903 = vsub.f32 %v793, %v895
        %v904 = vsub.f32 %v839, %v898
        %v905 = vsub.f32 %v885, %v901
        %v906 = vmul.f32 %v902, 1.442695
        %v907 = vpow.pop %v906
        %v908 = vmul.f32 %v903, 1.442695
        %v909 = vpow.pop %v908
        %v910 = vmul.f32 %v904, 1.442695
        %v911 = vpow.pop %v910
        %v912 = vmul.f32 %v905, 1.442695
        %v913 = vpow.pop %v912
        %v914 = vsel %vm705, %v907, 0.0
        %915 = vadd.xlane.f32.xlu0 %v914
        %v916 = vpop.xlane.xlu0 %915
        %v917 = vsel %vm705, %v909, 0.0
        %918 = vadd.xlane.f32.xlu0 %v917
        %v919 = vpop.xlane.xlu0 %918
        %v920 = vsel %vm705, %v911, 0.0
        %921 = vadd.xlane.f32.xlu0 %v920
        %v922 = vpop.xlane.xlu0 %921
        %v923 = vsel %vm705, %v913, 0.0
        %924 = vadd.xlane.f32.xlu0 %v923
        %v925 = vpop.xlane.xlu0 %924
        %v926 = vrcp.pop %v916
        %v927 = vrcp.pop %v919
        %v928 = vrcp.pop %v922
        %v929 = vrcp.pop %v925
        %v930 = vmul.f32 %v907, %v926
        %v931 = vmul.f32 %v909, %v927
        %v932 = vmul.f32 %v911, %v928
        %v933 = vmul.f32 %v913, %v929
        %934 = vst.msk [vmem:[%s477] sm:$0xff] %vm705, %v930
        %v935 = vpack.c.bf16 %v930, %v930
        %v936 = vpack.c.bf16 %v931, %v931
        %v937 = vpack.c.bf16 %v932, %v932
        %v938 = vpack.c.bf16 %v933, %v933
        %v940 = vsel %vm705, %v935, 0
        %vm942 = vcmask 1043456
        %v944 = vsel %vm942, %v701, 0
        %946 = vmatprep.subr.bf16.mxu0 0
        %947 = vmatpush1.bf16.msra.mxu0 %v944
        %948 = vmatprep.subr.bf16.mxu0 0
        %949 = vmatpush1.bf16.msra.mxu0 0
        %950 = vmatprep.subr.bf16.mxu0 0
        %951 = vmatpush1.bf16.msra.mxu0 0
        %952 = vmatprep.subr.bf16.mxu0 0
        %953 = vmatpush1.bf16.msra.mxu0 0
        %954 = vmatprep.subr.bf16.mxu0 0
        %955 = vmatpush1.bf16.msra.mxu0 0
        %956 = vmatprep.subr.bf16.mxu0 0
        %957 = vmatpush1.bf16.msra.mxu0 0
        %958 = vmatprep.subr.bf16.mxu0 0
        %959 = vmatpush1.bf16.msra.mxu0 0
        %960 = vmatprep.subr.bf16.mxu0 0
        %961 = vmatpush1.bf16.msra.mxu0 0
        %962 = vmatprep.subr.bf16.mxu0 0
        %963 = vmatpush1.bf16.msra.mxu0 0
        %964 = vmatprep.subr.bf16.mxu0 0
        %965 = vmatpush1.bf16.msra.mxu0 0
        %966 = vmatprep.subr.bf16.mxu0 0
        %967 = vmatpush1.bf16.msra.mxu0 0
        %968 = vmatprep.subr.bf16.mxu0 0
        %969 = vmatpush1.bf16.msra.mxu0 0
        %970 = vmatprep.subr.bf16.mxu0 0
        %971 = vmatpush1.bf16.msra.mxu0 0
        %972 = vmatprep.subr.bf16.mxu0 0
        %973 = vmatpush1.bf16.msra.mxu0 0
        %974 = vmatprep.subr.bf16.mxu0 0
        %975 = vmatpush1.bf16.msra.mxu0 0
        %976 = vmatprep.subr.bf16.mxu0 0
        %977 = vmatpush1.bf16.msra.mxu0 0
        %978 = vmatprep.mubr.bf16.mxu0 0
        %979 = vmatmul.mubr.bf16.gmra.mrb[0].mxu0 %v940
        %v980 = vpop.f32.mrb[0].mxu0
        %v981 = vadd.f32 0.0, %v980
        %v982 = vpop.f32.mrb[0].mxu0
        %v983 = vpop.f32.mrb[0].mxu0
        %v984 = vpop.f32.mrb[0].mxu0
        %985 = vdwg.mxu0
        %v987 = vsel %vm705, %v936, 0
        %v990 = vsel %vm942, %v702, 0
        %992 = vmatprep.subr.bf16.mxu0 0
        %993 = vmatpush1.bf16.msra.mxu0 %v990
        %994 = vmatprep.subr.bf16.mxu0 0
        %995 = vmatpush1.bf16.msra.mxu0 0
        %996 = vmatprep.subr.bf16.mxu0 0
        %997 = vmatpush1.bf16.msra.mxu0 0
        %998 = vmatprep.subr.bf16.mxu0 0
        %999 = vmatpush1.bf16.msra.mxu0 0
        %1000 = vmatprep.subr.bf16.mxu0 0
        %1001 = vmatpush1.bf16.msra.mxu0 0
        %1002 = vmatprep.subr.bf16.mxu0 0
        %1003 = vmatpush1.bf16.msra.mxu0 0
        %1004 = vmatprep.subr.bf16.mxu0 0
        %1005 = vmatpush1.bf16.msra.mxu0 0
        %1006 = vmatprep.subr.bf16.mxu0 0
        %1007 = vmatpush1.bf16.msra.mxu0 0
        %1008 = vmatprep.subr.bf16.mxu0 0
        %1009 = vmatpush1.bf16.msra.mxu0 0
        %1010 = vmatprep.subr.bf16.mxu0 0
        %1011 = vmatpush1.bf16.msra.mxu0 0
        %1012 = vmatprep.subr.bf16.mxu0 0
        %1013 = vmatpush1.bf16.msra.mxu0 0
        %1014 = vmatprep.subr.bf16.mxu0 0
        %1015 = vmatpush1.bf16.msra.mxu0 0
        %1016 = vmatprep.subr.bf16.mxu0 0
        %1017 = vmatpush1.bf16.msra.mxu0 0
        %1018 = vmatprep.subr.bf16.mxu0 0
        %1019 = vmatpush1.bf16.msra.mxu0 0
        %1020 = vmatprep.subr.bf16.mxu0 0
        %1021 = vmatpush1.bf16.msra.mxu0 0
        %1022 = vmatprep.subr.bf16.mxu0 0
        %1023 = vmatpush1.bf16.msra.mxu0 0
        %1024 = vmatprep.mubr.bf16.mxu0 0
        %1025 = vmatmul.mubr.bf16.gmra.mrb[0].mxu0 %v987
        %v1026 = vpop.f32.mrb[0].mxu0
        %v1027 = vadd.f32 0.0, %v1026
        %v1028 = vpop.f32.mrb[0].mxu0
        %v1029 = vpop.f32.mrb[0].mxu0
        %v1030 = vpop.f32.mrb[0].mxu0
        %1031 = vdwg.mxu0
        %v1033 = vsel %vm705, %v937, 0
        %v1036 = vsel %vm942, %v703, 0
        %1038 = vmatprep.subr.bf16.mxu0 0
        %1039 = vmatpush1.bf16.msra.mxu0 %v1036
        %1040 = vmatprep.subr.bf16.mxu0 0
        %1041 = vmatpush1.bf16.msra.mxu0 0
        %1042 = vmatprep.subr.bf16.mxu0 0
        %1043 = vmatpush1.bf16.msra.mxu0 0
        %1044 = vmatprep.subr.bf16.mxu0 0
        %1045 = vmatpush1.bf16.msra.mxu0 0
        %1046 = vmatprep.subr.bf16.mxu0 0
        %1047 = vmatpush1.bf16.msra.mxu0 0
        %1048 = vmatprep.subr.bf16.mxu0 0
        %1049 = vmatpush1.bf16.msra.mxu0 0
        %1050 = vmatprep.subr.bf16.mxu0 0
        %1051 = vmatpush1.bf16.msra.mxu0 0
        %1052 = vmatprep.subr.bf16.mxu0 0
        %1053 = vmatpush1.bf16.msra.mxu0 0
        %1054 = vmatprep.subr.bf16.mxu0 0
        %1055 = vmatpush1.bf16.msra.mxu0 0
        %1056 = vmatprep.subr.bf16.mxu0 0
        %1057 = vmatpush1.bf16.msra.mxu0 0
        %1058 = vmatprep.subr.bf16.mxu0 0
        %1059 = vmatpush1.bf16.msra.mxu0 0
        %1060 = vmatprep.subr.bf16.mxu0 0
        %1061 = vmatpush1.bf16.msra.mxu0 0
        %1062 = vmatprep.subr.bf16.mxu0 0
        %1063 = vmatpush1.bf16.msra.mxu0 0
        %1064 = vmatprep.subr.bf16.mxu0 0
        %1065 = vmatpush1.bf16.msra.mxu0 0
        %1066 = vmatprep.subr.bf16.mxu0 0
        %1067 = vmatpush1.bf16.msra.mxu0 0
        %1068 = vmatprep.subr.bf16.mxu0 0
        %1069 = vmatpush1.bf16.msra.mxu0 0
        %1070 = vmatprep.mubr.bf16.mxu0 0
        %1071 = vmatmul.mubr.bf16.gmra.mrb[0].mxu0 %v1033
        %v1072 = vpop.f32.mrb[0].mxu0
        %v1073 = vadd.f32 0.0, %v1072
        %v1074 = vpop.f32.mrb[0].mxu0
        %v1075 = vpop.f32.mrb[0].mxu0
        %v1076 = vpop.f32.mrb[0].mxu0
        %1077 = vdwg.mxu0
        %v1079 = vsel %vm705, %v938, 0
        %v1082 = vsel %vm942, %v704, 0
        %1084 = vmatprep.subr.bf16.mxu0 0
        %1085 = vmatpush1.bf16.msra.mxu0 %v1082
        %1086 = vmatprep.subr.bf16.mxu0 0
        %1087 = vmatpush1.bf16.msra.mxu0 0
        %1088 = vmatprep.subr.bf16.mxu0 0
        %1089 = vmatpush1.bf16.msra.mxu0 0
        %1090 = vmatprep.subr.bf16.mxu0 0
        %1091 = vmatpush1.bf16.msra.mxu0 0
        %1092 = vmatprep.subr.bf16.mxu0 0
        %1093 = vmatpush1.bf16.msra.mxu0 0
        %1094 = vmatprep.subr.bf16.mxu0 0
        %1095 = vmatpush1.bf16.msra.mxu0 0
        %1096 = vmatprep.subr.bf16.mxu0 0
        %1097 = vmatpush1.bf16.msra.mxu0 0
        %1098 = vmatprep.subr.bf16.mxu0 0
        %1099 = vmatpush1.bf16.msra.mxu0 0
        %1100 = vmatprep.subr.bf16.mxu0 0
        %1101 = vmatpush1.bf16.msra.mxu0 0
        %1102 = vmatprep.subr.bf16.mxu0 0
        %1103 = vmatpush1.bf16.msra.mxu0 0
        %1104 = vmatprep.subr.bf16.mxu0 0
        %1105 = vmatpush1.bf16.msra.mxu0 0
        %1106 = vmatprep.subr.bf16.mxu0 0
        %1107 = vmatpush1.bf16.msra.mxu0 0
        %1108 = vmatprep.subr.bf16.mxu0 0
        %1109 = vmatpush1.bf16.msra.mxu0 0
        %1110 = vmatprep.subr.bf16.mxu0 0
        %1111 = vmatpush1.bf16.msra.mxu0 0
        %1112 = vmatprep.subr.bf16.mxu0 0
        %1113 = vmatpush1.bf16.msra.mxu0 0
        %1114 = vmatprep.subr.bf16.mxu0 0
        %1115 = vmatpush1.bf16.msra.mxu0 0
        %1116 = vmatprep.mubr.bf16.mxu0 0
        %1117 = vmatmul.mubr.bf16.gmra.mrb[0].mxu0 %v1079
        %v1118 = vpop.f32.mrb[0].mxu0
        %v1119 = vadd.f32 0.0, %v1118
        %v1120 = vpop.f32.mrb[0].mxu0
        %v1121 = vpop.f32.mrb[0].mxu0
        %v1122 = vpop.f32.mrb[0].mxu0
        %1123 = vdwg.mxu0
        %1125 = vrot.lane.b32.xlu0 %v1027, 8
        %v1126 = vpop.permute.xlu0 %1125
        %1129 = vrot.lane.b32.xlu0 %v1073, 16
        %v1130 = vpop.permute.xlu0 %1129
        %1133 = vrot.lane.b32.xlu0 %v1119, 24
        %v1134 = vpop.permute.xlu0 %1133
        %v1136 = vsel %vm705, %v981, %v1126
        %vm1137 = vcmask 130048
        %v1138 = vsel %vm1137, %v1136, %v1130
        %vm1139 = vcmask 195584
        %v1140 = vsel %vm1139, %v1138, %v1134
        %v1141 = vld [vmem:[%s420] sm:$0xff]
        %v1142 = vld [vmem:[%s6] sm:$0x1]
        %v1143 = vld [vmem:[%s7] sm:$0x1]
        %v1144 = vadd.f32 %v1140, %v1141
        %v1145 = vsel %vm501, %v1144, 0.0
        %1146 = vadd.xlane.f32.xlu0 %v1145
        %v1147 = vpop.xlane.xlu0 %1146
        %v1148 = vrcp.pop 32.0
        %v1149 = vmul.f32 %v1147, %v1148
        %v1150 = vsub.f32 %v1144, %v1149
        %v1151 = vmul.f32 %v1150, %v1150
        %v1152 = vsel %vm501, %v1151, 0.0
        %1153 = vadd.xlane.f32.xlu0 %v1152
        %v1154 = vpop.xlane.xlu0 %1153
        %v1155 = vrcp.pop 31.0
        %v1156 = vmul.f32 %v1154, %v1155
        %v1157 = vrsqrt.pop %v1156
        %v1158 = vmul.f32 %v1156, %v1157
        %vm1159 = vcmp.eq.f32.partialorder %v1156, inf
        %v1160 = vsel %vm1159, %v1156, %v1158
        %vm1161 = vcmp.eq.f32.partialorder %v1156, 0.0
        %v1162 = vand.u32 %v1156, 2147483648
        %v1163 = vsel %vm1161, %v1162, %v1160
        %v1164 = vadd.f32 %v1163, 0.001
        %v1165 = vrcp.pop %v1164
        %v1166 = vmul.f32 %v1150, %v1165
        %v1168 = vlaneseq
        %v1169 = vshrl.u32 %v1168, 7
        %v1170 = vsub.s32 0, %v1169
        %v1171 = vrot.slane %v1142, %v1170
        %v1173 = vmul.f32 %v1166, %v1171
        %v1175 = vlaneseq
        %v1176 = vshrl.u32 %v1175, 7
        %v1177 = vsub.s32 0, %v1176
        %v1178 = vrot.slane %v1143, %v1177
        %v1180 = vadd.f32 %v1173, %v1178
        %1181 = vst.msk [vmem:[%s470] sm:$0xff] %vm501, %v1180
        %s1182 = sand.u32 %s241, 1
        %s1183 = scalar_lea.sflag [#allocation4], %s1182
        %s1184 = sand.u32 %s241, 1
        %s1185 = smul.addr %s1184, 8
        %s1186 = scalar_lea.vmem [#allocation11], %s1185
        %s1187 = sand.u32 %s269, 1
        %s1188 = scalar_lea.sflag [#allocation13], %s1187
        %s1189 = sand.u32 %s269, 1
        %s1190 = smul.addr %s1189, 8
        %s1191 = scalar_lea.vmem [#allocation12], %s1190
        // Predicated region
        $region73: #{tpu_custom_call.1} parent=51 // pred_check
          %p1192 = pneg %p251
        $region74: #{tpu_custom_call.1} parent=51 // pred_check_branch
          %1194 = sbr.rel (%p1192) target = $region76
        $region75: #{tpu_custom_call.1} parent=51 // pred_region
          %s1196 = ssub.s32 128, 128
          %1197 = vsyncadd %s1183, %s1196
          %s1198 = sadd.s32 %s39, %s38
          %s1199 = smul.addr %s1198, 128
          %s1200 = scalar_lea.hbm %s8, %s1199
          %s1202 = sshll.u32 %s1186, 4
          %s1203 = int_to_ptr.vmem [resolvable:$true] %s1202
          %1205 = dma.vmem_to_hbm [thread:$0]  %s1203, 128, %s1200, %s1183
        $region76: #{tpu_custom_call.1} parent=51 // pred_fallthru
          _
        // Predicated region
        $region77: #{tpu_custom_call.1} parent=51 // pred_check
          %p1206 = pneg %p279
        $region78: #{tpu_custom_call.1} parent=51 // pred_check_branch
          %1208 = sbr.rel (%p1206) target = $region80
        $region79: #{tpu_custom_call.1} parent=51 // pred_region
          %s1210 = ssub.s32 128, 128
          %1211 = vsyncadd %s1188, %s1210
          %s1212 = sadd.s32 %s39, %s38
          %s1213 = smul.addr %s1212, 128
          %s1214 = scalar_lea.hbm %s9, %s1213
          %s1216 = sshll.u32 %s1191, 4
          %s1217 = int_to_ptr.vmem [resolvable:$true] %s1216
          %1219 = dma.vmem_to_hbm [thread:$0]  %s1217, 128, %s1214, %s1188
        $region80: #{tpu_custom_call.1} parent=51 // pred_fallthru
          _
      $region52: #{tpu_custom_call.1} parent=5 // pred_fallthru
        _
      %p1220 = scmp.le.s32.totalorder 2, %s29
      // Predicated region
      $region81: #{tpu_custom_call.1} parent=5 // pred_check
        %p1221 = pneg %p1220
      $region82: #{tpu_custom_call.1} parent=5 // pred_check_branch
        %1223 = sbr.rel (%p1221) target = $region84
      $region83: #{tpu_custom_call.1} parent=5 // pred_region
        %s1224 = ssub.s32 %s29, 2
        // Predicated region
        $region85: #{tpu_custom_call.1} parent=83 // pred_check
          %p1225 = pneg %p257
        $region86: #{tpu_custom_call.1} parent=83 // pred_check_branch
          %1227 = sbr.rel (%p1225) target = $region88
        $region87: #{tpu_custom_call.1} parent=83 // pred_region
          %s1228 = sand.u32 %s242, 1
          %s1229 = scalar_lea.sflag [#allocation4], %s1228
          %s1230 = sand.u32 %s242, 1
          %s1231 = smul.addr %s1230, 8
          %s1232 = scalar_lea.vmem [#allocation11], %s1231
          %1233 = dma.done %s1229, 128
        $region88: #{tpu_custom_call.1} parent=83 // pred_fallthru
          _
        // Predicated region
        $region89: #{tpu_custom_call.1} parent=83 // pred_check
          %p1234 = pneg %p285
        $region90: #{tpu_custom_call.1} parent=83 // pred_check_branch
          %1236 = sbr.rel (%p1234) target = $region92
        $region91: #{tpu_custom_call.1} parent=83 // pred_region
          %s1237 = sand.u32 %s270, 1
          %s1238 = scalar_lea.sflag [#allocation13], %s1237
          %s1239 = sand.u32 %s270, 1
          %s1240 = smul.addr %s1239, 8
          %s1241 = scalar_lea.vmem [#allocation12], %s1240
          %1242 = dma.done %s1238, 128
        $region92: #{tpu_custom_call.1} parent=83 // pred_fallthru
          _
      $region84: #{tpu_custom_call.1} parent=5 // pred_fallthru
        _
    $region6: #{tpu_custom_call.1} parent=1 // loop_footer
      %s33 = sadd.s32 1, %s29
    $region7: #{tpu_custom_call.1} parent=1 // loop_footer_branch
      %28 = sbr.rel target = $region3
    $region8: #{tpu_custom_call.1} parent=1 // loop_exit
      _
    %1243 = vsyncpa [#allocation3], 1
    %s1244 = scalar_lea.sflag [#allocation3], 1
    %1245 = vsyncpa %s1244, 1
    %1246 = vsyncpa [#allocation6], 1
    %s1247 = scalar_lea.sflag [#allocation6], 1
    %1248 = vsyncpa %s1247, 1
    %1249 = vsyncpa [#allocation9], 1
    %1250 = vsyncpa [#allocation4], 1
    %s1251 = scalar_lea.sflag [#allocation4], 1
    %1252 = vsyncpa %s1251, 1
    %1253 = vsyncpa [#allocation13], 1
    %s1254 = scalar_lea.sflag [#allocation13], 1
    %1255 = vsyncpa %s1254, 1

// kernel: tpu_custom_call.1
$region0: #{tpu_custom_call.1}
  #allocation0 [shape = 'u32[]', space=smem, size = 0x4, offset = 0x4, fixed_abs, tag = 'smem constant byte address 0x4 - core index']
  #allocation1 [shape = 'u32[144,128]{1,0:T(1,128)}', space=vmem, size = 0x12000, scoped, tag = 'internal scratch']
  %s0 = inlined_call_operand.hbm [shape: f32[2,8,32], index: 0, kind: input, shape index: {}]
  %s1 = inlined_call_operand.hbm [shape: f32[2,8,32], index: 1, kind: input, shape index: {}]
  %s2 = inlined_call_operand.hbm [shape: f32[2,8,32], index: 2, kind: input, shape index: {}]
  %s3 = inlined_call_operand.hbm [shape: bf16[32,32], index: 3, kind: input, shape index: {}]
  %s4 = inlined_call_operand.hbm [shape: bf16[32,32], index: 4, kind: input, shape index: {}]
  %s5 = inlined_call_operand.vmem [shape: bf16[32,32], index: 5, kind: input, shape index: {}]
  %s6 = inlined_call_operand.vmem [shape: f32[1,32], index: 6, kind: input, shape index: {}]
  %s7 = inlined_call_operand.vmem [shape: f32[1,32], index: 7, kind: input, shape index: {}]
  %s8 = inlined_call_operand.hbm [shape: f32[2,8,32], index: 8, kind: output, shape index: {0}]
  %s9 = inlined_call_operand.hbm [shape: f32[2,8,8], index: 9, kind: output, shape index: {1}]
  %10 = xla_tuple %s8, %s9
  %s11 = sld [smem:[#allocation0]]
  $region93: #{tpu_custom_call.1} parent=0
    _
  %s13 = ssub.s32 1, %s11
  %s14 = scalar_select 0, %s13, %s11
  $region1: #{tpu_custom_call.1} parent=0
    #allocation2 [shape = 'u8[8192]{0}', space=vmem, size = 0x2000, scoped, tag = 'input window, operand 0']
    #allocation3 [shape = 's32[2]{0}', space=sflag, size = 0x8, scoped, tag = 'scoped memory for tpu_custom_call.1']
    #allocation4 [shape = 's32[2]{0}', space=sflag, size = 0x8, scoped, tag = 'scoped memory for tpu_custom_call.1']
    #allocation5 [shape = 'u8[8192]{0}', space=vmem, size = 0x2000, scoped, tag = 'input window, operand 1']
    #allocation6 [shape = 's32[2]{0}', space=sflag, size = 0x8, scoped, tag = 'scoped memory for tpu_custom_call.1']
    #allocation7 [shape = 'u8[8192]{0}', space=vmem, size = 0x2000, scoped, tag = 'input window, operand 2']
    #allocation8 [shape = 'u8[8192]{0}', space=vmem, size = 0x2000, scoped, tag = 'input window, operand 3, single buffered']
    #allocation9 [shape = 's32[1]{0}', space=sflag, size = 0x4, scoped, tag = 'scoped memory for tpu_custom_call.1']
    #allocation10 [shape = 'u8[8192]{0}', space=vmem, size = 0x2000, scoped, tag = 'input window, operand 4, single buffered']
    #allocation11 [shape = 'u8[8192]{0}', space=vmem, size = 0x2000, scoped, tag = 'output window, operand 0']
    #allocation12 [shape = 'u8[8192]{0}', space=vmem, size = 0x2000, scoped, tag = 'output window, operand 1']
    #allocation13 [shape = 's32[2]{0}', space=sflag, size = 0x8, scoped, tag = 'scoped memory for tpu_custom_call.1']
    %15 = vsyncpa [#allocation3], 0
    %s16 = scalar_lea.sflag [#allocation3], 1
    %17 = vsyncpa %s16, 0
    %18 = vsyncpa [#allocation6], 0
    %s19 = scalar_lea.sflag [#allocation6], 1
    %20 = vsyncpa %s19, 0
    %21 = vsyncpa [#allocation9], 0
    %22 = vsyncpa [#allocation4], 0
    %s23 = scalar_lea.sflag [#allocation4], 1
    %24 = vsyncpa %s23, 0
    %25 = vsyncpa [#allocation13], 0
    %s26 = scalar_lea.sflag [#allocation13], 1
    %27 = vsyncpa %s26, 0
    loop: start=0, step=1, limit=4
    $region2: #{tpu_custom_call.1} parent=1 // loop_pre_header
      _
    $region3: #{tpu_custom_call.1} parent=1 // loop_header
      %s29 = sphi 0, %s33
      %p30 = scmp.ge.s32.totalorder %s29, 4
      %s36 = sphi 0, %s48
      %s37 = sphi 0, %s44
      %s38 = sphi 0, %s36
      %s39 = sphi 0, %s37
      %s40 = sphi 0, %s38
      %s41 = sphi 0, %s39
      %s51 = sphi 0, %s53
      %s54 = sphi 0, %s51
      %s55 = sphi 0, %s54
      %s71 = sphi 0, %s55
      %s77 = sphi 0, %s79
      %s80 = sphi 0, %s77
      %s81 = sphi 0, %s80
      %s97 = sphi 0, %s81
      %s105 = sphi 0, %s107
      %s108 = sphi 0, %s105
      %s109 = sphi 0, %s108
      %s125 = sphi 0, %s109
      %s129 = sphi 0, %s129
      %s131 = sphi 0, %s129
      %s132 = sphi 0, %s131
      %s146 = sphi 0, %s132
      %s150 = sphi 0, %s150
      %s152 = sphi 0, %s150
      %s153 = sphi 0, %s152
      %s167 = sphi 0, %s153
      %s171 = sphi 0, %s171
      %s173 = sphi 0, %s171
      %s174 = sphi 0, %s173
      %s188 = sphi 0, %s174
      %s192 = sphi 0, %s192
      %s194 = sphi 0, %s192
      %s195 = sphi 0, %s194
      %s209 = sphi 0, %s195
      %s213 = sphi 0, %s213
      %s215 = sphi 0, %s213
      %s216 = sphi 0, %s215
      %s230 = sphi 0, %s216
      %s238 = sphi 0, %s240
      %s241 = sphi 0, %s238
      %s242 = sphi 0, %s241
      %s258 = sphi 0, %s242
      %s266 = sphi 0, %s268
      %s269 = sphi 0, %s266
      %s270 = sphi 0, %s269
      %s286 = sphi 0, %s270
    $region4: #{tpu_custom_call.1} parent=1 // loop_header_branch
      %32 = sbr.rel (%p30) target = $region8
    $region5: #{tpu_custom_call.1} parent=1 // loop_body
      %s34 = ssub.s32 %s29, 1
      %s35 = ssub.s32 %s29, 2
      %s42 = sadd.s32 1, %s37
      %p43 = scmp.ge.s32.totalorder %s42, 1
      %s44 = scalar_select %p43, 0, %s42
      %s45 = sadd.s32 1, %s36
      %s46 = scalar_select %p43, %s45, %s36
      %p47 = scmp.ge.s32.totalorder %s46, 2
      %s48 = scalar_select %p47, 0, %s46
      %s49 = ssub.s32 %s36, %s48
      %p50 = scmp.eq.s32.totalorder %s49, 0
      %s52 = sadd.s32 %s51, 1
      %s53 = scalar_select %p50, %s51, %s52
      %p56 = pneg %p50
      %p57 = scmp.eq.s32.totalorder %s29, 1
      %p58 = por %p56, %p57
      %p59 = scmp.ne.s32.totalorder %s51, %s54
      %p60 = scmp.eq.s32.totalorder %s29, 0
      %p61 = por %p59, %p60
      %p62 = scmp.ne.s32.totalorder %s51, %s54
      %p63 = scmp.eq.s32.totalorder %s34, 1
      %p64 = por %p62, %p63
      %p65 = scmp.ne.s32.totalorder %s54, %s55
      %p66 = scmp.eq.s32.totalorder %s34, 0
      %p67 = por %p65, %p66
      %p68 = scmp.ne.s32.totalorder %s54, %s55
      %p69 = scmp.eq.s32.totalorder %s35, 1
      %p70 = por %p68, %p69
      %p72 = scmp.ne.s32.totalorder %s55, %s71
      %p73 = scmp.eq.s32.totalorder %s35, 0
      %p74 = por %p72, %p73
      %s75 = ssub.s32 %s36, %s48
      %p76 = scmp.eq.s32.totalorder %s75, 0
      %s78 = sadd.s32 %s77, 1
      %s79 = scalar_select %p76, %s77, %s78
      %p82 = pneg %p76
      %p83 = scmp.eq.s32.totalorder %s29, 1
      %p84 = por %p82, %p83
      %p85 = scmp.ne.s32.totalorder %s77, %s80
      %p86 = scmp.eq.s32.totalorder %s29, 0
      %p87 = por %p85, %p86
      %p88 = scmp.ne.s32.totalorder %s77, %s80
      %p89 = scmp.eq.s32.totalorder %s34, 1
      %p90 = por %p88, %p89
      %p91 = scmp.ne.s32.totalorder %s80, %s81
      %p92 = scmp.eq.s32.totalorder %s34, 0
      %p93 = por %p91, %p92
      %p94 = scmp.ne.s32.totalorder %s80, %s81
      %p95 = scmp.eq.s32.totalorder %s35, 1
      %p96 = por %p94, %p95
      %p98 = scmp.ne.s32.totalorder %s81, %s97
      %p99 = scmp.eq.s32.totalorder %s35, 0
      %p100 = por %p98, %p99
      %s101 = ssub.s32 %s36, %s48
      %s102 = ssub.s32 %s37, %s44
      %s103 = sor.u32 %s101, %s102
      %p104 = scmp.eq.s32.totalorder %s103, 0
      %s106 = sadd.s32 %s105, 1
      %s107 = scalar_select %p104, %s105, %s106
      %p110 = pneg %p104
      %p111 = scmp.eq.s32.totalorder %s29, 1
      %p112 = por %p110, %p111
      %p113 = scmp.ne.s32.totalorder %s105, %s108
      %p114 = scmp.eq.s32.totalorder %s29, 0
      %p115 = por %p113, %p114
      %p116 = scmp.ne.s32.totalorder %s105, %s108
      %p117 = scmp.eq.s32.totalorder %s34, 1
      %p118 = por %p116, %p117
      %p119 = scmp.ne.s32.totalorder %s108, %s109
      %p120 = scmp.eq.s32.totalorder %s34, 0
      %p121 = por %p119, %p120
      %p122 = scmp.ne.s32.totalorder %s108, %s109
      %p123 = scmp.eq.s32.totalorder %s35, 1
      %p124 = por %p122, %p123
      %p126 = scmp.ne.s32.totalorder %s109, %s125
      %p127 = scmp.eq.s32.totalorder %s35, 0
      %p128 = por %p126, %p127
      %s130 = sadd.s32 %s129, 1
      %p133 = scmp.eq.s32.totalorder %s29, 1
      %p134 = scmp.ne.s32.totalorder %s129, %s131
      %p135 = scmp.eq.s32.totalorder %s29, 0
      %p136 = por %p134, %p135
      %p137 = scmp.ne.s32.totalorder %s129, %s131
      %p138 = scmp.eq.s32.totalorder %s34, 1
      %p139 = por %p137, %p138
      %p140 = scmp.ne.s32.totalorder %s131, %s132
      %p141 = scmp.eq.s32.totalorder %s34, 0
      %p142 = por %p140, %p141
      %p143 = scmp.ne.s32.totalorder %s131, %s132
      %p144 = scmp.eq.s32.totalorder %s35, 1
      %p145 = por %p143, %p144
      %p147 = scmp.ne.s32.totalorder %s132, %s146
      %p148 = scmp.eq.s32.totalorder %s35, 0
      %p149 = por %p147, %p148
      %s151 = sadd.s32 %s150, 1
      %p154 = scmp.eq.s32.totalorder %s29, 1
      %p155 = scmp.ne.s32.totalorder %s150, %s152
      %p156 = scmp.eq.s32.totalorder %s29, 0
      %p157 = por %p155, %p156
      %p158 = scmp.ne.s32.totalorder %s150, %s152
      %p159 = scmp.eq.s32.totalorder %s34, 1
      %p160 = por %p158, %p159
      %p161 = scmp.ne.s32.totalorder %s152, %s153
      %p162 = scmp.eq.s32.totalorder %s34, 0
      %p163 = por %p161, %p162
      %p164 = scmp.ne.s32.totalorder %s152, %s153
      %p165 = scmp.eq.s32.totalorder %s35, 1
      %p166 = por %p164, %p165
      %p168 = scmp.ne.s32.totalorder %s153, %s167
      %p169 = scmp.eq.s32.totalorder %s35, 0
      %p170 = por %p168, %p169
      %s172 = sadd.s32 %s171, 1
      %p175 = scmp.eq.s32.totalorder %s29, 1
      %p176 = scmp.ne.s32.totalorder %s171, %s173
      %p177 = scmp.eq.s32.totalorder %s29, 0
      %p178 = por %p176, %p177
      %p179 = scmp.ne.s32.totalorder %s171, %s173
      %p180 = scmp.eq.s32.totalorder %s34, 1
      %p181 = por %p179, %p180
      %p182 = scmp.ne.s32.totalorder %s173, %s174
      %p183 = scmp.eq.s32.totalorder %s34, 0
      %p184 = por %p182, %p183
      %p185 = scmp.ne.s32.totalorder %s173, %s174
      %p186 = scmp.eq.s32.totalorder %s35, 1
      %p187 = por %p185, %p186
      %p189 = scmp.ne.s32.totalorder %s174, %s188
      %p190 = scmp.eq.s32.totalorder %s35, 0
      %p191 = por %p189, %p190
      %s193 = sadd.s32 %s192, 1
      %p196 = scmp.eq.s32.totalorder %s29, 1
      %p197 = scmp.ne.s32.totalorder %s192, %s194
      %p198 = scmp.eq.s32.totalorder %s29, 0
      %p199 = por %p197, %p198
      %p200 = scmp.ne.s32.totalorder %s192, %s194
      %p201 = scmp.eq.s32.totalorder %s34, 1
      %p202 = por %p200, %p201
      %p203 = scmp.ne.s32.totalorder %s194, %s195
      %p204 = scmp.eq.s32.totalorder %s34, 0
      %p205 = por %p203, %p204
      %p206 = scmp.ne.s32.totalorder %s194, %s195
      %p207 = scmp.eq.s32.totalorder %s35, 1
      %p208 = por %p206, %p207
      %p210 = scmp.ne.s32.totalorder %s195, %s209
      %p211 = scmp.eq.s32.totalorder %s35, 0
      %p212 = por %p210, %p211
      %s214 = sadd.s32 %s213, 1
      %p217 = scmp.eq.s32.totalorder %s29, 1
      %p218 = scmp.ne.s32.totalorder %s213, %s215
      %p219 = scmp.eq.s32.totalorder %s29, 0
      %p220 = por %p218, %p219
      %p221 = scmp.ne.s32.totalorder %s213, %s215
      %p222 = scmp.eq.s32.totalorder %s34, 1
      %p223 = por %p221, %p222
      %p224 = scmp.ne.s32.totalorder %s215, %s216
      %p225 = scmp.eq.s32.totalorder %s34, 0
      %p226 = por %p224, %p225
      %p227 = scmp.ne.s32.totalorder %s215, %s216
      %p228 = scmp.eq.s32.totalorder %s35, 1
      %p229 = por %p227, %p228
      %p231 = scmp.ne.s32.totalorder %s216, %s230
      %p232 = scmp.eq.s32.totalorder %s35, 0
      %p233 = por %p231, %p232
      %s234 = ssub.s32 %s36, %s48
      %s235 = ssub.s32 %s37, %s44
      %s236 = sor.u32 %s234, %s235
      %p237 = scmp.eq.s32.totalorder %s236, 0
      %s239 = sadd.s32 %s238, 1
      %s240 = scalar_select %p237, %s238, %s239
      %p243 = pneg %p237
      %p244 = scmp.eq.s32.totalorder %s29, 1
      %p245 = por %p243, %p244
      %p246 = scmp.ne.s32.totalorder %s238, %s241
      %p247 = scmp.eq.s32.totalorder %s29, 0
      %p248 = por %p246, %p247
      %p249 = scmp.ne.s32.totalorder %s238, %s241
      %p250 = scmp.eq.s32.totalorder %s34, 1
      %p251 = por %p249, %p250
      %p252 = scmp.ne.s32.totalorder %s241, %s242
      %p253 = scmp.eq.s32.totalorder %s34, 0
      %p254 = por %p252, %p253
      %p255 = scmp.ne.s32.totalorder %s241, %s242
      %p256 = scmp.eq.s32.totalorder %s35, 1
      %p257 = por %p255, %p256
      %p259 = scmp.ne.s32.totalorder %s242, %s258
      %p260 = scmp.eq.s32.totalorder %s35, 0
      %p261 = por %p259, %p260
      %s262 = ssub.s32 %s36, %s48
      %s263 = ssub.s32 %s37, %s44
      %s264 = sor.u32 %s262, %s263
      %p265 = scmp.eq.s32.totalorder %s264, 0
      %s267 = sadd.s32 %s266, 1
      %s268 = scalar_select %p265, %s266, %s267
      %p271 = pneg %p265
      %p272 = scmp.eq.s32.totalorder %s29, 1
      %p273 = por %p271, %p272
      %p274 = scmp.ne.s32.totalorder %s266, %s269
      %p275 = scmp.eq.s32.totalorder %s29, 0
      %p276 = por %p274, %p275
      %p277 = scmp.ne.s32.totalorder %s266, %s269
      %p278 = scmp.eq.s32.totalorder %s34, 1
      %p279 = por %p277, %p278
      %p280 = scmp.ne.s32.totalorder %s269, %s270
      %p281 = scmp.eq.s32.totalorder %s34, 0
      %p282 = por %p280, %p281
      %p283 = scmp.ne.s32.totalorder %s269, %s270
      %p284 = scmp.eq.s32.totalorder %s35, 1
      %p285 = por %p283, %p284
      %p287 = scmp.ne.s32.totalorder %s270, %s286
      %p288 = scmp.eq.s32.totalorder %s35, 0
      %p289 = por %p287, %p288
      %p290 = scmp.le.s32.totalorder 1, %s29
      %p291 = scmp.lt.s32.totalorder %s29, 3
      %p292 = pnand %p290, %p291
      %p293 = pneg %p292
      // Predicated region
      $region9: #{tpu_custom_call.1} parent=5 // pred_check
        _
      $region10: #{tpu_custom_call.1} parent=5 // pred_check_branch
        %295 = sbr.rel (%p292) target = $region12
      $region11: #{tpu_custom_call.1} parent=5 // pred_region
        %s296 = ssub.s32 %s29, 1
        // Predicated region
        $region13: #{tpu_custom_call.1} parent=11 // pred_check
          %p297 = pneg %p142
        $region14: #{tpu_custom_call.1} parent=11 // pred_check_branch
          %299 = sbr.rel (%p297) target = $region16
        $region15: #{tpu_custom_call.1} parent=11 // pred_region
          %s301 = ssub.s32 256, 256
          %302 = vsyncadd [#allocation9], %s301
          %s303 = sshll.u32 [#allocation8], 4
          %s304 = int_to_ptr.vmem [resolvable:$true] %s303
          %309 = dma.hbm_to_vmem [thread:$0]  %s3, 256, %s304, [#allocation9], 64, 64, 4
        $region16: #{tpu_custom_call.1} parent=11 // pred_fallthru
          _
        // Predicated region
        $region17: #{tpu_custom_call.1} parent=11 // pred_check
          %p310 = pneg %p163
        $region18: #{tpu_custom_call.1} parent=11 // pred_check_branch
          %312 = sbr.rel (%p310) target = $region20
        $region19: #{tpu_custom_call.1} parent=11 // pred_region
          %s314 = ssub.s32 256, 256
          %315 = vsyncadd [#allocation9], %s314
          %s316 = sshll.u32 [#allocation10], 4
          %s317 = int_to_ptr.vmem [resolvable:$true] %s316
          %322 = dma.hbm_to_vmem [thread:$0]  %s4, 256, %s317, [#allocation9], 64, 64, 4
        $region20: #{tpu_custom_call.1} parent=11 // pred_fallthru
          _
        // Predicated region
        $region21: #{tpu_custom_call.1} parent=11 // pred_check
          %p323 = pneg %p184
        $region22: #{tpu_custom_call.1} parent=11 // pred_check_branch
          %325 = sbr.rel (%p323) target = $region24
        $region23: #{tpu_custom_call.1} parent=11 // pred_region
          _
        $region24: #{tpu_custom_call.1} parent=11 // pred_fallthru
          _
        // Predicated region
        $region25: #{tpu_custom_call.1} parent=11 // pred_check
          %p326 = pneg %p205
        $region26: #{tpu_custom_call.1} parent=11 // pred_check_branch
          %328 = sbr.rel (%p326) target = $region28
        $region27: #{tpu_custom_call.1} parent=11 // pred_region
          _
        $region28: #{tpu_custom_call.1} parent=11 // pred_fallthru
          _
        // Predicated region
        $region29: #{tpu_custom_call.1} parent=11 // pred_check
          %p329 = pneg %p226
        $region30: #{tpu_custom_call.1} parent=11 // pred_check_branch
          %331 = sbr.rel (%p329) target = $region32
        $region31: #{tpu_custom_call.1} parent=11 // pred_region
          _
        $region32: #{tpu_custom_call.1} parent=11 // pred_fallthru
          _
      $region12: #{tpu_custom_call.1} parent=5 // pred_fallthru
        _
      %p332 = scmp.lt.s32.totalorder %s29, 2
      // Predicated region
      $region33: #{tpu_custom_call.1} parent=5 // pred_check
        %p333 = pneg %p332
      $region34: #{tpu_custom_call.1} parent=5 // pred_check_branch
        %335 = sbr.rel (%p333) target = $region36
      $region35: #{tpu_custom_call.1} parent=5 // pred_region
        // Predicated region
        $region37: #{tpu_custom_call.1} parent=35 // pred_check
          %p336 = pneg %p61
        $region38: #{tpu_custom_call.1} parent=35 // pred_check_branch
          %338 = sbr.rel (%p336) target = $region40
        $region39: #{tpu_custom_call.1} parent=35 // pred_region
          %s339 = sand.u32 %s51, 1
          %s340 = scalar_lea.sflag [#allocation3], %s339
          %s341 = sand.u32 %s51, 1
          %s342 = smul.addr %s341, 8
          %s343 = scalar_lea.vmem [#allocation2], %s342
          %s345 = ssub.s32 128, 128
          %346 = vsyncadd %s340, %s345
          %s347 = smul.addr %s36, 128
          %s348 = scalar_lea.hbm %s0, %s347
          %s350 = sshll.u32 %s343, 4
          %s351 = int_to_ptr.vmem [resolvable:$true] %s350
          %353 = dma.hbm_to_vmem [thread:$0]  %s348, 128, %s351, %s340
        $region40: #{tpu_custom_call.1} parent=35 // pred_fallthru
          _
        // Predicated region
        $region41: #{tpu_custom_call.1} parent=35 // pred_check
          %p354 = pneg %p87
        $region42: #{tpu_custom_call.1} parent=35 // pred_check_branch
          %356 = sbr.rel (%p354) target = $region44
        $region43: #{tpu_custom_call.1} parent=35 // pred_region
          %s357 = sand.u32 %s29, 1
          %s358 = scalar_lea.sflag [#allocation6], %s357
          %s359 = sand.u32 %s77, 1
          %s360 = smul.addr %s359, 8
          %s361 = scalar_lea.vmem [#allocation5], %s360
          %s363 = ssub.s32 128, 128
          %364 = vsyncadd %s358, %s363
          %s365 = smul.addr %s36, 128
          %s366 = scalar_lea.hbm %s1, %s365
          %s368 = sshll.u32 %s361, 4
          %s369 = int_to_ptr.vmem [resolvable:$true] %s368
          %371 = dma.hbm_to_vmem [thread:$0]  %s366, 128, %s369, %s358
        $region44: #{tpu_custom_call.1} parent=35 // pred_fallthru
          _
        // Predicated region
        $region45: #{tpu_custom_call.1} parent=35 // pred_check
          %p372 = pneg %p115
        $region46: #{tpu_custom_call.1} parent=35 // pred_check_branch
          %374 = sbr.rel (%p372) target = $region48
        $region47: #{tpu_custom_call.1} parent=35 // pred_region
          %s375 = sand.u32 %s29, 1
          %s376 = scalar_lea.sflag [#allocation6], %s375
          %s377 = sand.u32 %s105, 1
          %s378 = smul.addr %s377, 8
          %s379 = scalar_lea.vmem [#allocation7], %s378
          %s381 = ssub.s32 128, 128
          %382 = vsyncadd %s376, %s381
          %s383 = sadd.s32 %s37, %s36
          %s384 = smul.addr %s383, 128
          %s385 = scalar_lea.hbm %s2, %s384
          %s387 = sshll.u32 %s379, 4
          %s388 = int_to_ptr.vmem [resolvable:$true] %s387
          %390 = dma.hbm_to_vmem [thread:$0]  %s385, 128, %s388, %s376
        $region48: #{tpu_custom_call.1} parent=35 // pred_fallthru
          _
      $region36: #{tpu_custom_call.1} parent=5 // pred_fallthru
        _
      %p391 = scmp.le.s32.totalorder 1, %s29
      %p392 = scmp.lt.s32.totalorder %s29, 3
      %p393 = pnand %p391, %p392
      %p394 = pneg %p393
      // Predicated region
      $region49: #{tpu_custom_call.1} parent=5 // pred_check
        _
      $region50: #{tpu_custom_call.1} parent=5 // pred_check_branch
        %396 = sbr.rel (%p393) target = $region52
      $region51: #{tpu_custom_call.1} parent=5 // pred_region
        %s397 = ssub.s32 %s29, 1
        %s398 = sand.u32 %s54, 1
        %s399 = scalar_lea.sflag [#allocation3], %s398
        %s400 = sand.u32 %s54, 1
        %s401 = smul.addr %s400, 8
        %s402 = scalar_lea.vmem [#allocation2], %s401
        // Predicated region
        $region53: #{tpu_custom_call.1} parent=51 // pred_check
          %p403 = pneg %p67
        $region54: #{tpu_custom_call.1} parent=51 // pred_check_branch
          %405 = sbr.rel (%p403) target = $region56
        $region55: #{tpu_custom_call.1} parent=51 // pred_region
          %406 = dma.done %s399, 128
        $region56: #{tpu_custom_call.1} parent=51 // pred_fallthru
          _
        %s407 = sand.u32 %s34, 1
        %s408 = scalar_lea.sflag [#allocation6], %s407
        %s409 = sand.u32 %s80, 1
        %s410 = smul.addr %s409, 8
        %s411 = scalar_lea.vmem [#allocation5], %s410
        // Predicated region
        $region57: #{tpu_custom_call.1} parent=51 // pred_check
          %p412 = pneg %p93
        $region58: #{tpu_custom_call.1} parent=51 // pred_check_branch
          %414 = sbr.rel (%p412) target = $region60
        $region59: #{tpu_custom_call.1} parent=51 // pred_region
          %415 = dma.done %s408, 128
        $region60: #{tpu_custom_call.1} parent=51 // pred_fallthru
          _
        %s416 = sand.u32 %s34, 1
        %s417 = scalar_lea.sflag [#allocation6], %s416
        %s418 = sand.u32 %s108, 1
        %s419 = smul.addr %s418, 8
        %s420 = scalar_lea.vmem [#allocation7], %s419
        // Predicated region
        $region61: #{tpu_custom_call.1} parent=51 // pred_check
          %p421 = pneg %p121
        $region62: #{tpu_custom_call.1} parent=51 // pred_check_branch
          %423 = sbr.rel (%p421) target = $region64
        $region63: #{tpu_custom_call.1} parent=51 // pred_region
          %424 = dma.done %s417, 128
        $region64: #{tpu_custom_call.1} parent=51 // pred_fallthru
          _
        // Predicated region
        $region65: #{tpu_custom_call.1} parent=51 // pred_check
          %p425 = pneg %p142
        $region66: #{tpu_custom_call.1} parent=51 // pred_check_branch
          %427 = sbr.rel (%p425) target = $region68
        $region67: #{tpu_custom_call.1} parent=51 // pred_region
          %428 = dma.done [#allocation9], 256
        $region68: #{tpu_custom_call.1} parent=51 // pred_fallthru
          _
        // Predicated region
        $region69: #{tpu_custom_call.1} parent=51 // pred_check
          %p429 = pneg %p163
        $region70: #{tpu_custom_call.1} parent=51 // pred_check_branch
          %431 = sbr.rel (%p429) target = $region72
        $region71: #{tpu_custom_call.1} parent=51 // pred_region
          %432 = dma.done [#allocation9], 256
        $region72: #{tpu_custom_call.1} parent=51 // pred_fallthru
          _
        %s433 = sand.u32 %s54, 1
        %s434 = scalar_lea.sflag [#allocation3], %s433
        %s435 = sand.u32 %s54, 1
        %s436 = smul.addr %s435, 8
        %s437 = scalar_lea.vmem [#allocation2], %s436
        %p438 = pneg %p67
        %p439 = pneg %p64
        %s440 = sand.u32 %s34, 1
        %s441 = scalar_lea.sflag [#allocation6], %s440
        %s442 = sand.u32 %s80, 1
        %s443 = smul.addr %s442, 8
        %s444 = scalar_lea.vmem [#allocation5], %s443
        %p445 = pneg %p93
        %p446 = pneg %p90
        %s447 = sand.u32 %s34, 1
        %s448 = scalar_lea.sflag [#allocation6], %s447
        %s449 = sand.u32 %s108, 1
        %s450 = smul.addr %s449, 8
        %s451 = scalar_lea.vmem [#allocation7], %s450
        %p452 = pneg %p121
        %p453 = pneg %p118
        %p454 = pneg %p142
        %p455 = pneg %p139
        %p456 = pneg %p163
        %p457 = pneg %p160
        %p458 = pneg %p184
        %p459 = pneg %p181
        %p460 = pneg %p205
        %p461 = pneg %p202
        %p462 = pneg %p226
        %p463 = pneg %p223
        %p464 = pneg %p254
        %p465 = pneg %p251
        %s466 = sand.u32 %s241, 1
        %s467 = scalar_lea.sflag [#allocation4], %s466
        %s468 = sand.u32 %s241, 1
        %s469 = smul.addr %s468, 8
        %s470 = scalar_lea.vmem [#allocation11], %s469
        %p471 = pneg %p282
        %p472 = pneg %p279
        %s473 = sand.u32 %s269, 1
        %s474 = scalar_lea.sflag [#allocation13], %s473
        %s475 = sand.u32 %s269, 1
        %s476 = smul.addr %s475, 8
        %s477 = scalar_lea.vmem [#allocation12], %s476
        %v479 = vld [vmem:[%s402] sm:$0xff]
        %v480 = vpack.c.bf16 %v479, %v479
        %v481 = vld [vmem:[%s411] sm:$0xff]
        %v482 = vpack.c.bf16 %v481, %v481
        %v483 = vld [vmem:[%s420] sm:$0xff]
        %v484 = vpack.c.bf16 %v483, %v483
        %v485 = vld [vmem:[#allocation8] sm:$0xf]
        %v486 = vld [vmem:[#allocation8 + $0x4] sm:$0xf]
        %v487 = vld [vmem:[#allocation8 + $0x8] sm:$0xf]
        %v488 = vld [vmem:[#allocation8 + $0xc] sm:$0xf]
        %v493 = vunpack.c.l.b16 %v485
        %v494 = vunpack.c.l.b16 %v486
        %v495 = vunpack.c.l.b16 %v487
        %v496 = vunpack.c.l.b16 %v488
        %v497 = vpack.c.b16 %v494, %v493
        %v498 = vpack.c.b16 %v496, %v495
        %vm501 = vcmask 261120
        %v503 = vsel %vm501, %v480, 0
        %505 = vmatprep.subr.bf16.mxu0 0
        %506 = vmatpush1.bf16.msra.mxu0 %v497
        %507 = vmatprep.subr.bf16.mxu0 0
        %508 = vmatpush1.bf16.msra.mxu0 %v498
        %509 = vmatprep.subr.bf16.mxu0 0
        %510 = vmatpush1.bf16.msra.mxu0 0
        %511 = vmatprep.subr.bf16.mxu0 0
        %512 = vmatpush1.bf16.msra.mxu0 0
        %513 = vmatprep.subr.bf16.mxu0 0
        %514 = vmatpush1.bf16.msra.mxu0 0
        %515 = vmatprep.subr.bf16.mxu0 0
        %516 = vmatpush1.bf16.msra.mxu0 0
        %517 = vmatprep.subr.bf16.mxu0 0
        %518 = vmatpush1.bf16.msra.mxu0 0
        %519 = vmatprep.subr.bf16.mxu0 0
        %520 = vmatpush1.bf16.msra.mxu0 0
        %521 = vmatprep.subr.bf16.mxu0 0
        %522 = vmatpush1.bf16.msra.mxu0 0
        %523 = vmatprep.subr.bf16.mxu0 0
        %524 = vmatpush1.bf16.msra.mxu0 0
        %525 = vmatprep.subr.bf16.mxu0 0
        %526 = vmatpush1.bf16.msra.mxu0 0
        %527 = vmatprep.subr.bf16.mxu0 0
        %528 = vmatpush1.bf16.msra.mxu0 0
        %529 = vmatprep.subr.bf16.mxu0 0
        %530 = vmatpush1.bf16.msra.mxu0 0
        %531 = vmatprep.subr.bf16.mxu0 0
        %532 = vmatpush1.bf16.msra.mxu0 0
        %533 = vmatprep.subr.bf16.mxu0 0
        %534 = vmatpush1.bf16.msra.mxu0 0
        %535 = vmatprep.subr.bf16.mxu0 0
        %536 = vmatpush1.bf16.msra.mxu0 0
        %537 = vmatprep.mubr.bf16.mxu0 0
        %538 = vmatmul.mubr.bf16.gmra.mrb[0].mxu0 %v503
        %v539 = vpop.f32.mrb[0].mxu0
        %v540 = vadd.f32 0.0, %v539
        %v541 = vpop.f32.mrb[0].mxu0
        %v542 = vpop.f32.mrb[0].mxu0
        %v543 = vpop.f32.mrb[0].mxu0
        %544 = vdwg.mxu0
        %v545 = vld [vmem:[#allocation10] sm:$0xf]
        %v546 = vld [vmem:[#allocation10 + $0x4] sm:$0xf]
        %v547 = vld [vmem:[#allocation10 + $0x8] sm:$0xf]
        %v548 = vld [vmem:[#allocation10 + $0xc] sm:$0xf]
        %v553 = vunpack.c.l.b16 %v545
        %v554 = vunpack.c.l.b16 %v546
        %v555 = vunpack.c.l.b16 %v547
        %v556 = vunpack.c.l.b16 %v548
        %v557 = vpack.c.b16 %v554, %v553
        %v558 = vpack.c.b16 %v556, %v555
        %v562 = vsel %vm501, %v482, 0
        %564 = vmatprep.subr.bf16.mxu0 0
        %565 = vmatpush1.bf16.msra.mxu0 %v557
        %566 = vmatprep.subr.bf16.mxu0 0
        %567 = vmatpush1.bf16.msra.mxu0 %v558
        %568 = vmatprep.subr.bf16.mxu0 0
        %569 = vmatpush1.bf16.msra.mxu0 0
        %570 = vmatprep.subr.bf16.mxu0 0
        %571 = vmatpush1.bf16.msra.mxu0 0
        %572 = vmatprep.subr.bf16.mxu0 0
        %573 = vmatpush1.bf16.msra.mxu0 0
        %574 = vmatprep.subr.bf16.mxu0 0
        %575 = vmatpush1.bf16.msra.mxu0 0
        %576 = vmatprep.subr.bf16.mxu0 0
        %577 = vmatpush1.bf16.msra.mxu0 0
        %578 = vmatprep.subr.bf16.mxu0 0
        %579 = vmatpush1.bf16.msra.mxu0 0
        %580 = vmatprep.subr.bf16.mxu0 0
        %581 = vmatpush1.bf16.msra.mxu0 0
        %582 = vmatprep.subr.bf16.mxu0 0
        %583 = vmatpush1.bf16.msra.mxu0 0
        %584 = vmatprep.subr.bf16.mxu0 0
        %585 = vmatpush1.bf16.msra.mxu0 0
        %586 = vmatprep.subr.bf16.mxu0 0
        %587 = vmatpush1.bf16.msra.mxu0 0
        %588 = vmatprep.subr.bf16.mxu0 0
        %589 = vmatpush1.bf16.msra.mxu0 0
        %590 = vmatprep.subr.bf16.mxu0 0
        %591 = vmatpush1.bf16.msra.mxu0 0
        %592 = vmatprep.subr.bf16.mxu0 0
        %593 = vmatpush1.bf16.msra.mxu0 0
        %594 = vmatprep.subr.bf16.mxu0 0
        %595 = vmatpush1.bf16.msra.mxu0 0
        %596 = vmatprep.mubr.bf16.mxu0 0
        %597 = vmatmul.mubr.bf16.gmra.mrb[0].mxu0 %v562
        %v598 = vpop.f32.mrb[0].mxu0
        %v599 = vadd.f32 0.0, %v598
        %v600 = vpop.f32.mrb[0].mxu0
        %v601 = vpop.f32.mrb[0].mxu0
        %v602 = vpop.f32.mrb[0].mxu0
        %603 = vdwg.mxu0
        %v604 = vld [vmem:[%s5] sm:$0xf]
        %v605 = vld [vmem:[%s5 + $0x4] sm:$0xf]
        %v606 = vld [vmem:[%s5 + $0x8] sm:$0xf]
        %v607 = vld [vmem:[%s5 + $0xc] sm:$0xf]
        %v612 = vunpack.c.l.b16 %v604
        %v613 = vunpack.c.l.b16 %v605
        %v614 = vunpack.c.l.b16 %v606
        %v615 = vunpack.c.l.b16 %v607
        %v616 = vpack.c.b16 %v613, %v612
        %v617 = vpack.c.b16 %v615, %v614
        %v621 = vsel %vm501, %v484, 0
        %623 = vmatprep.subr.bf16.mxu0 0
        %624 = vmatpush1.bf16.msra.mxu0 %v616
        %625 = vmatprep.subr.bf16.mxu0 0
        %626 = vmatpush1.bf16.msra.mxu0 %v617
        %627 = vmatprep.subr.bf16.mxu0 0
        %628 = vmatpush1.bf16.msra.mxu0 0
        %629 = vmatprep.subr.bf16.mxu0 0
        %630 = vmatpush1.bf16.msra.mxu0 0
        %631 = vmatprep.subr.bf16.mxu0 0
        %632 = vmatpush1.bf16.msra.mxu0 0
        %633 = vmatprep.subr.bf16.mxu0 0
        %634 = vmatpush1.bf16.msra.mxu0 0
        %635 = vmatprep.subr.bf16.mxu0 0
        %636 = vmatpush1.bf16.msra.mxu0 0
        %637 = vmatprep.subr.bf16.mxu0 0
        %638 = vmatpush1.bf16.msra.mxu0 0
        %639 = vmatprep.subr.bf16.mxu0 0
        %640 = vmatpush1.bf16.msra.mxu0 0
        %641 = vmatprep.subr.bf16.mxu0 0
        %642 = vmatpush1.bf16.msra.mxu0 0
        %643 = vmatprep.subr.bf16.mxu0 0
        %644 = vmatpush1.bf16.msra.mxu0 0
        %645 = vmatprep.subr.bf16.mxu0 0
        %646 = vmatpush1.bf16.msra.mxu0 0
        %647 = vmatprep.subr.bf16.mxu0 0
        %648 = vmatpush1.bf16.msra.mxu0 0
        %649 = vmatprep.subr.bf16.mxu0 0
        %650 = vmatpush1.bf16.msra.mxu0 0
        %651 = vmatprep.subr.bf16.mxu0 0
        %652 = vmatpush1.bf16.msra.mxu0 0
        %653 = vmatprep.subr.bf16.mxu0 0
        %654 = vmatpush1.bf16.msra.mxu0 0
        %655 = vmatprep.mubr.bf16.mxu0 0
        %656 = vmatmul.mubr.bf16.gmra.mrb[0].mxu0 %v621
        %v657 = vpop.f32.mrb[0].mxu0
        %v658 = vadd.f32 0.0, %v657
        %v659 = vpop.f32.mrb[0].mxu0
        %v660 = vpop.f32.mrb[0].mxu0
        %v661 = vpop.f32.mrb[0].mxu0
        %662 = vdwg.mxu0
        %664 = vrot.lane.b32.xlu0 %v658, 120
        %v665 = vpop.permute.xlu0 %664
        %667 = vrot.lane.b32.xlu0 %v658, 112
        %v668 = vpop.permute.xlu0 %667
        %670 = vrot.lane.b32.xlu0 %v658, 104
        %v671 = vpop.permute.xlu0 %670
        %v673 = vpack.c.bf16 %v658, %v658
        %v674 = vpack.c.bf16 %v665, %v665
        %v675 = vpack.c.bf16 %v668, %v668
        %v676 = vpack.c.bf16 %v671, %v671
        %678 = vrot.lane.b32.xlu0 %v540, 120
        %v679 = vpop.permute.xlu0 %678
        %681 = vrot.lane.b32.xlu0 %v540, 112
        %v682 = vpop.permute.xlu0 %681
        %684 = vrot.lane.b32.xlu0 %v540, 104
        %v685 = vpop.permute.xlu0 %684
        %v687 = vpack.c.bf16 %v540, %v540
        %v688 = vpack.c.bf16 %v679, %v679
        %v689 = vpack.c.bf16 %v682, %v682
        %v690 = vpack.c.bf16 %v685, %v685
        %692 = vrot.lane.b32.xlu0 %v599, 120
        %v693 = vpop.permute.xlu0 %692
        %695 = vrot.lane.b32.xlu0 %v599, 112
        %v696 = vpop.permute.xlu0 %695
        %698 = vrot.lane.b32.xlu0 %v599, 104
        %v699 = vpop.permute.xlu0 %698
        %v701 = vpack.c.bf16 %v599, %v599
        %v702 = vpack.c.bf16 %v693, %v693
        %v703 = vpack.c.bf16 %v696, %v696
        %v704 = vpack.c.bf16 %v699, %v699
        %vm705 = vcmask 64512
        %v707 = vsel %vm705, %v673, 0
        %v710 = vsel %vm705, %v687, 0
        %712 = vmatprep.subr.bf16.mxu0 0
        %713 = vmatpush1.bf16.xpose.msra.mxu0 %v710
        %714 = vmatprep.subr.bf16.mxu0 0
        %715 = vmatpush1.bf16.xpose.msra.mxu0 0
        %716 = vmatprep.subr.bf16.mxu0 0
        %717 = vmatpush1.bf16.xpose.msra.mxu0 0
        %718 = vmatprep.subr.bf16.mxu0 0
        %719 = vmatpush1.bf16.xpose.msra.mxu0 0
        %720 = vmatprep.subr.bf16.mxu0 0
        %721 = vmatpush1.bf16.xpose.msra.mxu0 0
        %722 = vmatprep.subr.bf16.mxu0 0
        %723 = vmatpush1.bf16.xpose.msra.mxu0 0
        %724 = vmatprep.subr.bf16.mxu0 0
        %725 = vmatpush1.bf16.xpose.msra.mxu0 0
        %726 = vmatprep.subr.bf16.mxu0 0
        %727 = vmatpush1.bf16.xpose.msra.mxu0 0
        %728 = vmatprep.subr.bf16.mxu0 0
        %729 = vmatpush1.bf16.xpose.msra.mxu0 0
        %730 = vmatprep.subr.bf16.mxu0 0
        %731 = vmatpush1.bf16.xpose.msra.mxu0 0
        %732 = vmatprep.subr.bf16.mxu0 0
        %733 = vmatpush1.bf16.xpose.msra.mxu0 0
        %734 = vmatprep.subr.bf16.mxu0 0
        %735 = vmatpush1.bf16.xpose.msra.mxu0 0
        %736 = vmatprep.subr.bf16.mxu0 0
        %737 = vmatpush1.bf16.xpose.msra.mxu0 0
        %738 = vmatprep.subr.bf16.mxu0 0
        %739 = vmatpush1.bf16.xpose.msra.mxu0 0
        %740 = vmatprep.subr.bf16.mxu0 0
        %741 = vmatpush1.bf16.xpose.msra.mxu0 0
        %742 = vmatprep.subr.bf16.mxu0 0
        %743 = vmatpush1.bf16.xpose.msra.mxu0 0
        %744 = vmatprep.mubr.bf16.mxu0 0
        %745 = vmatmul.mubr.bf16.gmra.mrb[0].mxu0 %v707
        %v746 = vpop.f32.mrb[0].mxu0
        %v747 = vadd.f32 0.0, %v746
        %v748 = vpop.f32.mrb[0].mxu0
        %v749 = vpop.f32.mrb[0].mxu0
        %v750 = vpop.f32.mrb[0].mxu0
        %751 = vdwg.mxu0
        %v753 = vsel %vm705, %v674, 0
        %v756 = vsel %vm705, %v688, 0
        %758 = vmatprep.subr.bf16.mxu0 0
        %759 = vmatpush1.bf16.xpose.msra.mxu0 %v756
        %760 = vmatprep.subr.bf16.mxu0 0
        %761 = vmatpush1.bf16.xpose.msra.mxu0 0
        %762 = vmatprep.subr.bf16.mxu0 0
        %763 = vmatpush1.bf16.xpose.msra.mxu0 0
        %764 = vmatprep.subr.bf16.mxu0 0
        %765 = vmatpush1.bf16.xpose.msra.mxu0 0
        %766 = vmatprep.subr.bf16.mxu0 0
        %767 = vmatpush1.bf16.xpose.msra.mxu0 0
        %768 = vmatprep.subr.bf16.mxu0 0
        %769 = vmatpush1.bf16.xpose.msra.mxu0 0
        %770 = vmatprep.subr.bf16.mxu0 0
        %771 = vmatpush1.bf16.xpose.msra.mxu0 0
        %772 = vmatprep.subr.bf16.mxu0 0
        %773 = vmatpush1.bf16.xpose.msra.mxu0 0
        %774 = vmatprep.subr.bf16.mxu0 0
        %775 = vmatpush1.bf16.xpose.msra.mxu0 0
        %776 = vmatprep.subr.bf16.mxu0 0
        %777 = vmatpush1.bf16.xpose.msra.mxu0 0
        %778 = vmatprep.subr.bf16.mxu0 0
        %779 = vmatpush1.bf16.xpose.msra.mxu0 0
        %780 = vmatprep.subr.bf16.mxu0 0
        %781 = vmatpush1.bf16.xpose.msra.mxu0 0
        %782 = vmatprep.subr.bf16.mxu0 0
        %783 = vmatpush1.bf16.xpose.msra.mxu0 0
        %784 = vmatprep.subr.bf16.mxu0 0
        %785 = vmatpush1.bf16.xpose.msra.mxu0 0
        %786 = vmatprep.subr.bf16.mxu0 0
        %787 = vmatpush1.bf16.xpose.msra.mxu0 0
        %788 = vmatprep.subr.bf16.mxu0 0
        %789 = vmatpush1.bf16.xpose.msra.mxu0 0
        %790 = vmatprep.mubr.bf16.mxu0 0
        %791 = vmatmul.mubr.bf16.gmra.mrb[0].mxu0 %v753
        %v792 = vpop.f32.mrb[0].mxu0
        %v793 = vadd.f32 0.0, %v792
        %v794 = vpop.f32.mrb[0].mxu0
        %v795 = vpop.f32.mrb[0].mxu0
        %v796 = vpop.f32.mrb[0].mxu0
        %797 = vdwg.mxu0
        %v799 = vsel %vm705, %v675, 0
        %v802 = vsel %vm705, %v689, 0
        %804 = vmatprep.subr.bf16.mxu0 0
        %805 = vmatpush1.bf16.xpose.msra.mxu0 %v802
        %806 = vmatprep.subr.bf16.mxu0 0
        %807 = vmatpush1.bf16.xpose.msra.mxu0 0
        %808 = vmatprep.subr.bf16.mxu0 0
        %809 = vmatpush1.bf16.xpose.msra.mxu0 0
        %810 = vmatprep.subr.bf16.mxu0 0
        %811 = vmatpush1.bf16.xpose.msra.mxu0 0
        %812 = vmatprep.subr.bf16.mxu0 0
        %813 = vmatpush1.bf16.xpose.msra.mxu0 0
        %814 = vmatprep.subr.bf16.mxu0 0
        %815 = vmatpush1.bf16.xpose.msra.mxu0 0
        %816 = vmatprep.subr.bf16.mxu0 0
        %817 = vmatpush1.bf16.xpose.msra.mxu0 0
        %818 = vmatprep.subr.bf16.mxu0 0
        %819 = vmatpush1.bf16.xpose.msra.mxu0 0
        %820 = vmatprep.subr.bf16.mxu0 0
        %821 = vmatpush1.bf16.xpose.msra.mxu0 0
        %822 = vmatprep.subr.bf16.mxu0 0
        %823 = vmatpush1.bf16.xpose.msra.mxu0 0
        %824 = vmatprep.subr.bf16.mxu0 0
        %825 = vmatpush1.bf16.xpose.msra.mxu0 0
        %826 = vmatprep.subr.bf16.mxu0 0
        %827 = vmatpush1.bf16.xpose.msra.mxu0 0
        %828 = vmatprep.subr.bf16.mxu0 0
        %829 = vmatpush1.bf16.xpose.msra.mxu0 0
        %830 = vmatprep.subr.bf16.mxu0 0
        %831 = vmatpush1.bf16.xpose.msra.mxu0 0
        %832 = vmatprep.subr.bf16.mxu0 0
        %833 = vmatpush1.bf16.xpose.msra.mxu0 0
        %834 = vmatprep.subr.bf16.mxu0 0
        %835 = vmatpush1.bf16.xpose.msra.mxu0 0
        %836 = vmatprep.mubr.bf16.mxu0 0
        %837 = vmatmul.mubr.bf16.gmra.mrb[0].mxu0 %v799
        %v838 = vpop.f32.mrb[0].mxu0
        %v839 = vadd.f32 0.0, %v838
        %v840 = vpop.f32.mrb[0].mxu0
        %v841 = vpop.f32.mrb[0].mxu0
        %v842 = vpop.f32.mrb[0].mxu0
        %843 = vdwg.mxu0
        %v845 = vsel %vm705, %v676, 0
        %v848 = vsel %vm705, %v690, 0
        %850 = vmatprep.subr.bf16.mxu0 0
        %851 = vmatpush1.bf16.xpose.msra.mxu0 %v848
        %852 = vmatprep.subr.bf16.mxu0 0
        %853 = vmatpush1.bf16.xpose.msra.mxu0 0
        %854 = vmatprep.subr.bf16.mxu0 0
        %855 = vmatpush1.bf16.xpose.msra.mxu0 0
        %856 = vmatprep.subr.bf16.mxu0 0
        %857 = vmatpush1.bf16.xpose.msra.mxu0 0
        %858 = vmatprep.subr.bf16.mxu0 0
        %859 = vmatpush1.bf16.xpose.msra.mxu0 0
        %860 = vmatprep.subr.bf16.mxu0 0
        %861 = vmatpush1.bf16.xpose.msra.mxu0 0
        %862 = vmatprep.subr.bf16.mxu0 0
        %863 = vmatpush1.bf16.xpose.msra.mxu0 0
        %864 = vmatprep.subr.bf16.mxu0 0
        %865 = vmatpush1.bf16.xpose.msra.mxu0 0
        %866 = vmatprep.subr.bf16.mxu0 0
        %867 = vmatpush1.bf16.xpose.msra.mxu0 0
        %868 = vmatprep.subr.bf16.mxu0 0
        %869 = vmatpush1.bf16.xpose.msra.mxu0 0
        %870 = vmatprep.subr.bf16.mxu0 0
        %871 = vmatpush1.bf16.xpose.msra.mxu0 0
        %872 = vmatprep.subr.bf16.mxu0 0
        %873 = vmatpush1.bf16.xpose.msra.mxu0 0
        %874 = vmatprep.subr.bf16.mxu0 0
        %875 = vmatpush1.bf16.xpose.msra.mxu0 0
        %876 = vmatprep.subr.bf16.mxu0 0
        %877 = vmatpush1.bf16.xpose.msra.mxu0 0
        %878 = vmatprep.subr.bf16.mxu0 0
        %879 = vmatpush1.bf16.xpose.msra.mxu0 0
        %880 = vmatprep.subr.bf16.mxu0 0
        %881 = vmatpush1.bf16.xpose.msra.mxu0 0
        %882 = vmatprep.mubr.bf16.mxu0 0
        %883 = vmatmul.mubr.bf16.gmra.mrb[0].mxu0 %v845
        %v884 = vpop.f32.mrb[0].mxu0
        %v885 = vadd.f32 0.0, %v884
        %v886 = vpop.f32.mrb[0].mxu0
        %v887 = vpop.f32.mrb[0].mxu0
        %v888 = vpop.f32.mrb[0].mxu0
        %889 = vdwg.mxu0
        %v890 = vsel %vm705, %v747, -inf
        %891 = vmax.xlane.f32.xlu0 %v890
        %v892 = vpop.xlane.xlu0 %891
        %v893 = vsel %vm705, %v793, -inf
        %894 = vmax.xlane.f32.xlu0 %v893
        %v895 = vpop.xlane.xlu0 %894
        %v896 = vsel %vm705, %v839, -inf
        %897 = vmax.xlane.f32.xlu0 %v896
        %v898 = vpop.xlane.xlu0 %897
        %v899 = vsel %vm705, %v885, -inf
        %900 = vmax.xlane.f32.xlu0 %v899
        %v901 = vpop.xlane.xlu0 %900
        %v902 = vsub.f32 %v747, %v892
        %v903 = vsub.f32 %v793, %v895
        %v904 = vsub.f32 %v839, %v898
        %v905 = vsub.f32 %v885, %v901
        %v906 = vmul.f32 %v902, 1.442695
        %v907 = vpow.pop %v906
        %v908 = vmul.f32 %v903, 1.442695
        %v909 = vpow.pop %v908
        %v910 = vmul.f32 %v904, 1.442695
        %v911 = vpow.pop %v910
        %v912 = vmul.f32 %v905, 1.442695
        %v913 = vpow.pop %v912
        %v914 = vsel %vm705, %v907, 0.0
        %915 = vadd.xlane.f32.xlu0 %v914
        %v916 = vpop.xlane.xlu0 %915
        %v917 = vsel %vm705, %v909, 0.0
        %918 = vadd.xlane.f32.xlu0 %v917
        %v919 = vpop.xlane.xlu0 %918
        %v920 = vsel %vm705, %v911, 0.0
        %921 = vadd.xlane.f32.xlu0 %v920
        %v922 = vpop.xlane.xlu0 %921
        %v923 = vsel %vm705, %v913, 0.0
        %924 = vadd.xlane.f32.xlu0 %v923
        %v925 = vpop.xlane.xlu0 %924
        %v926 = vrcp.pop %v916
        %v927 = vrcp.pop %v919
        %v928 = vrcp.pop %v922
        %v929 = vrcp.pop %v925
        %v930 = vmul.f32 %v907, %v926
        %v931 = vmul.f32 %v909, %v927
        %v932 = vmul.f32 %v911, %v928
        %v933 = vmul.f32 %v913, %v929
        %934 = vst.msk [vmem:[%s477] sm:$0xff] %vm705, %v930
        %v935 = vpack.c.bf16 %v930, %v930
        %v936 = vpack.c.bf16 %v931, %v931
        %v937 = vpack.c.bf16 %v932, %v932
        %v938 = vpack.c.bf16 %v933, %v933
        %v940 = vsel %vm705, %v935, 0
        %vm942 = vcmask 1043456
        %v944 = vsel %vm942, %v701, 0
        %946 = vmatprep.subr.bf16.mxu0 0
        %947 = vmatpush1.bf16.msra.mxu0 %v944
        %948 = vmatprep.subr.bf16.mxu0 0
        %949 = vmatpush1.bf16.msra.mxu0 0
        %950 = vmatprep.subr.bf16.mxu0 0
        %951 = vmatpush1.bf16.msra.mxu0 0
        %952 = vmatprep.subr.bf16.mxu0 0
        %953 = vmatpush1.bf16.msra.mxu0 0
        %954 = vmatprep.subr.bf16.mxu0 0
        %955 = vmatpush1.bf16.msra.mxu0 0
        %956 = vmatprep.subr.bf16.mxu0 0
        %957 = vmatpush1.bf16.msra.mxu0 0
        %958 = vmatprep.subr.bf16.mxu0 0
        %959 = vmatpush1.bf16.msra.mxu0 0
        %960 = vmatprep.subr.bf16.mxu0 0
        %961 = vmatpush1.bf16.msra.mxu0 0
        %962 = vmatprep.subr.bf16.mxu0 0
        %963 = vmatpush1.bf16.msra.mxu0 0
        %964 = vmatprep.subr.bf16.mxu0 0
        %965 = vmatpush1.bf16.msra.mxu0 0
        %966 = vmatprep.subr.bf16.mxu0 0
        %967 = vmatpush1.bf16.msra.mxu0 0
        %968 = vmatprep.subr.bf16.mxu0 0
        %969 = vmatpush1.bf16.msra.mxu0 0
        %970 = vmatprep.subr.bf16.mxu0 0
        %971 = vmatpush1.bf16.msra.mxu0 0
        %972 = vmatprep.subr.bf16.mxu0 0
        %973 = vmatpush1.bf16.msra.mxu0 0
        %974 = vmatprep.subr.bf16.mxu0 0
        %975 = vmatpush1.bf16.msra.mxu0 0
        %976 = vmatprep.subr.bf16.mxu0 0
        %977 = vmatpush1.bf16.msra.mxu0 0
        %978 = vmatprep.mubr.bf16.mxu0 0
        %979 = vmatmul.mubr.bf16.gmra.mrb[0].mxu0 %v940
        %v980 = vpop.f32.mrb[0].mxu0
        %v981 = vadd.f32 0.0, %v980
        %v982 = vpop.f32.mrb[0].mxu0
        %v983 = vpop.f32.mrb[0].mxu0
        %v984 = vpop.f32.mrb[0].mxu0
        %985 = vdwg.mxu0
        %v987 = vsel %vm705, %v936, 0
        %v990 = vsel %vm942, %v702, 0
        %992 = vmatprep.subr.bf16.mxu0 0
        %993 = vmatpush1.bf16.msra.mxu0 %v990
        %994 = vmatprep.subr.bf16.mxu0 0
        %995 = vmatpush1.bf16.msra.mxu0 0
        %996 = vmatprep.subr.bf16.mxu0 0
        %997 = vmatpush1.bf16.msra.mxu0 0
        %998 = vmatprep.subr.bf16.mxu0 0
        %999 = vmatpush1.bf16.msra.mxu0 0
        %1000 = vmatprep.subr.bf16.mxu0 0
        %1001 = vmatpush1.bf16.msra.mxu0 0
        %1002 = vmatprep.subr.bf16.mxu0 0
        %1003 = vmatpush1.bf16.msra.mxu0 0
        %1004 = vmatprep.subr.bf16.mxu0 0
        %1005 = vmatpush1.bf16.msra.mxu0 0
        %1006 = vmatprep.subr.bf16.mxu0 0
        %1007 = vmatpush1.bf16.msra.mxu0 0
        %1008 = vmatprep.subr.bf16.mxu0 0
        %1009 = vmatpush1.bf16.msra.mxu0 0
        %1010 = vmatprep.subr.bf16.mxu0 0
        %1011 = vmatpush1.bf16.msra.mxu0 0
        %1012 = vmatprep.subr.bf16.mxu0 0
        %1013 = vmatpush1.bf16.msra.mxu0 0
        %1014 = vmatprep.subr.bf16.mxu0 0
        %1015 = vmatpush1.bf16.msra.mxu0 0
        %1016 = vmatprep.subr.bf16.mxu0 0
        %1017 = vmatpush1.bf16.msra.mxu0 0
        %1018 = vmatprep.subr.bf16.mxu0 0
        %1019 = vmatpush1.bf16.msra.mxu0 0
        %1020 = vmatprep.subr.bf16.mxu0 0
        %1021 = vmatpush1.bf16.msra.mxu0 0
        %1022 = vmatprep.subr.bf16.mxu0 0
        %1023 = vmatpush1.bf16.msra.mxu0 0
        %1024 = vmatprep.mubr.bf16.mxu0 0
        %1025 = vmatmul.mubr.bf16.gmra.mrb[0].mxu0 %v987
        %v1026 = vpop.f32.mrb[0].mxu0
        %v1027 = vadd.f32 0.0, %v1026
        %v1028 = vpop.f32.mrb[0].mxu0
        %v1029 = vpop.f32.mrb[0].mxu0
        %v1030 = vpop.f32.mrb[0].mxu0
        %1031 = vdwg.mxu0
        %v1033 = vsel %vm705, %v937, 0
        %v1036 = vsel %vm942, %v703, 0
        %1038 = vmatprep.subr.bf16.mxu0 0
        %1039 = vmatpush1.bf16.msra.mxu0 %v1036
        %1040 = vmatprep.subr.bf16.mxu0 0
        %1041 = vmatpush1.bf16.msra.mxu0 0
        %1042 = vmatprep.subr.bf16.mxu0 0
        %1043 = vmatpush1.bf16.msra.mxu0 0
        %1044 = vmatprep.subr.bf16.mxu0 0
        %1045 = vmatpush1.bf16.msra.mxu0 0
        %1046 = vmatprep.subr.bf16.mxu0 0
        %1047 = vmatpush1.bf16.msra.mxu0 0
        %1048 = vmatprep.subr.bf16.mxu0 0
        %1049 = vmatpush1.bf16.msra.mxu0 0
        %1050 = vmatprep.subr.bf16.mxu0 0
        %1051 = vmatpush1.bf16.msra.mxu0 0
        %1052 = vmatprep.subr.bf16.mxu0 0
        %1053 = vmatpush1.bf16.msra.mxu0 0
        %1054 = vmatprep.subr.bf16.mxu0 0
        %1055 = vmatpush1.bf16.msra.mxu0 0
        %1056 = vmatprep.subr.bf16.mxu0 0
        %1057 = vmatpush1.bf16.msra.mxu0 0
        %1058 = vmatprep.subr.bf16.mxu0 0
        %1059 = vmatpush1.bf16.msra.mxu0 0
        %1060 = vmatprep.subr.bf16.mxu0 0
        %1061 = vmatpush1.bf16.msra.mxu0 0
        %1062 = vmatprep.subr.bf16.mxu0 0
        %1063 = vmatpush1.bf16.msra.mxu0 0
        %1064 = vmatprep.subr.bf16.mxu0 0
        %1065 = vmatpush1.bf16.msra.mxu0 0
        %1066 = vmatprep.subr.bf16.mxu0 0
        %1067 = vmatpush1.bf16.msra.mxu0 0
        %1068 = vmatprep.subr.bf16.mxu0 0
        %1069 = vmatpush1.bf16.msra.mxu0 0
        %1070 = vmatprep.mubr.bf16.mxu0 0
        %1071 = vmatmul.mubr.bf16.gmra.mrb[0].mxu0 %v1033
        %v1072 = vpop.f32.mrb[0].mxu0
        %v1073 = vadd.f32 0.0, %v1072
        %v1074 = vpop.f32.mrb[0].mxu0
        %v1075 = vpop.f32.mrb[0].mxu0
        %v1076 = vpop.f32.mrb[0].mxu0
        %1077 = vdwg.mxu0
        %v1079 = vsel %vm705, %v938, 0
        %v1082 = vsel %vm942, %v704, 0
        %1084 = vmatprep.subr.bf16.mxu0 0
        %1085 = vmatpush1.bf16.msra.mxu0 %v1082
        %1086 = vmatprep.subr.bf16.mxu0 0
        %1087 = vmatpush1.bf16.msra.mxu0 0
        %1088 = vmatprep.subr.bf16.mxu0 0
        %1089 = vmatpush1.bf16.msra.mxu0 0
        %1090 = vmatprep.subr.bf16.mxu0 0
        %1091 = vmatpush1.bf16.msra.mxu0 0
        %1092 = vmatprep.subr.bf16.mxu0 0
        %1093 = vmatpush1.bf16.msra.mxu0 0
        %1094 = vmatprep.subr.bf16.mxu0 0
        %1095 = vmatpush1.bf16.msra.mxu0 0
        %1096 = vmatprep.subr.bf16.mxu0 0
        %1097 = vmatpush1.bf16.msra.mxu0 0
        %1098 = vmatprep.subr.bf16.mxu0 0
        %1099 = vmatpush1.bf16.msra.mxu0 0
        %1100 = vmatprep.subr.bf16.mxu0 0
        %1101 = vmatpush1.bf16.msra.mxu0 0
        %1102 = vmatprep.subr.bf16.mxu0 0
        %1103 = vmatpush1.bf16.msra.mxu0 0
        %1104 = vmatprep.subr.bf16.mxu0 0
        %1105 = vmatpush1.bf16.msra.mxu0 0
        %1106 = vmatprep.subr.bf16.mxu0 0
        %1107 = vmatpush1.bf16.msra.mxu0 0
        %1108 = vmatprep.subr.bf16.mxu0 0
        %1109 = vmatpush1.bf16.msra.mxu0 0
        %1110 = vmatprep.subr.bf16.mxu0 0
        %1111 = vmatpush1.bf16.msra.mxu0 0
        %1112 = vmatprep.subr.bf16.mxu0 0
        %1113 = vmatpush1.bf16.msra.mxu0 0
        %1114 = vmatprep.subr.bf16.mxu0 0
        %1115 = vmatpush1.bf16.msra.mxu0 0
        %1116 = vmatprep.mubr.bf16.mxu0 0
        %1117 = vmatmul.mubr.bf16.gmra.mrb[0].mxu0 %v1079
        %v1118 = vpop.f32.mrb[0].mxu0
        %v1119 = vadd.f32 0.0, %v1118
        %v1120 = vpop.f32.mrb[0].mxu0
        %v1121 = vpop.f32.mrb[0].mxu0
        %v1122 = vpop.f32.mrb[0].mxu0
        %1123 = vdwg.mxu0
        %1125 = vrot.lane.b32.xlu0 %v1027, 8
        %v1126 = vpop.permute.xlu0 %1125
        %1129 = vrot.lane.b32.xlu0 %v1073, 16
        %v1130 = vpop.permute.xlu0 %1129
        %1133 = vrot.lane.b32.xlu0 %v1119, 24
        %v1134 = vpop.permute.xlu0 %1133
        %v1136 = vsel %vm705, %v981, %v1126
        %vm1137 = vcmask 130048
        %v1138 = vsel %vm1137, %v1136, %v1130
        %vm1139 = vcmask 195584
        %v1140 = vsel %vm1139, %v1138, %v1134
        %v1141 = vld [vmem:[%s420] sm:$0xff]
        %v1142 = vld [vmem:[%s6] sm:$0x1]
        %v1143 = vld [vmem:[%s7] sm:$0x1]
        %v1144 = vadd.f32 %v1140, %v1141
        %v1145 = vsel %vm501, %v1144, 0.0
        %1146 = vadd.xlane.f32.xlu0 %v1145
        %v1147 = vpop.xlane.xlu0 %1146
        %v1148 = vrcp.pop 32.0
        %v1149 = vmul.f32 %v1147, %v1148
        %v1150 = vsub.f32 %v1144, %v1149
        %v1151 = vmul.f32 %v1150, %v1150
        %v1152 = vsel %vm501, %v1151, 0.0
        %1153 = vadd.xlane.f32.xlu0 %v1152
        %v1154 = vpop.xlane.xlu0 %1153
        %v1155 = vrcp.pop 31.0
        %v1156 = vmul.f32 %v1154, %v1155
        %v1157 = vrsqrt.pop %v1156
        %v1158 = vmul.f32 %v1156, %v1157
        %vm1159 = vcmp.eq.f32.partialorder %v1156, inf
        %v1160 = vsel %vm1159, %v1156, %v1158
        %vm1161 = vcmp.eq.f32.partialorder %v1156, 0.0
        %v1162 = vand.u32 %v1156, 2147483648
        %v1163 = vsel %vm1161, %v1162, %v1160
        %v1164 = vadd.f32 %v1163, 0.001
        %v1165 = vrcp.pop %v1164
        %v1166 = vmul.f32 %v1150, %v1165
        %v1168 = vlaneseq
        %v1169 = vshrl.u32 %v1168, 7
        %v1170 = vsub.s32 0, %v1169
        %v1171 = vrot.slane %v1142, %v1170
        %v1173 = vmul.f32 %v1166, %v1171
        %v1175 = vlaneseq
        %v1176 = vshrl.u32 %v1175, 7
        %v1177 = vsub.s32 0, %v1176
        %v1178 = vrot.slane %v1143, %v1177
        %v1180 = vadd.f32 %v1173, %v1178
        %1181 = vst.msk [vmem:[%s470] sm:$0xff] %vm501, %v1180
        %s1182 = sand.u32 %s241, 1
        %s1183 = scalar_lea.sflag [#allocation4], %s1182
        %s1184 = sand.u32 %s241, 1
        %s1185 = smul.addr %s1184, 8
        %s1186 = scalar_lea.vmem [#allocation11], %s1185
        %s1187 = sand.u32 %s269, 1
        %s1188 = scalar_lea.sflag [#allocation13], %s1187
        %s1189 = sand.u32 %s269, 1
        %s1190 = smul.addr %s1189, 8
        %s1191 = scalar_lea.vmem [#allocation12], %s1190
        // Predicated region
        $region73: #{tpu_custom_call.1} parent=51 // pred_check
          %p1192 = pneg %p251
        $region74: #{tpu_custom_call.1} parent=51 // pred_check_branch
          %1194 = sbr.rel (%p1192) target = $region76
        $region75: #{tpu_custom_call.1} parent=51 // pred_region
          %s1196 = ssub.s32 128, 128
          %1197 = vsyncadd %s1183, %s1196
          %s1198 = sadd.s32 %s39, %s38
          %s1199 = smul.addr %s1198, 128
          %s1200 = scalar_lea.hbm %s8, %s1199
          %s1202 = sshll.u32 %s1186, 4
          %s1203 = int_to_ptr.vmem [resolvable:$true] %s1202
          %1205 = dma.vmem_to_hbm [thread:$0]  %s1203, 128, %s1200, %s1183
        $region76: #{tpu_custom_call.1} parent=51 // pred_fallthru
          _
        // Predicated region
        $region77: #{tpu_custom_call.1} parent=51 // pred_check
          %p1206 = pneg %p279
        $region78: #{tpu_custom_call.1} parent=51 // pred_check_branch
          %1208 = sbr.rel (%p1206) target = $region80
        $region79: #{tpu_custom_call.1} parent=51 // pred_region
          %s1210 = ssub.s32 128, 128
          %1211 = vsyncadd %s1188, %s1210
          %s1212 = sadd.s32 %s39, %s38
          %s1213 = smul.addr %s1212, 128
          %s1214 = scalar_lea.hbm %s9, %s1213
          %s1216 = sshll.u32 %s1191, 4
          %s1217 = int_to_ptr.vmem [resolvable:$true] %s1216
          %1219 = dma.vmem_to_hbm [thread:$0]  %s1217, 128, %s1214, %s1188
        $region80: #{tpu_custom_call.1} parent=51 // pred_fallthru
          _
      $region52: #{tpu_custom_call.1} parent=5 // pred_fallthru
        _
      %p1220 = scmp.le.s32.totalorder 2, %s29
      // Predicated region
      $region81: #{tpu_custom_call.1} parent=5 // pred_check
        %p1221 = pneg %p1220
      $region82: #{tpu_custom_call.1} parent=5 // pred_check_branch
        %1223 = sbr.rel (%p1221) target = $region84
      $region83: #{tpu_custom_call.1} parent=5 // pred_region
        %s1224 = ssub.s32 %s29, 2
        // Predicated region
        $region85: #{tpu_custom_call.1} parent=83 // pred_check
          %p1225 = pneg %p257
        $region86: #{tpu_custom_call.1} parent=83 // pred_check_branch
          %1227 = sbr.rel (%p1225) target = $region88
        $region87: #{tpu_custom_call.1} parent=83 // pred_region
          %s1228 = sand.u32 %s242, 1
          %s1229 = scalar_lea.sflag [#allocation4], %s1228
          %s1230 = sand.u32 %s242, 1
          %s1231 = smul.addr %s1230, 8
          %s1232 = scalar_lea.vmem [#allocation11], %s1231
          %1233 = dma.done %s1229, 128
        $region88: #{tpu_custom_call.1} parent=83 // pred_fallthru
          _
        // Predicated region
        $region89: #{tpu_custom_call.1} parent=83 // pred_check
          %p1234 = pneg %p285
        $region90: #{tpu_custom_call.1} parent=83 // pred_check_branch
          %1236 = sbr.rel (%p1234) target = $region92
        $region91: #{tpu_custom_call.1} parent=83 // pred_region
          %s1237 = sand.u32 %s270, 1
          %s1238 = scalar_lea.sflag [#allocation13], %s1237
          %s1239 = sand.u32 %s270, 1
          %s1240 = smul.addr %s1239, 8
          %s1241 = scalar_lea.vmem [#allocation12], %s1240
          %1242 = dma.done %s1238, 128
        $region92: #{tpu_custom_call.1} parent=83 // pred_fallthru
          _
      $region84: #{tpu_custom_call.1} parent=5 // pred_fallthru
        _
    $region6: #{tpu_custom_call.1} parent=1 // loop_footer
      %s33 = sadd.s32 1, %s29
    $region7: #{tpu_custom_call.1} parent=1 // loop_footer_branch
      %28 = sbr.rel target = $region3
    $region8: #{tpu_custom_call.1} parent=1 // loop_exit
      _
    %1243 = vsyncpa [#allocation3], 1
    %s1244 = scalar_lea.sflag [#allocation3], 1
    %1245 = vsyncpa %s1244, 1
    %1246 = vsyncpa [#allocation6], 1
    %s1247 = scalar_lea.sflag [#allocation6], 1
    %1248 = vsyncpa %s1247, 1
    %1249 = vsyncpa [#allocation9], 1
    %1250 = vsyncpa [#allocation4], 1
    %s1251 = scalar_lea.sflag [#allocation4], 1
    %1252 = vsyncpa %s1251, 1
    %1253 = vsyncpa [#allocation13], 1
    %s1254 = scalar_lea.sflag [#allocation13], 1
    %1255 = vsyncpa %s1254, 1

</llo_original>
